<compile_context>
chip_gen: v5e
topology: v5e:2x2
jax: 0.10.0
libtpu: 0.0.40
codegen_flags: <defaults>
</compile_context>

<pallas_src>
import functools

import jax
import jax.numpy as jnp
from jax import lax
from jax.experimental import pallas as pl
from jax.experimental.pallas import tpu as pltpu

_MIB = 1024 * 1024


def _round_up(x, m):
    return ((x + m - 1) // m) * m


def _cdiv(a, b):
    return -(-a // b)


def _sublane_align(dtype):
    return max(8, 32 // jnp.dtype(dtype).itemsize)


def _pick_tile(dim, max_tile, align):
    """Largest aligned tile <= max_tile that balances the tile count (keeps the
    padded remainder to < align per tile instead of a whole extra tile)."""
    dim_p = _round_up(max(dim, 1), align)
    if dim_p <= max_tile:
        return dim_p
    n_tiles = _cdiv(dim_p, max_tile)
    return _round_up(_cdiv(dim_p, n_tiles), align)


def _vmem_limit(nbytes):
    # Explicit scoped-VMEM request: at least the 16/32 MiB defaults, but capped
    # at 64 MiB so the same kernel config is valid on v7x.
    return int(min(max(nbytes, 32 * _MIB), 64 * _MIB))


def _pick_time_chunk(T, max_chunk=16):
    # Largest divisor of T that is <= max_chunk (grid steps = T // Tc).
    for tc in range(min(max_chunk, T), 0, -1):
        if T % tc == 0:
            return tc
    return 1


# ---------------------------------------------------------------------------
# Kernel 1: tiled matmul + bias   out[M, N] = x[M, K] @ w[K, N] + b[1, N]
# (used for both the input projection and the vocab projection)
# ---------------------------------------------------------------------------
def _matmul_bias_kernel_1k(x_ref, w_ref, b_ref, o_ref):
    # Single reduction step: no accumulator scratch, no init/finalize branches.
    o_ref[...] = (jnp.dot(x_ref[...], w_ref[...],
                          preferred_element_type=jnp.float32)
                  + b_ref[...]).astype(o_ref.dtype)


def _matmul_bias_kernel_acc(x_ref, w_ref, b_ref, o_ref, acc_ref):
    @pl.when(pl.program_id(2) == 0)
    def _():
        acc_ref[...] = jnp.zeros_like(acc_ref)

    acc_ref[...] += jnp.dot(x_ref[...], w_ref[...],
                            preferred_element_type=jnp.float32)

    @pl.when(pl.program_id(2) == pl.num_programs(2) - 1)
    def _():
        o_ref[...] = (acc_ref[...] + b_ref[...]).astype(o_ref.dtype)


def _matmul_bias(x, w, b, *, out_dtype=jnp.float32, tm=512, tn=512, tk=None):
    """x: [M, K], w: [K, N], b: [N] (f32) -> [M, N] out_dtype (f32 accumulate)."""
    M, K = x.shape
    Kw, N = w.shape
    assert K == Kw
    Kp_full = _round_up(K, 128)
    if tk is None:
        # Single K step whenever the reduction dim is modest (E or H).
        tk = Kp_full if Kp_full <= 2048 else 1024
    tm = _pick_tile(M, tm, _sublane_align(x.dtype))
    tn = _pick_tile(N, tn, 128)
    tk = _pick_tile(K, tk, 128)
    Mp, Np, Kp = _round_up(M, tm), _round_up(N, tn), _round_up(K, tk)

    xp = jnp.pad(x, ((0, Mp - M), (0, Kp - K)))
    wp = jnp.pad(w, ((0, Kp - K), (0, Np - N)))
    bp = jnp.pad(b.astype(jnp.float32).reshape(1, N), ((0, 0), (0, Np - N)))

    out_b = jnp.dtype(out_dtype).itemsize
    vmem_est = (2 * (tm * tk * xp.dtype.itemsize + tk * tn * wp.dtype.itemsize
                     + tn * 4 + tm * tn * out_b)
                + tm * tn * 4 + 2 * _MIB)

    if Kp == tk:
        out = pl.pallas_call(
            _matmul_bias_kernel_1k,
            out_shape=jax.ShapeDtypeStruct((Mp, Np), out_dtype),
            grid_spec=pltpu.PrefetchScalarGridSpec(
                num_scalar_prefetch=0,
                grid=(Mp // tm, Np // tn),
                in_specs=[pl.BlockSpec((tm, tk), lambda i, j: (i, 0)),
                          pl.BlockSpec((tk, tn), lambda i, j: (0, j)),
                          pl.BlockSpec((1, tn), lambda i, j: (0, j))],
                out_specs=pl.BlockSpec((tm, tn), lambda i, j: (i, j))),
            compiler_params=pltpu.CompilerParams(
                dimension_semantics=("parallel", "parallel"),
                vmem_limit_bytes=_vmem_limit(vmem_est)),
        )(xp, wp, bp)
    else:
        out = pl.pallas_call(
            _matmul_bias_kernel_acc,
            out_shape=jax.ShapeDtypeStruct((Mp, Np), out_dtype),
            grid_spec=pltpu.PrefetchScalarGridSpec(
                num_scalar_prefetch=0,
                grid=(Mp // tm, Np // tn, Kp // tk),
                in_specs=[pl.BlockSpec((tm, tk), lambda i, j, k: (i, k)),
                          pl.BlockSpec((tk, tn), lambda i, j, k: (k, j)),
                          pl.BlockSpec((1, tn), lambda i, j, k: (0, j))],
                out_specs=pl.BlockSpec((tm, tn), lambda i, j, k: (i, j)),
                scratch_shapes=[pltpu.VMEM((tm, tn), jnp.float32)]),
            compiler_params=pltpu.CompilerParams(
                dimension_semantics=("parallel", "parallel", "arbitrary"),
                vmem_limit_bytes=_vmem_limit(vmem_est)),
        )(xp, wp, bp)
    return out[:M, :N]


# ---------------------------------------------------------------------------
# Kernel 2: time-chunked LSTM recurrence.
# Grid over time chunks ("arbitrary"); h/c resident in VMEM scratch; W_hh^T
# copied once into single-buffered VMEM; per step only h @ W_hh^T + gates_x[t].
# ---------------------------------------------------------------------------
def _lstm_recurrent_kernel(gx_ref,      # [Tc, Bp, 4Hp] chunk (mxu dtype)
                           h0_ref,      # [Bp, Hp] f32
                           c0_ref,      # [Bp, Hp] f32
                           whh_hbm,     # [Hp, 4Hp] in HBM (memory_space=ANY)
                           hall_ref,    # out chunk [Tc, Bp, Hp]
                           hn_ref,      # out [Bp, Hp] f32
                           cn_ref,      # out [Bp, Hp] f32
                           h_scr, c_scr, whh_vmem, whh_sem):
    chunk = pl.program_id(0)
    Tc = gx_ref.shape[0]
    Hp = h0_ref.shape[1]

    @pl.when(chunk == 0)
    def _():
        # Copy the loop-invariant W_hh^T into VMEM exactly once (single buffer).
        cp = pltpu.make_async_copy(whh_hbm, whh_vmem, whh_sem.at[0])
        cp.start()
        h_scr[...] = h0_ref[...]
        c_scr[...] = c0_ref[...]
        cp.wait()

    def step(t, carry):
        h = h_scr[...]
        c = c_scr[...]
        gates = gx_ref[t].astype(jnp.float32) + jnp.dot(
            h.astype(whh_vmem.dtype), whh_vmem[...],
            preferred_element_type=jnp.float32)
        # PyTorch LSTM gate ordering: input, forget, cell(g), output.
        # Hp is a multiple of 128, so every slice is lane-aligned.
        i_g = jax.nn.sigmoid(gates[:, 0 * Hp:1 * Hp])
        f_g = jax.nn.sigmoid(gates[:, 1 * Hp:2 * Hp])
        g_g = jnp.tanh(gates[:, 2 * Hp:3 * Hp])
        o_g = jax.nn.sigmoid(gates[:, 3 * Hp:4 * Hp])
        c_new = f_g * c + i_g * g_g
        h_new = o_g * jnp.tanh(c_new)
        h_scr[...] = h_new
        c_scr[...] = c_new
        hall_ref[t] = h_new.astype(hall_ref.dtype)
        return carry

    lax.fori_loop(0, Tc, step, 0, unroll=True)

    # Final-state stores only once, on the last chunk (saves T-1 store passes).
    @pl.when(chunk == pl.num_programs(0) - 1)
    def _():
        hn_ref[...] = h_scr[...]
        cn_ref[...] = c_scr[...]


def _lstm_recurrence(gates_x, h0, c0, whh_t, *, out_dtype, time_chunk):
    T, Bp, G4 = gates_x.shape
    Hp = h0.shape[1]
    Tc = time_chunk
    assert T % Tc == 0

    vmem_est = (2 * Tc * Bp * G4 * gates_x.dtype.itemsize       # gx, 2x buffered
                + 2 * Tc * Bp * Hp * jnp.dtype(out_dtype).itemsize  # h_all chunk
                + Hp * G4 * whh_t.dtype.itemsize                # W_hh^T, 1x buf
                + 8 * Bp * Hp * 4                                # h0/c0/hn/cn/scr
                + 2 * _MIB)

    return pl.pallas_call(
        _lstm_recurrent_kernel,
        out_shape=(jax.ShapeDtypeStruct((T, Bp, Hp), out_dtype),
                   jax.ShapeDtypeStruct((Bp, Hp), jnp.float32),
                   jax.ShapeDtypeStruct((Bp, Hp), jnp.float32)),
        grid_spec=pltpu.PrefetchScalarGridSpec(
            num_scalar_prefetch=0,
            grid=(T // Tc,),
            in_specs=[pl.BlockSpec((Tc, Bp, G4), lambda t: (t, 0, 0)),
                      pl.BlockSpec((Bp, Hp), lambda t: (0, 0)),
                      pl.BlockSpec((Bp, Hp), lambda t: (0, 0)),
                      # W_hh^T stays in HBM; DMA'd once into VMEM scratch.
                      pl.BlockSpec(memory_space=pl.ANY)],
            out_specs=(pl.BlockSpec((Tc, Bp, Hp), lambda t: (t, 0, 0)),
                       pl.BlockSpec((Bp, Hp), lambda t: (0, 0)),
                       pl.BlockSpec((Bp, Hp), lambda t: (0, 0))),
            scratch_shapes=[pltpu.VMEM((Bp, Hp), jnp.float32),
                            pltpu.VMEM((Bp, Hp), jnp.float32),
                            pltpu.VMEM((Hp, G4), whh_t.dtype),
                            pltpu.SemaphoreType.DMA((1,))]),
        compiler_params=pltpu.CompilerParams(
            dimension_semantics=("arbitrary",),
            vmem_limit_bytes=_vmem_limit(vmem_est)),
    )(gates_x, h0, c0, whh_t)


# ---------------------------------------------------------------------------
# Forward pass (matches PyTorch HarryPotterLM.forward semantics)
# ---------------------------------------------------------------------------
@functools.partial(jax.jit, static_argnames=("mxu_dtype",))
def harry_potter_lm_forward(x, params, hidden=None, mxu_dtype=jnp.bfloat16):
    """x: int32 [B, T] token ids -> (logits [B,T,V], (h_n [1,B,H], c_n [1,B,H])).

    mxu_dtype (default bfloat16) applies only to MXU matmul operands and the
    inter-stage handoff tensors; accumulation, gate nonlinearities and the
    h/c state stay float32.  Pass mxu_dtype=jnp.float32 for exact numerics.
    """
    emb_w = params["embedding"]
    w_ih, w_hh = params["w_ih"], params["w_hh"]
    b_ih, b_hh = params["b_ih"], params["b_hh"]
    w_fc, b_fc = params["w_fc"], params["b_fc"]

    B, T = x.shape
    V, E = emb_w.shape
    H = w_hh.shape[1]

    Bp = _round_up(B, 8)      # sublanes
    Ep = _round_up(E, 128)    # lanes
    Hp = _round_up(H, 128)
    Vp = _round_up(V, 128)

    # --- pre-transpose + gate-block-aware zero pad of weights (once, in XLA).
    def pad_gate(w, K, Kp):   # w: [4H, K] -> [4Hp, Kp]
        return jnp.pad(w.reshape(4, H, K),
                       ((0, 0), (0, Hp - H), (0, Kp - K))).reshape(4 * Hp, Kp)

    w_ih_t = pad_gate(w_ih, E, Ep).T                              # [Ep, 4Hp]
    w_hh_t = pad_gate(w_hh, H, Hp).T                              # [Hp, 4Hp]
    b_comb = jnp.pad((b_ih + b_hh).reshape(4, H),
                     ((0, 0), (0, Hp - H))).reshape(4 * Hp)       # [4Hp]
    w_fc_t = jnp.pad(w_fc, ((0, Vp - V), (0, Hp - H))).T          # [Hp, Vp]
    b_fc_p = jnp.pad(b_fc, (0, Vp - V))                           # [Vp]

    # --- embedding gather (plain-JAX glue) + time-major flatten.
    # TODO(synk): embedding lookup (row gather) stays in XLA; a Pallas DMA
    # gather adds nothing at these sizes.
    emb_p = jnp.pad(emb_w, ((0, 0), (0, Ep - E)))
    x_p = jnp.pad(x, ((0, Bp - B), (0, 0)))            # padded rows -> token 0
    embeds = jnp.take(emb_p, x_p, axis=0)              # [Bp, T, Ep]
    embeds_tm = jnp.transpose(embeds, (1, 0, 2)).reshape(T * Bp, Ep)

    # --- initial hidden state.
    if hidden is None:
        h0 = jnp.zeros((Bp, Hp), jnp.float32)
        c0 = jnp.zeros((Bp, Hp), jnp.float32)
    else:
        h0 = jnp.pad(hidden[0].reshape(B, H).astype(jnp.float32),
                     ((0, Bp - B), (0, Hp - H)))
        c0 = jnp.pad(hidden[1].reshape(B, H).astype(jnp.float32),
                     ((0, Bp - B), (0, Hp - H)))

    cast = lambda a: a.astype(mxu_dtype)

    # Stage 1: input projection over ALL timesteps (one tiled MXU matmul).
    # Output is emitted directly in mxu_dtype for the stage-1 -> stage-2 handoff.
    gates_x = _matmul_bias(cast(embeds_tm), cast(w_ih_t), b_comb,
                           out_dtype=mxu_dtype, tm=512, tn=512)
    gates_x = gates_x.reshape(T, Bp, 4 * Hp)

    # Stage 2: serial recurrence, time-chunked (only h @ W_hh^T per step).
    # h_all is emitted in mxu_dtype for the stage-2 -> stage-3 handoff.
    Tc = _pick_time_chunk(T)
    h_all, h_n, c_n = _lstm_recurrence(gates_x, h0, c0, cast(w_hh_t),
                                       out_dtype=mxu_dtype, time_chunk=Tc)

    # Stage 3: vocab projection (dominant FLOPs).  Transpose the small h_all
    # (Hp wide) to batch-major and drop padded batch rows BEFORE the matmul so
    # no transpose of the big logits tensor (Vp wide) is ever needed.
    h_bt = jnp.transpose(h_all[:, :B, :], (1, 0, 2)).reshape(B * T, Hp)
    logits = _matmul_bias(h_bt, cast(w_fc_t), b_fc_p,
                          out_dtype=jnp.float32, tm=1024, tn=512)
    logits = logits[:, :V].reshape(B, T, V)             # already batch_first

    h_n = h_n[:B, :H].reshape(1, B, H)
    c_n = c_n[:B, :H].reshape(1, B, H)
    return logits, (h_n, c_n)


# ---------------------------------------------------------------------------
# Parameter init (matches PyTorch defaults) and pure-JAX reference
# ---------------------------------------------------------------------------
def init_params(key, vocab_size, embedding_dim, hidden_dim):
    ks = jax.random.split(key, 7)
    bound = 1.0 / jnp.sqrt(hidden_dim)
    return {
        "embedding": jax.random.normal(ks[0], (vocab_size, embedding_dim), jnp.float32),
        "w_ih": jax.random.uniform(ks[1], (4 * hidden_dim, embedding_dim),
                                   jnp.float32, -bound, bound),
        "w_hh": jax.random.uniform(ks[2], (4 * hidden_dim, hidden_dim),
                                   jnp.float32, -bound, bound),
        "b_ih": jax.random.uniform(ks[3], (4 * hidden_dim,), jnp.float32, -bound, bound),
        "b_hh": jax.random.uniform(ks[4], (4 * hidden_dim,), jnp.float32, -bound, bound),
        "w_fc": jax.random.uniform(ks[5], (vocab_size, hidden_dim),
                                   jnp.float32, -bound, bound),
        "b_fc": jax.random.uniform(ks[6], (vocab_size,), jnp.float32, -bound, bound),
    }


def _reference_forward(x, params):
    emb = jnp.take(params["embedding"], x, axis=0)       # [B,T,E]
    B, T, E = emb.shape
    H = params["w_hh"].shape[1]
    b = params["b_ih"] + params["b_hh"]

    def step(carry, x_t):
        h, c = carry
        g = x_t @ params["w_ih"].T + h @ params["w_hh"].T + b
        i = jax.nn.sigmoid(g[:, :H]); f = jax.nn.sigmoid(g[:, H:2 * H])
        gg = jnp.tanh(g[:, 2 * H:3 * H]); o = jax.nn.sigmoid(g[:, 3 * H:])
        c = f * c + i * gg
        h = o * jnp.tanh(c)
        return (h, c), h

    (h_n, c_n), hs = lax.scan(step,
                              (jnp.zeros((B, H)), jnp.zeros((B, H))),
                              jnp.transpose(emb, (1, 0, 2)))
    outs = jnp.transpose(hs, (1, 0, 2))
    logits = outs @ params["w_fc"].T + params["b_fc"]
    return logits, (h_n[None], c_n[None])


if __name__ == "__main__":
    VOCAB, EMB, HID = 32, 16, 32
    B, T = 2, 8

    key = jax.random.PRNGKey(0)
    pkey, xkey = jax.random.split(key)
    params = init_params(pkey, VOCAB, EMB, HID)
    x = jax.random.randint(xkey, (B, T), 0, VOCAB, dtype=jnp.int32)

    ref_logits, (ref_h, ref_c) = _reference_forward(x, params)

    # f32 MXU path: verified numerically against the pure-JAX reference.
    logits, (h_n, c_n) = harry_potter_lm_forward(x, params, mxu_dtype=jnp.float32)
    jax.block_until_ready((logits, h_n, c_n))
    assert logits.shape == (B, T, VOCAB)
    assert h_n.shape == (1, B, HID) and c_n.shape == (1, B, HID)
    assert jnp.allclose(logits, ref_logits, atol=1e-4, rtol=1e-4)
    assert jnp.allclose(h_n, ref_h, atol=1e-4, rtol=1e-4)
    assert jnp.allclose(c_n, ref_c, atol=1e-4, rtol=1e-4)

    # Default path (bf16 MXU operands, f32 accumulation / gate math / state):
    # loose numerical check against the reference.
    logits_bf, (h_bf, c_bf) = harry_potter_lm_forward(x, params)
    jax.block_until_ready((logits_bf, h_bf, c_bf))
    assert logits_bf.shape == (B, T, VOCAB)
    assert bool(jnp.all(jnp.isfinite(logits_bf)))
    assert float(jnp.max(jnp.abs(logits_bf - ref_logits))) < 0.3
    assert float(jnp.max(jnp.abs(h_bf - ref_h))) < 0.3

    print("KERNEL_OK")
</pallas_src>

<mosaic_0001>
module attributes {stable_mosaic.version = 11 : i64} {
  func.func @_matmul_bias_kernel_1k(%arg0: i32, %arg1: i32, %arg2: memref<16x128xf32, #tpu.memory_space<vmem>>, %arg3: memref<128x128xf32, #tpu.memory_space<vmem>>, %arg4: memref<1x128xf32, #tpu.memory_space<vmem>>, %arg5: memref<16x128xf32, #tpu.memory_space<vmem>>) attributes {dimension_semantics = [#tpu.dimension_semantics<parallel>, #tpu.dimension_semantics<parallel>], iteration_bounds = array<i64: 1, 1>, scalar_prefetch = 0 : i64, scratch_operands = 0 : i64, tpu.core_type = #tpu.core_type<tc>, window_params = [{transform_indices = @transform_0, window_bounds = array<i64: 16, 128>}, {transform_indices = @transform_1, window_bounds = array<i64: 128, 128>}, {transform_indices = @transform_2, window_bounds = array<i64: 1, 128>}, {transform_indices = @transform_3, window_bounds = array<i64: 16, 128>}]} {
    %c0 = arith.constant 0 : index
    %c0_0 = arith.constant 0 : index
    %0 = vector.load %arg2[%c0, %c0_0] : memref<16x128xf32, #tpu.memory_space<vmem>>, vector<16x128xf32>
    %c0_1 = arith.constant 0 : index
    %c0_2 = arith.constant 0 : index
    %1 = vector.load %arg3[%c0_1, %c0_2] : memref<128x128xf32, #tpu.memory_space<vmem>>, vector<128x128xf32>
    %cst = arith.constant dense<0.000000e+00> : vector<16x128xf32>
    %2 = tpu.matmul %0, %1, %cst {dimension_numbers = #tpu.dot_dimension_numbers<[1], [0], [0], [1], [0, 0, 1, 1], [], []>} : vector<16x128xf32>, vector<128x128xf32>, vector<16x128xf32> -> vector<16x128xf32>
    %c0_3 = arith.constant 0 : index
    %c0_4 = arith.constant 0 : index
    %3 = vector.load %arg4[%c0_3, %c0_4] : memref<1x128xf32, #tpu.memory_space<vmem>>, vector<1x128xf32>
    %4 = vector.broadcast %3 : vector<1x128xf32> to vector<16x128xf32>
    %5 = arith.addf %2, %4 : vector<16x128xf32>
    %c0_5 = arith.constant 0 : index
    %c0_6 = arith.constant 0 : index
    %6 = vector.load %arg5[%c0_5, %c0_6] : memref<16x128xf32, #tpu.memory_space<vmem>>, vector<16x128xf32>
    tpu.vector_store %arg5[%c0_5, %c0_6], %5 {strides = array<i32>} : memref<16x128xf32, #tpu.memory_space<vmem>>, vector<16x128xf32>,
    return
  }
  func.func @transform_0(%arg0: i32, %arg1: i32) -> (i32, i32) {
    %c0_i32 = arith.constant 0 : i32
    %c0_i32_0 = arith.constant 0 : i32
    return %arg0, %c0_i32 : i32, i32
  }
  func.func @transform_1(%arg0: i32, %arg1: i32) -> (i32, i32) {
    %c0_i32 = arith.constant 0 : i32
    %c0_i32_0 = arith.constant 0 : i32
    return %c0_i32, %arg1 : i32, i32
  }
  func.func @transform_2(%arg0: i32, %arg1: i32) -> (i32, i32) {
    %c0_i32 = arith.constant 0 : i32
    %c0_i32_0 = arith.constant 0 : i32
    return %c0_i32, %arg1 : i32, i32
  }
  func.func @transform_3(%arg0: i32, %arg1: i32) -> (i32, i32) {
    %c0_i32 = arith.constant 0 : i32
    return %arg0, %arg1 : i32, i32
  }
}

module attributes {stable_mosaic.version = 11 : i64} {
  func.func @_matmul_bias_kernel_1k(%arg0: i32, %arg1: i32, %arg2: memref<64x128xf32, #tpu.memory_space<vmem>>, %arg3: memref<128x512xf32, #tpu.memory_space<vmem>>, %arg4: memref<1x512xf32, #tpu.memory_space<vmem>>, %arg5: memref<64x512xf32, #tpu.memory_space<vmem>>) attributes {dimension_semantics = [#tpu.dimension_semantics<parallel>, #tpu.dimension_semantics<parallel>], iteration_bounds = array<i64: 1, 1>, scalar_prefetch = 0 : i64, scratch_operands = 0 : i64, tpu.core_type = #tpu.core_type<tc>, window_params = [{transform_indices = @transform_0, window_bounds = array<i64: 64, 128>}, {transform_indices = @transform_1, window_bounds = array<i64: 128, 512>}, {transform_indices = @transform_2, window_bounds = array<i64: 1, 512>}, {transform_indices = @transform_3, window_bounds = array<i64: 64, 512>}]} {
    %c0 = arith.constant 0 : index
    %c0_0 = arith.constant 0 : index
    %0 = vector.load %arg2[%c0, %c0_0] : memref<64x128xf32, #tpu.memory_space<vmem>>, vector<64x128xf32>
    %c0_1 = arith.constant 0 : index
    %c0_2 = arith.constant 0 : index
    %1 = vector.load %arg3[%c0_1, %c0_2] : memref<128x512xf32, #tpu.memory_space<vmem>>, vector<128x512xf32>
    %cst = arith.constant dense<0.000000e+00> : vector<64x512xf32>
    %2 = tpu.matmul %0, %1, %cst {dimension_numbers = #tpu.dot_dimension_numbers<[1], [0], [0], [1], [0, 0, 1, 1], [], []>} : vector<64x128xf32>, vector<128x512xf32>, vector<64x512xf32> -> vector<64x512xf32>
    %c0_3 = arith.constant 0 : index
    %c0_4 = arith.constant 0 : index
    %3 = vector.load %arg4[%c0_3, %c0_4] : memref<1x512xf32, #tpu.memory_space<vmem>>, vector<1x512xf32>
    %4 = vector.broadcast %3 : vector<1x512xf32> to vector<64x512xf32>
    %5 = arith.addf %2, %4 : vector<64x512xf32>
    %c0_5 = arith.constant 0 : index
    %c0_6 = arith.constant 0 : index
    %6 = vector.load %arg5[%c0_5, %c0_6] : memref<64x512xf32, #tpu.memory_space<vmem>>, vector<64x512xf32>
    tpu.vector_store %arg5[%c0_5, %c0_6], %5 {strides = array<i32>} : memref<64x512xf32, #tpu.memory_space<vmem>>, vector<64x512xf32>,
    return
  }
  func.func @transform_0(%arg0: i32, %arg1: i32) -> (i32, i32) {
    %c0_i32 = arith.constant 0 : i32
    %c0_i32_0 = arith.constant 0 : i32
    return %arg0, %c0_i32 : i32, i32
  }
  func.func @transform_1(%arg0: i32, %arg1: i32) -> (i32, i32) {
    %c0_i32 = arith.constant 0 : i32
    %c0_i32_0 = arith.constant 0 : i32
    return %c0_i32, %arg1 : i32, i32
  }
  func.func @transform_2(%arg0: i32, %arg1: i32) -> (i32, i32) {
    %c0_i32 = arith.constant 0 : i32
    %c0_i32_0 = arith.constant 0 : i32
    return %c0_i32, %arg1 : i32, i32
  }
  func.func @transform_3(%arg0: i32, %arg1: i32) -> (i32, i32) {
    %c0_i32 = arith.constant 0 : i32
    return %arg0, %arg1 : i32, i32
  }
}

module attributes {stable_mosaic.version = 11 : i64} {
  func.func @_lstm_recurrent_kernel(%arg0: i32, %arg1: memref<8x8x512xf32, #tpu.memory_space<vmem>>, %arg2: memref<8x128xf32, #tpu.memory_space<vmem>>, %arg3: memref<8x128xf32, #tpu.memory_space<vmem>>, %arg4: memref<128x512xf32, #tpu.memory_space<any>>, %arg5: memref<8x8x128xf32, #tpu.memory_space<vmem>>, %arg6: memref<8x128xf32, #tpu.memory_space<vmem>>, %arg7: memref<8x128xf32, #tpu.memory_space<vmem>>, %arg8: memref<8x128xf32, #tpu.memory_space<vmem>>, %arg9: memref<8x128xf32, #tpu.memory_space<vmem>>, %arg10: memref<128x512xf32, #tpu.memory_space<vmem>>, %arg11: memref<1x!tpu.dma_semaphore, #tpu.memory_space<semaphore_mem>>) attributes {dimension_semantics = [#tpu.dimension_semantics<arbitrary>], iteration_bounds = array<i64: 1>, scalar_prefetch = 0 : i64, scratch_operands = 4 : i64, tpu.core_type = #tpu.core_type<tc>, window_params = [{transform_indices = @transform_0, window_bounds = array<i64: 8, 8, 512>}, {pipeline_mode = #tpu.pipeline_mode<synchronous>, transform_indices = @transform_1, window_bounds = array<i64: 8, 128>}, {pipeline_mode = #tpu.pipeline_mode<synchronous>, transform_indices = @transform_2, window_bounds = array<i64: 8, 128>}, {}, {transform_indices = @transform_4, window_bounds = array<i64: 8, 8, 128>}, {pipeline_mode = #tpu.pipeline_mode<synchronous>, transform_indices = @transform_5, window_bounds = array<i64: 8, 128>}, {pipeline_mode = #tpu.pipeline_mode<synchronous>, transform_indices = @transform_6, window_bounds = array<i64: 8, 128>}]} {
    %c0_i32 = arith.constant 0 : i32
    %0 = arith.cmpi eq, %arg0, %c0_i32 : i32
    %1 = arith.extui %0 : i1 to i32
    %c0_i32_0 = arith.constant 0 : i32
    %2 = arith.cmpi ne, %1, %c0_i32_0 : i32
    scf.if %2 {
      %c0_i32_146 = arith.constant 0 : i32
      %318 = tpu.memref_slice %arg11[%c0_i32_146] : memref<1x!tpu.dma_semaphore, #tpu.memory_space<semaphore_mem>> -> memref<1x!tpu.dma_semaphore, #tpu.memory_space<semaphore_mem>>
      %319 = tpu.memref_squeeze %318 : memref<1x!tpu.dma_semaphore, #tpu.memory_space<semaphore_mem>> -> memref<!tpu.dma_semaphore, #tpu.memory_space<semaphore_mem>>
      tpu.enqueue_dma source(%arg4 : memref<128x512xf32, #tpu.memory_space<any>>) target(%arg10 : memref<128x512xf32, #tpu.memory_space<vmem>>) target_semaphore(%319 : memref<!tpu.dma_semaphore, #tpu.memory_space<semaphore_mem>>)
      %c0_147 = arith.constant 0 : index
      %c0_148 = arith.constant 0 : index
      %320 = vector.load %arg2[%c0_147, %c0_148] : memref<8x128xf32, #tpu.memory_space<vmem>>, vector<8x128xf32>
      %c0_149 = arith.constant 0 : index
      %c0_150 = arith.constant 0 : index
      %321 = vector.load %arg8[%c0_149, %c0_150] : memref<8x128xf32, #tpu.memory_space<vmem>>, vector<8x128xf32>
      tpu.vector_store %arg8[%c0_149, %c0_150], %320 {strides = array<i32>} : memref<8x128xf32, #tpu.memory_space<vmem>>, vector<8x128xf32>,
      %c0_151 = arith.constant 0 : index
      %c0_152 = arith.constant 0 : index
      %322 = vector.load %arg3[%c0_151, %c0_152] : memref<8x128xf32, #tpu.memory_space<vmem>>, vector<8x128xf32>
      %c0_153 = arith.constant 0 : index
      %c0_154 = arith.constant 0 : index
      %323 = vector.load %arg9[%c0_153, %c0_154] : memref<8x128xf32, #tpu.memory_space<vmem>>, vector<8x128xf32>
      tpu.vector_store %arg9[%c0_153, %c0_154], %322 {strides = array<i32>} : memref<8x128xf32, #tpu.memory_space<vmem>>, vector<8x128xf32>,
      %c0_i32_155 = arith.constant 0 : i32
      %324 = tpu.memref_slice %arg11[%c0_i32_155] : memref<1x!tpu.dma_semaphore, #tpu.memory_space<semaphore_mem>> -> memref<1x!tpu.dma_semaphore, #tpu.memory_space<semaphore_mem>>
      %325 = tpu.memref_squeeze %324 : memref<1x!tpu.dma_semaphore, #tpu.memory_space<semaphore_mem>> -> memref<!tpu.dma_semaphore, #tpu.memory_space<semaphore_mem>>
      tpu.wait_dma2 semaphore(%325 : memref<!tpu.dma_semaphore, #tpu.memory_space<semaphore_mem>>) src(%arg4 : memref<128x512xf32, #tpu.memory_space<any>>) dst(%arg10 : memref<128x512xf32, #tpu.memory_space<vmem>>)
    } else {
    }
    %c0_i32_1 = arith.constant 0 : i32
    %c0 = arith.constant 0 : index
    %c0_2 = arith.constant 0 : index
    %3 = vector.load %arg8[%c0, %c0_2] : memref<8x128xf32, #tpu.memory_space<vmem>>, vector<8x128xf32>
    %c0_3 = arith.constant 0 : index
    %c0_4 = arith.constant 0 : index
    %4 = vector.load %arg9[%c0_3, %c0_4] : memref<8x128xf32, #tpu.memory_space<vmem>>, vector<8x128xf32>
    %5 = arith.index_cast %c0_i32_1 : i32 to index
    %c0_5 = arith.constant 0 : index
    %c0_6 = arith.constant 0 : index
    %6 = vector.load %arg1[%5, %c0_5, %c0_6] : memref<8x8x512xf32, #tpu.memory_space<vmem>>, vector<1x8x512xf32>
    %7 = vector.shape_cast %6 : vector<1x8x512xf32> to vector<8x512xf32>
    %c0_7 = arith.constant 0 : index
    %c0_8 = arith.constant 0 : index
    %8 = vector.load %arg10[%c0_7, %c0_8] : memref<128x512xf32, #tpu.memory_space<vmem>>, vector<128x512xf32>
    %cst = arith.constant dense<0.000000e+00> : vector<8x512xf32>
    %9 = tpu.matmul %3, %8, %cst {dimension_numbers = #tpu.dot_dimension_numbers<[1], [0], [0], [1], [0, 0, 1, 1], [], []>} : vector<8x128xf32>, vector<128x512xf32>, vector<8x512xf32> -> vector<8x512xf32>
    %10 = arith.addf %7, %9 : vector<8x512xf32>
    %11 = vector.extract_strided_slice %10 {offsets = [0, 0], sizes = [8, 128], strides = [1, 1]} : vector<8x512xf32> to vector<8x128xf32>
    %12 = arith.negf %11 : vector<8x128xf32>
    %13 = math.exp %12 : vector<8x128xf32>
    %cst_9 = arith.constant 1.000000e+00 : f32
    %14 = vector.broadcast %cst_9 : f32 to vector<8x128xf32>
    %15 = arith.addf %14, %13 : vector<8x128xf32>
    %16 = arith.divf %14, %15 : vector<8x128xf32>
    %17 = vector.extract_strided_slice %10 {offsets = [0, 128], sizes = [8, 128], strides = [1, 1]} : vector<8x512xf32> to vector<8x128xf32>
    %18 = arith.negf %17 : vector<8x128xf32>
    %19 = math.exp %18 : vector<8x128xf32>
    %cst_10 = arith.constant 1.000000e+00 : f32
    %20 = vector.broadcast %cst_10 : f32 to vector<8x128xf32>
    %21 = arith.addf %20, %19 : vector<8x128xf32>
    %22 = arith.divf %20, %21 : vector<8x128xf32>
    %23 = vector.extract_strided_slice %10 {offsets = [0, 256], sizes = [8, 128], strides = [1, 1]} : vector<8x512xf32> to vector<8x128xf32>
    %24 = math.tanh %23 : vector<8x128xf32>
    %25 = vector.extract_strided_slice %10 {offsets = [0, 384], sizes = [8, 128], strides = [1, 1]} : vector<8x512xf32> to vector<8x128xf32>
    %26 = arith.negf %25 : vector<8x128xf32>
    %27 = math.exp %26 : vector<8x128xf32>
    %cst_11 = arith.constant 1.000000e+00 : f32
    %28 = vector.broadcast %cst_11 : f32 to vector<8x128xf32>
    %29 = arith.addf %28, %27 : vector<8x128xf32>
    %30 = arith.divf %28, %29 : vector<8x128xf32>
    %31 = arith.mulf %22, %4 : vector<8x128xf32>
    %32 = arith.mulf %16, %24 : vector<8x128xf32>
    %33 = arith.addf %31, %32 : vector<8x128xf32>
    %34 = math.tanh %33 : vector<8x128xf32>
    %35 = arith.mulf %30, %34 : vector<8x128xf32>
    %c0_12 = arith.constant 0 : index
    %c0_13 = arith.constant 0 : index
    %36 = vector.load %arg8[%c0_12, %c0_13] : memref<8x128xf32, #tpu.memory_space<vmem>>, vector<8x128xf32>
    tpu.vector_store %arg8[%c0_12, %c0_13], %35 {strides = array<i32>} : memref<8x128xf32, #tpu.memory_space<vmem>>, vector<8x128xf32>,
    %c0_14 = arith.constant 0 : index
    %c0_15 = arith.constant 0 : index
    %37 = vector.load %arg9[%c0_14, %c0_15] : memref<8x128xf32, #tpu.memory_space<vmem>>, vector<8x128xf32>
    tpu.vector_store %arg9[%c0_14, %c0_15], %33 {strides = array<i32>} : memref<8x128xf32, #tpu.memory_space<vmem>>, vector<8x128xf32>,
    %38 = arith.index_cast %c0_i32_1 : i32 to index
    %c0_16 = arith.constant 0 : index
    %c0_17 = arith.constant 0 : index
    %39 = vector.load %arg5[%38, %c0_16, %c0_17] : memref<8x8x128xf32, #tpu.memory_space<vmem>>, vector<1x8x128xf32>
    %40 = vector.shape_cast %39 : vector<1x8x128xf32> to vector<8x128xf32>
    %41 = vector.shape_cast %35 : vector<8x128xf32> to vector<1x8x128xf32>
    tpu.vector_store %arg5[%38, %c0_16, %c0_17], %41 {strides = array<i32>} : memref<8x8x128xf32, #tpu.memory_space<vmem>>, vector<1x8x128xf32>,
    %c1_i32 = arith.constant 1 : i32
    %c0_18 = arith.constant 0 : index
    %c0_19 = arith.constant 0 : index
    %42 = vector.load %arg8[%c0_18, %c0_19] : memref<8x128xf32, #tpu.memory_space<vmem>>, vector<8x128xf32>
    %c0_20 = arith.constant 0 : index
    %c0_21 = arith.constant 0 : index
    %43 = vector.load %arg9[%c0_20, %c0_21] : memref<8x128xf32, #tpu.memory_space<vmem>>, vector<8x128xf32>
    %44 = arith.index_cast %c1_i32 : i32 to index
    %c0_22 = arith.constant 0 : index
    %c0_23 = arith.constant 0 : index
    %45 = vector.load %arg1[%44, %c0_22, %c0_23] : memref<8x8x512xf32, #tpu.memory_space<vmem>>, vector<1x8x512xf32>
    %46 = vector.shape_cast %45 : vector<1x8x512xf32> to vector<8x512xf32>
    %c0_24 = arith.constant 0 : index
    %c0_25 = arith.constant 0 : index
    %47 = vector.load %arg10[%c0_24, %c0_25] : memref<128x512xf32, #tpu.memory_space<vmem>>, vector<128x512xf32>
    %cst_26 = arith.constant dense<0.000000e+00> : vector<8x512xf32>
    %48 = tpu.matmul %42, %47, %cst_26 {dimension_numbers = #tpu.dot_dimension_numbers<[1], [0], [0], [1], [0, 0, 1, 1], [], []>} : vector<8x128xf32>, vector<128x512xf32>, vector<8x512xf32> -> vector<8x512xf32>
    %49 = arith.addf %46, %48 : vector<8x512xf32>
    %50 = vector.extract_strided_slice %49 {offsets = [0, 0], sizes = [8, 128], strides = [1, 1]} : vector<8x512xf32> to vector<8x128xf32>
    %51 = arith.negf %50 : vector<8x128xf32>
    %52 = math.exp %51 : vector<8x128xf32>
    %cst_27 = arith.constant 1.000000e+00 : f32
    %53 = vector.broadcast %cst_27 : f32 to vector<8x128xf32>
    %54 = arith.addf %53, %52 : vector<8x128xf32>
    %55 = arith.divf %53, %54 : vector<8x128xf32>
    %56 = vector.extract_strided_slice %49 {offsets = [0, 128], sizes = [8, 128], strides = [1, 1]} : vector<8x512xf32> to vector<8x128xf32>
    %57 = arith.negf %56 : vector<8x128xf32>
    %58 = math.exp %57 : vector<8x128xf32>
    %cst_28 = arith.constant 1.000000e+00 : f32
    %59 = vector.broadcast %cst_28 : f32 to vector<8x128xf32>
    %60 = arith.addf %59, %58 : vector<8x128xf32>
    %61 = arith.divf %59, %60 : vector<8x128xf32>
    %62 = vector.extract_strided_slice %49 {offsets = [0, 256], sizes = [8, 128], strides = [1, 1]} : vector<8x512xf32> to vector<8x128xf32>
    %63 = math.tanh %62 : vector<8x128xf32>
    %64 = vector.extract_strided_slice %49 {offsets = [0, 384], sizes = [8, 128], strides = [1, 1]} : vector<8x512xf32> to vector<8x128xf32>
    %65 = arith.negf %64 : vector<8x128xf32>
    %66 = math.exp %65 : vector<8x128xf32>
    %cst_29 = arith.constant 1.000000e+00 : f32
    %67 = vector.broadcast %cst_29 : f32 to vector<8x128xf32>
    %68 = arith.addf %67, %66 : vector<8x128xf32>
    %69 = arith.divf %67, %68 : vector<8x128xf32>
    %70 = arith.mulf %61, %43 : vector<8x128xf32>
    %71 = arith.mulf %55, %63 : vector<8x128xf32>
    %72 = arith.addf %70, %71 : vector<8x128xf32>
    %73 = math.tanh %72 : vector<8x128xf32>
    %74 = arith.mulf %69, %73 : vector<8x128xf32>
    %c0_30 = arith.constant 0 : index
    %c0_31 = arith.constant 0 : index
    %75 = vector.load %arg8[%c0_30, %c0_31] : memref<8x128xf32, #tpu.memory_space<vmem>>, vector<8x128xf32>
    tpu.vector_store %arg8[%c0_30, %c0_31], %74 {strides = array<i32>} : memref<8x128xf32, #tpu.memory_space<vmem>>, vector<8x128xf32>,
    %c0_32 = arith.constant 0 : index
    %c0_33 = arith.constant 0 : index
    %76 = vector.load %arg9[%c0_32, %c0_33] : memref<8x128xf32, #tpu.memory_space<vmem>>, vector<8x128xf32>
    tpu.vector_store %arg9[%c0_32, %c0_33], %72 {strides = array<i32>} : memref<8x128xf32, #tpu.memory_space<vmem>>, vector<8x128xf32>,
    %77 = arith.index_cast %c1_i32 : i32 to index
    %c0_34 = arith.constant 0 : index
    %c0_35 = arith.constant 0 : index
    %78 = vector.load %arg5[%77, %c0_34, %c0_35] : memref<8x8x128xf32, #tpu.memory_space<vmem>>, vector<1x8x128xf32>
    %79 = vector.shape_cast %78 : vector<1x8x128xf32> to vector<8x128xf32>
    %80 = vector.shape_cast %74 : vector<8x128xf32> to vector<1x8x128xf32>
    tpu.vector_store %arg5[%77, %c0_34, %c0_35], %80 {strides = array<i32>} : memref<8x8x128xf32, #tpu.memory_space<vmem>>, vector<1x8x128xf32>,
    %c2_i32 = arith.constant 2 : i32
    %c0_36 = arith.constant 0 : index
    %c0_37 = arith.constant 0 : index
    %81 = vector.load %arg8[%c0_36, %c0_37] : memref<8x128xf32, #tpu.memory_space<vmem>>, vector<8x128xf32>
    %c0_38 = arith.constant 0 : index
    %c0_39 = arith.constant 0 : index
    %82 = vector.load %arg9[%c0_38, %c0_39] : memref<8x128xf32, #tpu.memory_space<vmem>>, vector<8x128xf32>
    %83 = arith.index_cast %c2_i32 : i32 to index
    %c0_40 = arith.constant 0 : index
    %c0_41 = arith.constant 0 : index
    %84 = vector.load %arg1[%83, %c0_40, %c0_41] : memref<8x8x512xf32, #tpu.memory_space<vmem>>, vector<1x8x512xf32>
    %85 = vector.shape_cast %84 : vector<1x8x512xf32> to vector<8x512xf32>
    %c0_42 = arith.constant 0 : index
    %c0_43 = arith.constant 0 : index
    %86 = vector.load %arg10[%c0_42, %c0_43] : memref<128x512xf32, #tpu.memory_space<vmem>>, vector<128x512xf32>
    %cst_44 = arith.constant dense<0.000000e+00> : vector<8x512xf32>
    %87 = tpu.matmul %81, %86, %cst_44 {dimension_numbers = #tpu.dot_dimension_numbers<[1], [0], [0], [1], [0, 0, 1, 1], [], []>} : vector<8x128xf32>, vector<128x512xf32>, vector<8x512xf32> -> vector<8x512xf32>
    %88 = arith.addf %85, %87 : vector<8x512xf32>
    %89 = vector.extract_strided_slice %88 {offsets = [0, 0], sizes = [8, 128], strides = [1, 1]} : vector<8x512xf32> to vector<8x128xf32>
    %90 = arith.negf %89 : vector<8x128xf32>
    %91 = math.exp %90 : vector<8x128xf32>
    %cst_45 = arith.constant 1.000000e+00 : f32
    %92 = vector.broadcast %cst_45 : f32 to vector<8x128xf32>
    %93 = arith.addf %92, %91 : vector<8x128xf32>
    %94 = arith.divf %92, %93 : vector<8x128xf32>
    %95 = vector.extract_strided_slice %88 {offsets = [0, 128], sizes = [8, 128], strides = [1, 1]} : vector<8x512xf32> to vector<8x128xf32>
    %96 = arith.negf %95 : vector<8x128xf32>
    %97 = math.exp %96 : vector<8x128xf32>
    %cst_46 = arith.constant 1.000000e+00 : f32
    %98 = vector.broadcast %cst_46 : f32 to vector<8x128xf32>
    %99 = arith.addf %98, %97 : vector<8x128xf32>
    %100 = arith.divf %98, %99 : vector<8x128xf32>
    %101 = vector.extract_strided_slice %88 {offsets = [0, 256], sizes = [8, 128], strides = [1, 1]} : vector<8x512xf32> to vector<8x128xf32>
    %102 = math.tanh %101 : vector<8x128xf32>
    %103 = vector.extract_strided_slice %88 {offsets = [0, 384], sizes = [8, 128], strides = [1, 1]} : vector<8x512xf32> to vector<8x128xf32>
    %104 = arith.negf %103 : vector<8x128xf32>
    %105 = math.exp %104 : vector<8x128xf32>
    %cst_47 = arith.constant 1.000000e+00 : f32
    %106 = vector.broadcast %cst_47 : f32 to vector<8x128xf32>
    %107 = arith.addf %106, %105 : vector<8x128xf32>
    %108 = arith.divf %106, %107 : vector<8x128xf32>
    %109 = arith.mulf %100, %82 : vector<8x128xf32>
    %110 = arith.mulf %94, %102 : vector<8x128xf32>
    %111 = arith.addf %109, %110 : vector<8x128xf32>
    %112 = math.tanh %111 : vector<8x128xf32>
    %113 = arith.mulf %108, %112 : vector<8x128xf32>
    %c0_48 = arith.constant 0 : index
    %c0_49 = arith.constant 0 : index
    %114 = vector.load %arg8[%c0_48, %c0_49] : memref<8x128xf32, #tpu.memory_space<vmem>>, vector<8x128xf32>
    tpu.vector_store %arg8[%c0_48, %c0_49], %113 {strides = array<i32>} : memref<8x128xf32, #tpu.memory_space<vmem>>, vector<8x128xf32>,
    %c0_50 = arith.constant 0 : index
    %c0_51 = arith.constant 0 : index
    %115 = vector.load %arg9[%c0_50, %c0_51] : memref<8x128xf32, #tpu.memory_space<vmem>>, vector<8x128xf32>
    tpu.vector_store %arg9[%c0_50, %c0_51], %111 {strides = array<i32>} : memref<8x128xf32, #tpu.memory_space<vmem>>, vector<8x128xf32>,
    %116 = arith.index_cast %c2_i32 : i32 to index
    %c0_52 = arith.constant 0 : index
    %c0_53 = arith.constant 0 : index
    %117 = vector.load %arg5[%116, %c0_52, %c0_53] : memref<8x8x128xf32, #tpu.memory_space<vmem>>, vector<1x8x128xf32>
    %118 = vector.shape_cast %117 : vector<1x8x128xf32> to vector<8x128xf32>
    %119 = vector.shape_cast %113 : vector<8x128xf32> to vector<1x8x128xf32>
    tpu.vector_store %arg5[%116, %c0_52, %c0_53], %119 {strides = array<i32>} : memref<8x8x128xf32, #tpu.memory_space<vmem>>, vector<1x8x128xf32>,
    %c3_i32 = arith.constant 3 : i32
    %c0_54 = arith.constant 0 : index
    %c0_55 = arith.constant 0 : index
    %120 = vector.load %arg8[%c0_54, %c0_55] : memref<8x128xf32, #tpu.memory_space<vmem>>, vector<8x128xf32>
    %c0_56 = arith.constant 0 : index
    %c0_57 = arith.constant 0 : index
    %121 = vector.load %arg9[%c0_56, %c0_57] : memref<8x128xf32, #tpu.memory_space<vmem>>, vector<8x128xf32>
    %122 = arith.index_cast %c3_i32 : i32 to index
    %c0_58 = arith.constant 0 : index
    %c0_59 = arith.constant 0 : index
    %123 = vector.load %arg1[%122, %c0_58, %c0_59] : memref<8x8x512xf32, #tpu.memory_space<vmem>>, vector<1x8x512xf32>
    %124 = vector.shape_cast %123 : vector<1x8x512xf32> to vector<8x512xf32>
    %c0_60 = arith.constant 0 : index
    %c0_61 = arith.constant 0 : index
    %125 = vector.load %arg10[%c0_60, %c0_61] : memref<128x512xf32, #tpu.memory_space<vmem>>, vector<128x512xf32>
    %cst_62 = arith.constant dense<0.000000e+00> : vector<8x512xf32>
    %126 = tpu.matmul %120, %125, %cst_62 {dimension_numbers = #tpu.dot_dimension_numbers<[1], [0], [0], [1], [0, 0, 1, 1], [], []>} : vector<8x128xf32>, vector<128x512xf32>, vector<8x512xf32> -> vector<8x512xf32>
    %127 = arith.addf %124, %126 : vector<8x512xf32>
    %128 = vector.extract_strided_slice %127 {offsets = [0, 0], sizes = [8, 128], strides = [1, 1]} : vector<8x512xf32> to vector<8x128xf32>
    %129 = arith.negf %128 : vector<8x128xf32>
    %130 = math.exp %129 : vector<8x128xf32>
    %cst_63 = arith.constant 1.000000e+00 : f32
    %131 = vector.broadcast %cst_63 : f32 to vector<8x128xf32>
    %132 = arith.addf %131, %130 : vector<8x128xf32>
    %133 = arith.divf %131, %132 : vector<8x128xf32>
    %134 = vector.extract_strided_slice %127 {offsets = [0, 128], sizes = [8, 128], strides = [1, 1]} : vector<8x512xf32> to vector<8x128xf32>
    %135 = arith.negf %134 : vector<8x128xf32>
    %136 = math.exp %135 : vector<8x128xf32>
    %cst_64 = arith.constant 1.000000e+00 : f32
    %137 = vector.broadcast %cst_64 : f32 to vector<8x128xf32>
    %138 = arith.addf %137, %136 : vector<8x128xf32>
    %139 = arith.divf %137, %138 : vector<8x128xf32>
    %140 = vector.extract_strided_slice %127 {offsets = [0, 256], sizes = [8, 128], strides = [1, 1]} : vector<8x512xf32> to vector<8x128xf32>
    %141 = math.tanh %140 : vector<8x128xf32>
    %142 = vector.extract_strided_slice %127 {offsets = [0, 384], sizes = [8, 128], strides = [1, 1]} : vector<8x512xf32> to vector<8x128xf32>
    %143 = arith.negf %142 : vector<8x128xf32>
    %144 = math.exp %143 : vector<8x128xf32>
    %cst_65 = arith.constant 1.000000e+00 : f32
    %145 = vector.broadcast %cst_65 : f32 to vector<8x128xf32>
    %146 = arith.addf %145, %144 : vector<8x128xf32>
    %147 = arith.divf %145, %146 : vector<8x128xf32>
    %148 = arith.mulf %139, %121 : vector<8x128xf32>
    %149 = arith.mulf %133, %141 : vector<8x128xf32>
    %150 = arith.addf %148, %149 : vector<8x128xf32>
    %151 = math.tanh %150 : vector<8x128xf32>
    %152 = arith.mulf %147, %151 : vector<8x128xf32>
    %c0_66 = arith.constant 0 : index
    %c0_67 = arith.constant 0 : index
    %153 = vector.load %arg8[%c0_66, %c0_67] : memref<8x128xf32, #tpu.memory_space<vmem>>, vector<8x128xf32>
    tpu.vector_store %arg8[%c0_66, %c0_67], %152 {strides = array<i32>} : memref<8x128xf32, #tpu.memory_space<vmem>>, vector<8x128xf32>,
    %c0_68 = arith.constant 0 : index
    %c0_69 = arith.constant 0 : index
    %154 = vector.load %arg9[%c0_68, %c0_69] : memref<8x128xf32, #tpu.memory_space<vmem>>, vector<8x128xf32>
    tpu.vector_store %arg9[%c0_68, %c0_69], %150 {strides = array<i32>} : memref<8x128xf32, #tpu.memory_space<vmem>>, vector<8x128xf32>,
    %155 = arith.index_cast %c3_i32 : i32 to index
    %c0_70 = arith.constant 0 : index
    %c0_71 = arith.constant 0 : index
    %156 = vector.load %arg5[%155, %c0_70, %c0_71] : memref<8x8x128xf32, #tpu.memory_space<vmem>>, vector<1x8x128xf32>
    %157 = vector.shape_cast %156 : vector<1x8x128xf32> to vector<8x128xf32>
    %158 = vector.shape_cast %152 : vector<8x128xf32> to vector<1x8x128xf32>
    tpu.vector_store %arg5[%155, %c0_70, %c0_71], %158 {strides = array<i32>} : memref<8x8x128xf32, #tpu.memory_space<vmem>>, vector<1x8x128xf32>,
    %c4_i32 = arith.constant 4 : i32
    %c0_72 = arith.constant 0 : index
    %c0_73 = arith.constant 0 : index
    %159 = vector.load %arg8[%c0_72, %c0_73] : memref<8x128xf32, #tpu.memory_space<vmem>>, vector<8x128xf32>
    %c0_74 = arith.constant 0 : index
    %c0_75 = arith.constant 0 : index
    %160 = vector.load %arg9[%c0_74, %c0_75] : memref<8x128xf32, #tpu.memory_space<vmem>>, vector<8x128xf32>
    %161 = arith.index_cast %c4_i32 : i32 to index
    %c0_76 = arith.constant 0 : index
    %c0_77 = arith.constant 0 : index
    %162 = vector.load %arg1[%161, %c0_76, %c0_77] : memref<8x8x512xf32, #tpu.memory_space<vmem>>, vector<1x8x512xf32>
    %163 = vector.shape_cast %162 : vector<1x8x512xf32> to vector<8x512xf32>
    %c0_78 = arith.constant 0 : index
    %c0_79 = arith.constant 0 : index
    %164 = vector.load %arg10[%c0_78, %c0_79] : memref<128x512xf32, #tpu.memory_space<vmem>>, vector<128x512xf32>
    %cst_80 = arith.constant dense<0.000000e+00> : vector<8x512xf32>
    %165 = tpu.matmul %159, %164, %cst_80 {dimension_numbers = #tpu.dot_dimension_numbers<[1], [0], [0], [1], [0, 0, 1, 1], [], []>} : vector<8x128xf32>, vector<128x512xf32>, vector<8x512xf32> -> vector<8x512xf32>
    %166 = arith.addf %163, %165 : vector<8x512xf32>
    %167 = vector.extract_strided_slice %166 {offsets = [0, 0], sizes = [8, 128], strides = [1, 1]} : vector<8x512xf32> to vector<8x128xf32>
    %168 = arith.negf %167 : vector<8x128xf32>
    %169 = math.exp %168 : vector<8x128xf32>
    %cst_81 = arith.constant 1.000000e+00 : f32
    %170 = vector.broadcast %cst_81 : f32 to vector<8x128xf32>
    %171 = arith.addf %170, %169 : vector<8x128xf32>
    %172 = arith.divf %170, %171 : vector<8x128xf32>
    %173 = vector.extract_strided_slice %166 {offsets = [0, 128], sizes = [8, 128], strides = [1, 1]} : vector<8x512xf32> to vector<8x128xf32>
    %174 = arith.negf %173 : vector<8x128xf32>
    %175 = math.exp %174 : vector<8x128xf32>
    %cst_82 = arith.constant 1.000000e+00 : f32
    %176 = vector.broadcast %cst_82 : f32 to vector<8x128xf32>
    %177 = arith.addf %176, %175 : vector<8x128xf32>
    %178 = arith.divf %176, %177 : vector<8x128xf32>
    %179 = vector.extract_strided_slice %166 {offsets = [0, 256], sizes = [8, 128], strides = [1, 1]} : vector<8x512xf32> to vector<8x128xf32>
    %180 = math.tanh %179 : vector<8x128xf32>
    %181 = vector.extract_strided_slice %166 {offsets = [0, 384], sizes = [8, 128], strides = [1, 1]} : vector<8x512xf32> to vector<8x128xf32>
    %182 = arith.negf %181 : vector<8x128xf32>
    %183 = math.exp %182 : vector<8x128xf32>
    %cst_83 = arith.constant 1.000000e+00 : f32
    %184 = vector.broadcast %cst_83 : f32 to vector<8x128xf32>
    %185 = arith.addf %184, %183 : vector<8x128xf32>
    %186 = arith.divf %184, %185 : vector<8x128xf32>
    %187 = arith.mulf %178, %160 : vector<8x128xf32>
    %188 = arith.mulf %172, %180 : vector<8x128xf32>
    %189 = arith.addf %187, %188 : vector<8x128xf32>
    %190 = math.tanh %189 : vector<8x128xf32>
    %191 = arith.mulf %186, %190 : vector<8x128xf32>
    %c0_84 = arith.constant 0 : index
    %c0_85 = arith.constant 0 : index
    %192 = vector.load %arg8[%c0_84, %c0_85] : memref<8x128xf32, #tpu.memory_space<vmem>>, vector<8x128xf32>
    tpu.vector_store %arg8[%c0_84, %c0_85], %191 {strides = array<i32>} : memref<8x128xf32, #tpu.memory_space<vmem>>, vector<8x128xf32>,
    %c0_86 = arith.constant 0 : index
    %c0_87 = arith.constant 0 : index
    %193 = vector.load %arg9[%c0_86, %c0_87] : memref<8x128xf32, #tpu.memory_space<vmem>>, vector<8x128xf32>
    tpu.vector_store %arg9[%c0_86, %c0_87], %189 {strides = array<i32>} : memref<8x128xf32, #tpu.memory_space<vmem>>, vector<8x128xf32>,
    %194 = arith.index_cast %c4_i32 : i32 to index
    %c0_88 = arith.constant 0 : index
    %c0_89 = arith.constant 0 : index
    %195 = vector.load %arg5[%194, %c0_88, %c0_89] : memref<8x8x128xf32, #tpu.memory_space<vmem>>, vector<1x8x128xf32>
    %196 = vector.shape_cast %195 : vector<1x8x128xf32> to vector<8x128xf32>
    %197 = vector.shape_cast %191 : vector<8x128xf32> to vector<1x8x128xf32>
    tpu.vector_store %arg5[%194, %c0_88, %c0_89], %197 {strides = array<i32>} : memref<8x8x128xf32, #tpu.memory_space<vmem>>, vector<1x8x128xf32>,
    %c5_i32 = arith.constant 5 : i32
    %c0_90 = arith.constant 0 : index
    %c0_91 = arith.constant 0 : index
    %198 = vector.load %arg8[%c0_90, %c0_91] : memref<8x128xf32, #tpu.memory_space<vmem>>, vector<8x128xf32>
    %c0_92 = arith.constant 0 : index
    %c0_93 = arith.constant 0 : index
    %199 = vector.load %arg9[%c0_92, %c0_93] : memref<8x128xf32, #tpu.memory_space<vmem>>, vector<8x128xf32>
    %200 = arith.index_cast %c5_i32 : i32 to index
    %c0_94 = arith.constant 0 : index
    %c0_95 = arith.constant 0 : index
    %201 = vector.load %arg1[%200, %c0_94, %c0_95] : memref<8x8x512xf32, #tpu.memory_space<vmem>>, vector<1x8x512xf32>
    %202 = vector.shape_cast %201 : vector<1x8x512xf32> to vector<8x512xf32>
    %c0_96 = arith.constant 0 : index
    %c0_97 = arith.constant 0 : index
    %203 = vector.load %arg10[%c0_96, %c0_97] : memref<128x512xf32, #tpu.memory_space<vmem>>, vector<128x512xf32>
    %cst_98 = arith.constant dense<0.000000e+00> : vector<8x512xf32>
    %204 = tpu.matmul %198, %203, %cst_98 {dimension_numbers = #tpu.dot_dimension_numbers<[1], [0], [0], [1], [0, 0, 1, 1], [], []>} : vector<8x128xf32>, vector<128x512xf32>, vector<8x512xf32> -> vector<8x512xf32>
    %205 = arith.addf %202, %204 : vector<8x512xf32>
    %206 = vector.extract_strided_slice %205 {offsets = [0, 0], sizes = [8, 128], strides = [1, 1]} : vector<8x512xf32> to vector<8x128xf32>
    %207 = arith.negf %206 : vector<8x128xf32>
    %208 = math.exp %207 : vector<8x128xf32>
    %cst_99 = arith.constant 1.000000e+00 : f32
    %209 = vector.broadcast %cst_99 : f32 to vector<8x128xf32>
    %210 = arith.addf %209, %208 : vector<8x128xf32>
    %211 = arith.divf %209, %210 : vector<8x128xf32>
    %212 = vector.extract_strided_slice %205 {offsets = [0, 128], sizes = [8, 128], strides = [1, 1]} : vector<8x512xf32> to vector<8x128xf32>
    %213 = arith.negf %212 : vector<8x128xf32>
    %214 = math.exp %213 : vector<8x128xf32>
    %cst_100 = arith.constant 1.000000e+00 : f32
    %215 = vector.broadcast %cst_100 : f32 to vector<8x128xf32>
    %216 = arith.addf %215, %214 : vector<8x128xf32>
    %217 = arith.divf %215, %216 : vector<8x128xf32>
    %218 = vector.extract_strided_slice %205 {offsets = [0, 256], sizes = [8, 128], strides = [1, 1]} : vector<8x512xf32> to vector<8x128xf32>
    %219 = math.tanh %218 : vector<8x128xf32>
    %220 = vector.extract_strided_slice %205 {offsets = [0, 384], sizes = [8, 128], strides = [1, 1]} : vector<8x512xf32> to vector<8x128xf32>
    %221 = arith.negf %220 : vector<8x128xf32>
    %222 = math.exp %221 : vector<8x128xf32>
    %cst_101 = arith.constant 1.000000e+00 : f32
    %223 = vector.broadcast %cst_101 : f32 to vector<8x128xf32>
    %224 = arith.addf %223, %222 : vector<8x128xf32>
    %225 = arith.divf %223, %224 : vector<8x128xf32>
    %226 = arith.mulf %217, %199 : vector<8x128xf32>
    %227 = arith.mulf %211, %219 : vector<8x128xf32>
    %228 = arith.addf %226, %227 : vector<8x128xf32>
    %229 = math.tanh %228 : vector<8x128xf32>
    %230 = arith.mulf %225, %229 : vector<8x128xf32>
    %c0_102 = arith.constant 0 : index
    %c0_103 = arith.constant 0 : index
    %231 = vector.load %arg8[%c0_102, %c0_103] : memref<8x128xf32, #tpu.memory_space<vmem>>, vector<8x128xf32>
    tpu.vector_store %arg8[%c0_102, %c0_103], %230 {strides = array<i32>} : memref<8x128xf32, #tpu.memory_space<vmem>>, vector<8x128xf32>,
    %c0_104 = arith.constant 0 : index
    %c0_105 = arith.constant 0 : index
    %232 = vector.load %arg9[%c0_104, %c0_105] : memref<8x128xf32, #tpu.memory_space<vmem>>, vector<8x128xf32>
    tpu.vector_store %arg9[%c0_104, %c0_105], %228 {strides = array<i32>} : memref<8x128xf32, #tpu.memory_space<vmem>>, vector<8x128xf32>,
    %233 = arith.index_cast %c5_i32 : i32 to index
    %c0_106 = arith.constant 0 : index
    %c0_107 = arith.constant 0 : index
    %234 = vector.load %arg5[%233, %c0_106, %c0_107] : memref<8x8x128xf32, #tpu.memory_space<vmem>>, vector<1x8x128xf32>
    %235 = vector.shape_cast %234 : vector<1x8x128xf32> to vector<8x128xf32>
    %236 = vector.shape_cast %230 : vector<8x128xf32> to vector<1x8x128xf32>
    tpu.vector_store %arg5[%233, %c0_106, %c0_107], %236 {strides = array<i32>} : memref<8x8x128xf32, #tpu.memory_space<vmem>>, vector<1x8x128xf32>,
    %c6_i32 = arith.constant 6 : i32
    %c0_108 = arith.constant 0 : index
    %c0_109 = arith.constant 0 : index
    %237 = vector.load %arg8[%c0_108, %c0_109] : memref<8x128xf32, #tpu.memory_space<vmem>>, vector<8x128xf32>
    %c0_110 = arith.constant 0 : index
    %c0_111 = arith.constant 0 : index
    %238 = vector.load %arg9[%c0_110, %c0_111] : memref<8x128xf32, #tpu.memory_space<vmem>>, vector<8x128xf32>
    %239 = arith.index_cast %c6_i32 : i32 to index
    %c0_112 = arith.constant 0 : index
    %c0_113 = arith.constant 0 : index
    %240 = vector.load %arg1[%239, %c0_112, %c0_113] : memref<8x8x512xf32, #tpu.memory_space<vmem>>, vector<1x8x512xf32>
    %241 = vector.shape_cast %240 : vector<1x8x512xf32> to vector<8x512xf32>
    %c0_114 = arith.constant 0 : index
    %c0_115 = arith.constant 0 : index
    %242 = vector.load %arg10[%c0_114, %c0_115] : memref<128x512xf32, #tpu.memory_space<vmem>>, vector<128x512xf32>
    %cst_116 = arith.constant dense<0.000000e+00> : vector<8x512xf32>
    %243 = tpu.matmul %237, %242, %cst_116 {dimension_numbers = #tpu.dot_dimension_numbers<[1], [0], [0], [1], [0, 0, 1, 1], [], []>} : vector<8x128xf32>, vector<128x512xf32>, vector<8x512xf32> -> vector<8x512xf32>
    %244 = arith.addf %241, %243 : vector<8x512xf32>
    %245 = vector.extract_strided_slice %244 {offsets = [0, 0], sizes = [8, 128], strides = [1, 1]} : vector<8x512xf32> to vector<8x128xf32>
    %246 = arith.negf %245 : vector<8x128xf32>
    %247 = math.exp %246 : vector<8x128xf32>
    %cst_117 = arith.constant 1.000000e+00 : f32
    %248 = vector.broadcast %cst_117 : f32 to vector<8x128xf32>
    %249 = arith.addf %248, %247 : vector<8x128xf32>
    %250 = arith.divf %248, %249 : vector<8x128xf32>
    %251 = vector.extract_strided_slice %244 {offsets = [0, 128], sizes = [8, 128], strides = [1, 1]} : vector<8x512xf32> to vector<8x128xf32>
    %252 = arith.negf %251 : vector<8x128xf32>
    %253 = math.exp %252 : vector<8x128xf32>
    %cst_118 = arith.constant 1.000000e+00 : f32
    %254 = vector.broadcast %cst_118 : f32 to vector<8x128xf32>
    %255 = arith.addf %254, %253 : vector<8x128xf32>
    %256 = arith.divf %254, %255 : vector<8x128xf32>
    %257 = vector.extract_strided_slice %244 {offsets = [0, 256], sizes = [8, 128], strides = [1, 1]} : vector<8x512xf32> to vector<8x128xf32>
    %258 = math.tanh %257 : vector<8x128xf32>
    %259 = vector.extract_strided_slice %244 {offsets = [0, 384], sizes = [8, 128], strides = [1, 1]} : vector<8x512xf32> to vector<8x128xf32>
    %260 = arith.negf %259 : vector<8x128xf32>
    %261 = math.exp %260 : vector<8x128xf32>
    %cst_119 = arith.constant 1.000000e+00 : f32
    %262 = vector.broadcast %cst_119 : f32 to vector<8x128xf32>
    %263 = arith.addf %262, %261 : vector<8x128xf32>
    %264 = arith.divf %262, %263 : vector<8x128xf32>
    %265 = arith.mulf %256, %238 : vector<8x128xf32>
    %266 = arith.mulf %250, %258 : vector<8x128xf32>
    %267 = arith.addf %265, %266 : vector<8x128xf32>
    %268 = math.tanh %267 : vector<8x128xf32>
    %269 = arith.mulf %264, %268 : vector<8x128xf32>
    %c0_120 = arith.constant 0 : index
    %c0_121 = arith.constant 0 : index
    %270 = vector.load %arg8[%c0_120, %c0_121] : memref<8x128xf32, #tpu.memory_space<vmem>>, vector<8x128xf32>
    tpu.vector_store %arg8[%c0_120, %c0_121], %269 {strides = array<i32>} : memref<8x128xf32, #tpu.memory_space<vmem>>, vector<8x128xf32>,
    %c0_122 = arith.constant 0 : index
    %c0_123 = arith.constant 0 : index
    %271 = vector.load %arg9[%c0_122, %c0_123] : memref<8x128xf32, #tpu.memory_space<vmem>>, vector<8x128xf32>
    tpu.vector_store %arg9[%c0_122, %c0_123], %267 {strides = array<i32>} : memref<8x128xf32, #tpu.memory_space<vmem>>, vector<8x128xf32>,
    %272 = arith.index_cast %c6_i32 : i32 to index
    %c0_124 = arith.constant 0 : index
    %c0_125 = arith.constant 0 : index
    %273 = vector.load %arg5[%272, %c0_124, %c0_125] : memref<8x8x128xf32, #tpu.memory_space<vmem>>, vector<1x8x128xf32>
    %274 = vector.shape_cast %273 : vector<1x8x128xf32> to vector<8x128xf32>
    %275 = vector.shape_cast %269 : vector<8x128xf32> to vector<1x8x128xf32>
    tpu.vector_store %arg5[%272, %c0_124, %c0_125], %275 {strides = array<i32>} : memref<8x8x128xf32, #tpu.memory_space<vmem>>, vector<1x8x128xf32>,
    %c7_i32 = arith.constant 7 : i32
    %c0_126 = arith.constant 0 : index
    %c0_127 = arith.constant 0 : index
    %276 = vector.load %arg8[%c0_126, %c0_127] : memref<8x128xf32, #tpu.memory_space<vmem>>, vector<8x128xf32>
    %c0_128 = arith.constant 0 : index
    %c0_129 = arith.constant 0 : index
    %277 = vector.load %arg9[%c0_128, %c0_129] : memref<8x128xf32, #tpu.memory_space<vmem>>, vector<8x128xf32>
    %278 = arith.index_cast %c7_i32 : i32 to index
    %c0_130 = arith.constant 0 : index
    %c0_131 = arith.constant 0 : index
    %279 = vector.load %arg1[%278, %c0_130, %c0_131] : memref<8x8x512xf32, #tpu.memory_space<vmem>>, vector<1x8x512xf32>
    %280 = vector.shape_cast %279 : vector<1x8x512xf32> to vector<8x512xf32>
    %c0_132 = arith.constant 0 : index
    %c0_133 = arith.constant 0 : index
    %281 = vector.load %arg10[%c0_132, %c0_133] : memref<128x512xf32, #tpu.memory_space<vmem>>, vector<128x512xf32>
    %cst_134 = arith.constant dense<0.000000e+00> : vector<8x512xf32>
    %282 = tpu.matmul %276, %281, %cst_134 {dimension_numbers = #tpu.dot_dimension_numbers<[1], [0], [0], [1], [0, 0, 1, 1], [], []>} : vector<8x128xf32>, vector<128x512xf32>, vector<8x512xf32> -> vector<8x512xf32>
    %283 = arith.addf %280, %282 : vector<8x512xf32>
    %284 = vector.extract_strided_slice %283 {offsets = [0, 0], sizes = [8, 128], strides = [1, 1]} : vector<8x512xf32> to vector<8x128xf32>
    %285 = arith.negf %284 : vector<8x128xf32>
    %286 = math.exp %285 : vector<8x128xf32>
    %cst_135 = arith.constant 1.000000e+00 : f32
    %287 = vector.broadcast %cst_135 : f32 to vector<8x128xf32>
    %288 = arith.addf %287, %286 : vector<8x128xf32>
    %289 = arith.divf %287, %288 : vector<8x128xf32>
    %290 = vector.extract_strided_slice %283 {offsets = [0, 128], sizes = [8, 128], strides = [1, 1]} : vector<8x512xf32> to vector<8x128xf32>
    %291 = arith.negf %290 : vector<8x128xf32>
    %292 = math.exp %291 : vector<8x128xf32>
    %cst_136 = arith.constant 1.000000e+00 : f32
    %293 = vector.broadcast %cst_136 : f32 to vector<8x128xf32>
    %294 = arith.addf %293, %292 : vector<8x128xf32>
    %295 = arith.divf %293, %294 : vector<8x128xf32>
    %296 = vector.extract_strided_slice %283 {offsets = [0, 256], sizes = [8, 128], strides = [1, 1]} : vector<8x512xf32> to vector<8x128xf32>
    %297 = math.tanh %296 : vector<8x128xf32>
    %298 = vector.extract_strided_slice %283 {offsets = [0, 384], sizes = [8, 128], strides = [1, 1]} : vector<8x512xf32> to vector<8x128xf32>
    %299 = arith.negf %298 : vector<8x128xf32>
    %300 = math.exp %299 : vector<8x128xf32>
    %cst_137 = arith.constant 1.000000e+00 : f32
    %301 = vector.broadcast %cst_137 : f32 to vector<8x128xf32>
    %302 = arith.addf %301, %300 : vector<8x128xf32>
    %303 = arith.divf %301, %302 : vector<8x128xf32>
    %304 = arith.mulf %295, %277 : vector<8x128xf32>
    %305 = arith.mulf %289, %297 : vector<8x128xf32>
    %306 = arith.addf %304, %305 : vector<8x128xf32>
    %307 = math.tanh %306 : vector<8x128xf32>
    %308 = arith.mulf %303, %307 : vector<8x128xf32>
    %c0_138 = arith.constant 0 : index
    %c0_139 = arith.constant 0 : index
    %309 = vector.load %arg8[%c0_138, %c0_139] : memref<8x128xf32, #tpu.memory_space<vmem>>, vector<8x128xf32>
    tpu.vector_store %arg8[%c0_138, %c0_139], %308 {strides = array<i32>} : memref<8x128xf32, #tpu.memory_space<vmem>>, vector<8x128xf32>,
    %c0_140 = arith.constant 0 : index
    %c0_141 = arith.constant 0 : index
    %310 = vector.load %arg9[%c0_140, %c0_141] : memref<8x128xf32, #tpu.memory_space<vmem>>, vector<8x128xf32>
    tpu.vector_store %arg9[%c0_140, %c0_141], %306 {strides = array<i32>} : memref<8x128xf32, #tpu.memory_space<vmem>>, vector<8x128xf32>,
    %311 = arith.index_cast %c7_i32 : i32 to index
    %c0_142 = arith.constant 0 : index
    %c0_143 = arith.constant 0 : index
    %312 = vector.load %arg5[%311, %c0_142, %c0_143] : memref<8x8x128xf32, #tpu.memory_space<vmem>>, vector<1x8x128xf32>
    %313 = vector.shape_cast %312 : vector<1x8x128xf32> to vector<8x128xf32>
    %314 = vector.shape_cast %308 : vector<8x128xf32> to vector<1x8x128xf32>
    tpu.vector_store %arg5[%311, %c0_142, %c0_143], %314 {strides = array<i32>} : memref<8x8x128xf32, #tpu.memory_space<vmem>>, vector<1x8x128xf32>,
    %c8_i32 = arith.constant 8 : i32
    %c0_i32_144 = arith.constant 0 : i32
    %315 = arith.cmpi eq, %arg0, %c0_i32_144 : i32
    %316 = arith.extui %315 : i1 to i32
    %c0_i32_145 = arith.constant 0 : i32
    %317 = arith.cmpi ne, %316, %c0_i32_145 : i32
    scf.if %317 {
      %c0_146 = arith.constant 0 : index
      %c0_147 = arith.constant 0 : index
      %318 = vector.load %arg8[%c0_146, %c0_147] : memref<8x128xf32, #tpu.memory_space<vmem>>, vector<8x128xf32>
      %c0_148 = arith.constant 0 : index
      %c0_149 = arith.constant 0 : index
      %319 = vector.load %arg6[%c0_148, %c0_149] : memref<8x128xf32, #tpu.memory_space<vmem>>, vector<8x128xf32>
      tpu.vector_store %arg6[%c0_148, %c0_149], %318 {strides = array<i32>} : memref<8x128xf32, #tpu.memory_space<vmem>>, vector<8x128xf32>,
      %c0_150 = arith.constant 0 : index
      %c0_151 = arith.constant 0 : index
      %320 = vector.load %arg9[%c0_150, %c0_151] : memref<8x128xf32, #tpu.memory_space<vmem>>, vector<8x128xf32>
      %c0_152 = arith.constant 0 : index
      %c0_153 = arith.constant 0 : index
      %321 = vector.load %arg7[%c0_152, %c0_153] : memref<8x128xf32, #tpu.memory_space<vmem>>, vector<8x128xf32>
      tpu.vector_store %arg7[%c0_152, %c0_153], %320 {strides = array<i32>} : memref<8x128xf32, #tpu.memory_space<vmem>>, vector<8x128xf32>,
    } else {
    }
    return
  }
  func.func @transform_0(%arg0: i32) -> (i32, i32, i32) {
    %c0_i32 = arith.constant 0 : i32
    %c0_i32_0 = arith.constant 0 : i32
    %c0_i32_1 = arith.constant 0 : i32
    return %arg0, %c0_i32, %c0_i32_0 : i32, i32, i32
  }
  func.func @transform_1(%arg0: i32) -> (i32, i32) {
    %c0_i32 = arith.constant 0 : i32
    %c0_i32_0 = arith.constant 0 : i32
    %c0_i32_1 = arith.constant 0 : i32
    return %c0_i32, %c0_i32_0 : i32, i32
  }
  func.func @transform_2(%arg0: i32) -> (i32, i32) {
    %c0_i32 = arith.constant 0 : i32
    %c0_i32_0 = arith.constant 0 : i32
    %c0_i32_1 = arith.constant 0 : i32
    return %c0_i32, %c0_i32_0 : i32, i32
  }
  func.func @transform_4(%arg0: i32) -> (i32, i32, i32) {
    %c0_i32 = arith.constant 0 : i32
    %c0_i32_0 = arith.constant 0 : i32
    %c0_i32_1 = arith.constant 0 : i32
    return %arg0, %c0_i32, %c0_i32_0 : i32, i32, i32
  }
  func.func @transform_5(%arg0: i32) -> (i32, i32) {
    %c0_i32 = arith.constant 0 : i32
    %c0_i32_0 = arith.constant 0 : i32
    %c0_i32_1 = arith.constant 0 : i32
    return %c0_i32, %c0_i32_0 : i32, i32
  }
  func.func @transform_6(%arg0: i32) -> (i32, i32) {
    %c0_i32 = arith.constant 0 : i32
    %c0_i32_0 = arith.constant 0 : i32
    %c0_i32_1 = arith.constant 0 : i32
    return %c0_i32, %c0_i32_0 : i32, i32
  }
}

</mosaic_0001>

<llo_original>
// kernel: harry_potter_lm_forward.5
$region0: #{harry_potter_lm_forward.5}
  #allocation0 [shape = 'u32[]', space=smem, size = 0x4, offset = 0x4, fixed_abs, tag = 'smem constant byte address 0x4 - core index']
  #allocation1 [shape = 'u32[72,128]{1,0:T(1,128)}', space=vmem, size = 0x9000, scoped, tag = 'internal scratch']
  %s0 = inlined_call_operand.vmem [shape: f32[16,128], index: 0, kind: input, shape index: {}]
  %s1 = inlined_call_operand.vmem [shape: f32[128,128], index: 1, kind: input, shape index: {}]
  %s2 = inlined_call_operand.vmem [shape: f32[1,128], index: 2, kind: input, shape index: {}]
  %s3 = inlined_call_operand.vmem [shape: f32[16,128], index: 3, kind: output, shape index: {}]
  %s4 = sld [smem:[#allocation0]]
  $region22: #{harry_potter_lm_forward.5} parent=0
    _
  %s6 = ssub.s32 1, %s4
  %s7 = scalar_select 0, %s6, %s4
  // Predicated region
  $region2: #{harry_potter_lm_forward.5} parent=0 // pred_check
    _
  $region3: #{harry_potter_lm_forward.5} parent=0 // pred_check_branch
    %9 = sbr.rel (0) target = $region5
  $region4: #{harry_potter_lm_forward.5} parent=0 // pred_region
    _
  $region5: #{harry_potter_lm_forward.5} parent=0 // pred_fallthru
    _
  // Predicated region
  $region6: #{harry_potter_lm_forward.5} parent=0 // pred_check
    _
  $region7: #{harry_potter_lm_forward.5} parent=0 // pred_check_branch
    %11 = sbr.rel (0) target = $region9
  $region8: #{harry_potter_lm_forward.5} parent=0 // pred_region
    _
  $region9: #{harry_potter_lm_forward.5} parent=0 // pred_fallthru
    _
  // Predicated region
  $region10: #{harry_potter_lm_forward.5} parent=0 // pred_check
    _
  $region11: #{harry_potter_lm_forward.5} parent=0 // pred_check_branch
    %13 = sbr.rel (0) target = $region13
  $region12: #{harry_potter_lm_forward.5} parent=0 // pred_region
    _
  $region13: #{harry_potter_lm_forward.5} parent=0 // pred_fallthru
    _
  %v14 = vld [vmem:[%s0] sm:$0xff]
  %v15 = vld [vmem:[%s0 + $0x8] sm:$0xff]
  %v16 = vld [vmem:[%s1] sm:$0xff]
  %v17 = vld [vmem:[%s1 + $0x8] sm:$0xff]
  %v18 = vld [vmem:[%s1 + $0x10] sm:$0xff]
  %v19 = vld [vmem:[%s1 + $0x18] sm:$0xff]
  %v20 = vld [vmem:[%s1 + $0x20] sm:$0xff]
  %v21 = vld [vmem:[%s1 + $0x28] sm:$0xff]
  %v22 = vld [vmem:[%s1 + $0x30] sm:$0xff]
  %v23 = vld [vmem:[%s1 + $0x38] sm:$0xff]
  %v24 = vld [vmem:[%s1 + $0x40] sm:$0xff]
  %v25 = vld [vmem:[%s1 + $0x48] sm:$0xff]
  %v26 = vld [vmem:[%s1 + $0x50] sm:$0xff]
  %v27 = vld [vmem:[%s1 + $0x58] sm:$0xff]
  %v28 = vld [vmem:[%s1 + $0x60] sm:$0xff]
  %v29 = vld [vmem:[%s1 + $0x68] sm:$0xff]
  %v30 = vld [vmem:[%s1 + $0x70] sm:$0xff]
  %v31 = vld [vmem:[%s1 + $0x78] sm:$0xff]
  %v32 = vld [vmem:[%s2] sm:$0x1]
  %v34 = vperm.slane %v32, 0
  %36 = vmatpush.msra.mxu0 %v31
  %37 = vmatpush.msra.mxu0 %v30
  %38 = vmatpush.msra.mxu0 %v29
  %39 = vmatpush.msra.mxu0 %v28
  %40 = vmatpush.msra.mxu0 %v27
  %41 = vmatpush.msra.mxu0 %v26
  %42 = vmatpush.msra.mxu0 %v25
  %43 = vmatpush.msra.mxu0 %v24
  %44 = vmatpush.msra.mxu0 %v23
  %45 = vmatpush.msra.mxu0 %v22
  %46 = vmatpush.msra.mxu0 %v21
  %47 = vmatpush.msra.mxu0 %v20
  %48 = vmatpush.msra.mxu0 %v19
  %49 = vmatpush.msra.mxu0 %v18
  %50 = vmatpush.msra.mxu0 %v17
  %51 = vmatpush.msra.mxu0 %v16
  %52 = vmatmul.f32.gmra.mxu0 %v14
  %v53 = vpop.f32.mrf.mxu0
  %v54 = vadd.f32 %v34, %v53
  %55 = vmatmul.f32.gmra.mxu0 %v15
  %v56 = vpop.f32.mrf.mxu0
  %v57 = vadd.f32 %v34, %v56
  %58 = vdwg.mxu0
  %59 = vst [vmem:[%s3] sm:$0xff] %v54
  %60 = vst [vmem:[%s3 + $0x8] sm:$0xff] %v57
  // Predicated region
  $region14: #{harry_potter_lm_forward.5} parent=0 // pred_check
    _
  $region15: #{harry_potter_lm_forward.5} parent=0 // pred_check_branch
    %62 = sbr.rel (0) target = $region17
  $region16: #{harry_potter_lm_forward.5} parent=0 // pred_region
    _
  $region17: #{harry_potter_lm_forward.5} parent=0 // pred_fallthru
    _
  // Predicated region
  $region18: #{harry_potter_lm_forward.5} parent=0 // pred_check
    _
  $region19: #{harry_potter_lm_forward.5} parent=0 // pred_check_branch
    %64 = sbr.rel (0) target = $region21
  $region20: #{harry_potter_lm_forward.5} parent=0 // pred_region
    _
  $region21: #{harry_potter_lm_forward.5} parent=0 // pred_fallthru
    _

// kernel: harry_potter_lm_forward.3
$region0: #{harry_potter_lm_forward.3}
  #allocation0 [shape = 'u32[]', space=smem, size = 0x4, offset = 0x4, fixed_abs, tag = 'smem constant byte address 0x4 - core index']
  #allocation1 [shape = 'u32[72,128]{1,0:T(1,128)}', space=vmem, size = 0x9000, scoped, tag = 'internal scratch']
  %s0 = inlined_call_operand.vmem [shape: f32[64,128], index: 0, kind: input, shape index: {}]
  %s1 = inlined_call_operand.vmem [shape: f32[128,512], index: 1, kind: input, shape index: {}]
  %s2 = inlined_call_operand.vmem [shape: f32[1,512], index: 2, kind: input, shape index: {}]
  %s3 = inlined_call_operand.vmem [shape: f32[64,512], index: 3, kind: output, shape index: {}]
  %s4 = sld [smem:[#allocation0]]
  $region22: #{harry_potter_lm_forward.3} parent=0
    _
  %s6 = ssub.s32 1, %s4
  %s7 = scalar_select 0, %s6, %s4
  // Predicated region
  $region2: #{harry_potter_lm_forward.3} parent=0 // pred_check
    _
  $region3: #{harry_potter_lm_forward.3} parent=0 // pred_check_branch
    %9 = sbr.rel (0) target = $region5
  $region4: #{harry_potter_lm_forward.3} parent=0 // pred_region
    _
  $region5: #{harry_potter_lm_forward.3} parent=0 // pred_fallthru
    _
  // Predicated region
  $region6: #{harry_potter_lm_forward.3} parent=0 // pred_check
    _
  $region7: #{harry_potter_lm_forward.3} parent=0 // pred_check_branch
    %11 = sbr.rel (0) target = $region9
  $region8: #{harry_potter_lm_forward.3} parent=0 // pred_region
    _
  $region9: #{harry_potter_lm_forward.3} parent=0 // pred_fallthru
    _
  // Predicated region
  $region10: #{harry_potter_lm_forward.3} parent=0 // pred_check
    _
  $region11: #{harry_potter_lm_forward.3} parent=0 // pred_check_branch
    %13 = sbr.rel (0) target = $region13
  $region12: #{harry_potter_lm_forward.3} parent=0 // pred_region
    _
  $region13: #{harry_potter_lm_forward.3} parent=0 // pred_fallthru
    _
  %v14 = vld [vmem:[%s0] sm:$0xff]
  %v15 = vld [vmem:[%s0 + $0x8] sm:$0xff]
  %v16 = vld [vmem:[%s0 + $0x10] sm:$0xff]
  %v17 = vld [vmem:[%s0 + $0x18] sm:$0xff]
  %v18 = vld [vmem:[%s0 + $0x20] sm:$0xff]
  %v19 = vld [vmem:[%s0 + $0x28] sm:$0xff]
  %v20 = vld [vmem:[%s0 + $0x30] sm:$0xff]
  %v21 = vld [vmem:[%s0 + $0x38] sm:$0xff]
  %v22 = vld [vmem:[%s1] sm:$0xff]
  %v23 = vld [vmem:[%s1 + $0x8] sm:$0xff]
  %v24 = vld [vmem:[%s1 + $0x10] sm:$0xff]
  %v25 = vld [vmem:[%s1 + $0x18] sm:$0xff]
  %v26 = vld [vmem:[%s1 + $0x20] sm:$0xff]
  %v27 = vld [vmem:[%s1 + $0x28] sm:$0xff]
  %v28 = vld [vmem:[%s1 + $0x30] sm:$0xff]
  %v29 = vld [vmem:[%s1 + $0x38] sm:$0xff]
  %v30 = vld [vmem:[%s1 + $0x40] sm:$0xff]
  %v31 = vld [vmem:[%s1 + $0x48] sm:$0xff]
  %v32 = vld [vmem:[%s1 + $0x50] sm:$0xff]
  %v33 = vld [vmem:[%s1 + $0x58] sm:$0xff]
  %v34 = vld [vmem:[%s1 + $0x60] sm:$0xff]
  %v35 = vld [vmem:[%s1 + $0x68] sm:$0xff]
  %v36 = vld [vmem:[%s1 + $0x70] sm:$0xff]
  %v37 = vld [vmem:[%s1 + $0x78] sm:$0xff]
  %v38 = vld [vmem:[%s1 + $0x80] sm:$0xff]
  %v39 = vld [vmem:[%s1 + $0x88] sm:$0xff]
  %v40 = vld [vmem:[%s1 + $0x90] sm:$0xff]
  %v41 = vld [vmem:[%s1 + $0x98] sm:$0xff]
  %v42 = vld [vmem:[%s1 + $0xa0] sm:$0xff]
  %v43 = vld [vmem:[%s1 + $0xa8] sm:$0xff]
  %v44 = vld [vmem:[%s1 + $0xb0] sm:$0xff]
  %v45 = vld [vmem:[%s1 + $0xb8] sm:$0xff]
  %v46 = vld [vmem:[%s1 + $0xc0] sm:$0xff]
  %v47 = vld [vmem:[%s1 + $0xc8] sm:$0xff]
  %v48 = vld [vmem:[%s1 + $0xd0] sm:$0xff]
  %v49 = vld [vmem:[%s1 + $0xd8] sm:$0xff]
  %v50 = vld [vmem:[%s1 + $0xe0] sm:$0xff]
  %v51 = vld [vmem:[%s1 + $0xe8] sm:$0xff]
  %v52 = vld [vmem:[%s1 + $0xf0] sm:$0xff]
  %v53 = vld [vmem:[%s1 + $0xf8] sm:$0xff]
  %v54 = vld [vmem:[%s1 + $0x100] sm:$0xff]
  %v55 = vld [vmem:[%s1 + $0x108] sm:$0xff]
  %v56 = vld [vmem:[%s1 + $0x110] sm:$0xff]
  %v57 = vld [vmem:[%s1 + $0x118] sm:$0xff]
  %v58 = vld [vmem:[%s1 + $0x120] sm:$0xff]
  %v59 = vld [vmem:[%s1 + $0x128] sm:$0xff]
  %v60 = vld [vmem:[%s1 + $0x130] sm:$0xff]
  %v61 = vld [vmem:[%s1 + $0x138] sm:$0xff]
  %v62 = vld [vmem:[%s1 + $0x140] sm:$0xff]
  %v63 = vld [vmem:[%s1 + $0x148] sm:$0xff]
  %v64 = vld [vmem:[%s1 + $0x150] sm:$0xff]
  %v65 = vld [vmem:[%s1 + $0x158] sm:$0xff]
  %v66 = vld [vmem:[%s1 + $0x160] sm:$0xff]
  %v67 = vld [vmem:[%s1 + $0x168] sm:$0xff]
  %v68 = vld [vmem:[%s1 + $0x170] sm:$0xff]
  %v69 = vld [vmem:[%s1 + $0x178] sm:$0xff]
  %v70 = vld [vmem:[%s1 + $0x180] sm:$0xff]
  %v71 = vld [vmem:[%s1 + $0x188] sm:$0xff]
  %v72 = vld [vmem:[%s1 + $0x190] sm:$0xff]
  %v73 = vld [vmem:[%s1 + $0x198] sm:$0xff]
  %v74 = vld [vmem:[%s1 + $0x1a0] sm:$0xff]
  %v75 = vld [vmem:[%s1 + $0x1a8] sm:$0xff]
  %v76 = vld [vmem:[%s1 + $0x1b0] sm:$0xff]
  %v77 = vld [vmem:[%s1 + $0x1b8] sm:$0xff]
  %v78 = vld [vmem:[%s1 + $0x1c0] sm:$0xff]
  %v79 = vld [vmem:[%s1 + $0x1c8] sm:$0xff]
  %v80 = vld [vmem:[%s1 + $0x1d0] sm:$0xff]
  %v81 = vld [vmem:[%s1 + $0x1d8] sm:$0xff]
  %v82 = vld [vmem:[%s1 + $0x1e0] sm:$0xff]
  %v83 = vld [vmem:[%s1 + $0x1e8] sm:$0xff]
  %v84 = vld [vmem:[%s1 + $0x1f0] sm:$0xff]
  %v85 = vld [vmem:[%s1 + $0x1f8] sm:$0xff]
  %v86 = vld [vmem:[%s2] sm:$0xf]
  %v88 = vperm.slane %v86, 0
  %v89 = vperm.slane %v86, 1
  %v90 = vperm.slane %v86, 2
  %v91 = vperm.slane %v86, 3
  %96 = vmatpush.msra.mxu0 %v82
  %97 = vmatpush.msra.mxu0 %v78
  %98 = vmatpush.msra.mxu0 %v74
  %99 = vmatpush.msra.mxu0 %v70
  %100 = vmatpush.msra.mxu0 %v66
  %101 = vmatpush.msra.mxu0 %v62
  %102 = vmatpush.msra.mxu0 %v58
  %103 = vmatpush.msra.mxu0 %v54
  %104 = vmatpush.msra.mxu0 %v50
  %105 = vmatpush.msra.mxu0 %v46
  %106 = vmatpush.msra.mxu0 %v42
  %107 = vmatpush.msra.mxu0 %v38
  %108 = vmatpush.msra.mxu0 %v34
  %109 = vmatpush.msra.mxu0 %v30
  %110 = vmatpush.msra.mxu0 %v26
  %111 = vmatpush.msra.mxu0 %v22
  %112 = vmatmul.f32.gmra.mxu0 %v14
  %v113 = vpop.f32.mrf.mxu0
  %v114 = vadd.f32 %v88, %v113
  %115 = vmatmul.f32.gmra.mxu0 %v15
  %v116 = vpop.f32.mrf.mxu0
  %v117 = vadd.f32 %v88, %v116
  %118 = vmatmul.f32.gmra.mxu0 %v16
  %v119 = vpop.f32.mrf.mxu0
  %v120 = vadd.f32 %v88, %v119
  %121 = vmatmul.f32.gmra.mxu0 %v17
  %v122 = vpop.f32.mrf.mxu0
  %v123 = vadd.f32 %v88, %v122
  %124 = vmatmul.f32.gmra.mxu0 %v18
  %v125 = vpop.f32.mrf.mxu0
  %v126 = vadd.f32 %v88, %v125
  %127 = vmatmul.f32.gmra.mxu0 %v19
  %v128 = vpop.f32.mrf.mxu0
  %v129 = vadd.f32 %v88, %v128
  %130 = vmatmul.f32.gmra.mxu0 %v20
  %v131 = vpop.f32.mrf.mxu0
  %v132 = vadd.f32 %v88, %v131
  %133 = vmatmul.f32.gmra.mxu0 %v21
  %v134 = vpop.f32.mrf.mxu0
  %v135 = vadd.f32 %v88, %v134
  %136 = vdwg.mxu0
  %137 = vmatpush.msra.mxu0 %v83
  %138 = vmatpush.msra.mxu0 %v79
  %139 = vmatpush.msra.mxu0 %v75
  %140 = vmatpush.msra.mxu0 %v71
  %141 = vmatpush.msra.mxu0 %v67
  %142 = vmatpush.msra.mxu0 %v63
  %143 = vmatpush.msra.mxu0 %v59
  %144 = vmatpush.msra.mxu0 %v55
  %145 = vmatpush.msra.mxu0 %v51
  %146 = vmatpush.msra.mxu0 %v47
  %147 = vmatpush.msra.mxu0 %v43
  %148 = vmatpush.msra.mxu0 %v39
  %149 = vmatpush.msra.mxu0 %v35
  %150 = vmatpush.msra.mxu0 %v31
  %151 = vmatpush.msra.mxu0 %v27
  %152 = vmatpush.msra.mxu0 %v23
  %153 = vmatmul.f32.gmra.mxu0 %v14
  %v154 = vpop.f32.mrf.mxu0
  %v155 = vadd.f32 %v89, %v154
  %156 = vmatmul.f32.gmra.mxu0 %v15
  %v157 = vpop.f32.mrf.mxu0
  %v158 = vadd.f32 %v89, %v157
  %159 = vmatmul.f32.gmra.mxu0 %v16
  %v160 = vpop.f32.mrf.mxu0
  %v161 = vadd.f32 %v89, %v160
  %162 = vmatmul.f32.gmra.mxu0 %v17
  %v163 = vpop.f32.mrf.mxu0
  %v164 = vadd.f32 %v89, %v163
  %165 = vmatmul.f32.gmra.mxu0 %v18
  %v166 = vpop.f32.mrf.mxu0
  %v167 = vadd.f32 %v89, %v166
  %168 = vmatmul.f32.gmra.mxu0 %v19
  %v169 = vpop.f32.mrf.mxu0
  %v170 = vadd.f32 %v89, %v169
  %171 = vmatmul.f32.gmra.mxu0 %v20
  %v172 = vpop.f32.mrf.mxu0
  %v173 = vadd.f32 %v89, %v172
  %174 = vmatmul.f32.gmra.mxu0 %v21
  %v175 = vpop.f32.mrf.mxu0
  %v176 = vadd.f32 %v89, %v175
  %177 = vdwg.mxu0
  %178 = vmatpush.msra.mxu0 %v84
  %179 = vmatpush.msra.mxu0 %v80
  %180 = vmatpush.msra.mxu0 %v76
  %181 = vmatpush.msra.mxu0 %v72
  %182 = vmatpush.msra.mxu0 %v68
  %183 = vmatpush.msra.mxu0 %v64
  %184 = vmatpush.msra.mxu0 %v60
  %185 = vmatpush.msra.mxu0 %v56
  %186 = vmatpush.msra.mxu0 %v52
  %187 = vmatpush.msra.mxu0 %v48
  %188 = vmatpush.msra.mxu0 %v44
  %189 = vmatpush.msra.mxu0 %v40
  %190 = vmatpush.msra.mxu0 %v36
  %191 = vmatpush.msra.mxu0 %v32
  %192 = vmatpush.msra.mxu0 %v28
  %193 = vmatpush.msra.mxu0 %v24
  %194 = vmatmul.f32.gmra.mxu0 %v14
  %v195 = vpop.f32.mrf.mxu0
  %v196 = vadd.f32 %v90, %v195
  %197 = vmatmul.f32.gmra.mxu0 %v15
  %v198 = vpop.f32.mrf.mxu0
  %v199 = vadd.f32 %v90, %v198
  %200 = vmatmul.f32.gmra.mxu0 %v16
  %v201 = vpop.f32.mrf.mxu0
  %v202 = vadd.f32 %v90, %v201
  %203 = vmatmul.f32.gmra.mxu0 %v17
  %v204 = vpop.f32.mrf.mxu0
  %v205 = vadd.f32 %v90, %v204
  %206 = vmatmul.f32.gmra.mxu0 %v18
  %v207 = vpop.f32.mrf.mxu0
  %v208 = vadd.f32 %v90, %v207
  %209 = vmatmul.f32.gmra.mxu0 %v19
  %v210 = vpop.f32.mrf.mxu0
  %v211 = vadd.f32 %v90, %v210
  %212 = vmatmul.f32.gmra.mxu0 %v20
  %v213 = vpop.f32.mrf.mxu0
  %v214 = vadd.f32 %v90, %v213
  %215 = vmatmul.f32.gmra.mxu0 %v21
  %v216 = vpop.f32.mrf.mxu0
  %v217 = vadd.f32 %v90, %v216
  %218 = vdwg.mxu0
  %219 = vmatpush.msra.mxu0 %v85
  %220 = vmatpush.msra.mxu0 %v81
  %221 = vmatpush.msra.mxu0 %v77
  %222 = vmatpush.msra.mxu0 %v73
  %223 = vmatpush.msra.mxu0 %v69
  %224 = vmatpush.msra.mxu0 %v65
  %225 = vmatpush.msra.mxu0 %v61
  %226 = vmatpush.msra.mxu0 %v57
  %227 = vmatpush.msra.mxu0 %v53
  %228 = vmatpush.msra.mxu0 %v49
  %229 = vmatpush.msra.mxu0 %v45
  %230 = vmatpush.msra.mxu0 %v41
  %231 = vmatpush.msra.mxu0 %v37
  %232 = vmatpush.msra.mxu0 %v33
  %233 = vmatpush.msra.mxu0 %v29
  %234 = vmatpush.msra.mxu0 %v25
  %235 = vmatmul.f32.gmra.mxu0 %v14
  %v236 = vpop.f32.mrf.mxu0
  %v237 = vadd.f32 %v91, %v236
  %238 = vmatmul.f32.gmra.mxu0 %v15
  %v239 = vpop.f32.mrf.mxu0
  %v240 = vadd.f32 %v91, %v239
  %241 = vmatmul.f32.gmra.mxu0 %v16
  %v242 = vpop.f32.mrf.mxu0
  %v243 = vadd.f32 %v91, %v242
  %244 = vmatmul.f32.gmra.mxu0 %v17
  %v245 = vpop.f32.mrf.mxu0
  %v246 = vadd.f32 %v91, %v245
  %247 = vmatmul.f32.gmra.mxu0 %v18
  %v248 = vpop.f32.mrf.mxu0
  %v249 = vadd.f32 %v91, %v248
  %250 = vmatmul.f32.gmra.mxu0 %v19
  %v251 = vpop.f32.mrf.mxu0
  %v252 = vadd.f32 %v91, %v251
  %253 = vmatmul.f32.gmra.mxu0 %v20
  %v254 = vpop.f32.mrf.mxu0
  %v255 = vadd.f32 %v91, %v254
  %256 = vmatmul.f32.gmra.mxu0 %v21
  %v257 = vpop.f32.mrf.mxu0
  %v258 = vadd.f32 %v91, %v257
  %259 = vdwg.mxu0
  %260 = vst [vmem:[%s3] sm:$0xff] %v114
  %261 = vst [vmem:[%s3 + $0x8] sm:$0xff] %v155
  %262 = vst [vmem:[%s3 + $0x10] sm:$0xff] %v196
  %263 = vst [vmem:[%s3 + $0x18] sm:$0xff] %v237
  %264 = vst [vmem:[%s3 + $0x20] sm:$0xff] %v117
  %265 = vst [vmem:[%s3 + $0x28] sm:$0xff] %v158
  %266 = vst [vmem:[%s3 + $0x30] sm:$0xff] %v199
  %267 = vst [vmem:[%s3 + $0x38] sm:$0xff] %v240
  %268 = vst [vmem:[%s3 + $0x40] sm:$0xff] %v120
  %269 = vst [vmem:[%s3 + $0x48] sm:$0xff] %v161
  %270 = vst [vmem:[%s3 + $0x50] sm:$0xff] %v202
  %271 = vst [vmem:[%s3 + $0x58] sm:$0xff] %v243
  %272 = vst [vmem:[%s3 + $0x60] sm:$0xff] %v123
  %273 = vst [vmem:[%s3 + $0x68] sm:$0xff] %v164
  %274 = vst [vmem:[%s3 + $0x70] sm:$0xff] %v205
  %275 = vst [vmem:[%s3 + $0x78] sm:$0xff] %v246
  %276 = vst [vmem:[%s3 + $0x80] sm:$0xff] %v126
  %277 = vst [vmem:[%s3 + $0x88] sm:$0xff] %v167
  %278 = vst [vmem:[%s3 + $0x90] sm:$0xff] %v208
  %279 = vst [vmem:[%s3 + $0x98] sm:$0xff] %v249
  %280 = vst [vmem:[%s3 + $0xa0] sm:$0xff] %v129
  %281 = vst [vmem:[%s3 + $0xa8] sm:$0xff] %v170
  %282 = vst [vmem:[%s3 + $0xb0] sm:$0xff] %v211
  %283 = vst [vmem:[%s3 + $0xb8] sm:$0xff] %v252
  %284 = vst [vmem:[%s3 + $0xc0] sm:$0xff] %v132
  %285 = vst [vmem:[%s3 + $0xc8] sm:$0xff] %v173
  %286 = vst [vmem:[%s3 + $0xd0] sm:$0xff] %v214
  %287 = vst [vmem:[%s3 + $0xd8] sm:$0xff] %v255
  %288 = vst [vmem:[%s3 + $0xe0] sm:$0xff] %v135
  %289 = vst [vmem:[%s3 + $0xe8] sm:$0xff] %v176
  %290 = vst [vmem:[%s3 + $0xf0] sm:$0xff] %v217
  %291 = vst [vmem:[%s3 + $0xf8] sm:$0xff] %v258
  // Predicated region
  $region14: #{harry_potter_lm_forward.3} parent=0 // pred_check
    _
  $region15: #{harry_potter_lm_forward.3} parent=0 // pred_check_branch
    %293 = sbr.rel (0) target = $region17
  $region16: #{harry_potter_lm_forward.3} parent=0 // pred_region
    _
  $region17: #{harry_potter_lm_forward.3} parent=0 // pred_fallthru
    _
  // Predicated region
  $region18: #{harry_potter_lm_forward.3} parent=0 // pred_check
    _
  $region19: #{harry_potter_lm_forward.3} parent=0 // pred_check_branch
    %295 = sbr.rel (0) target = $region21
  $region20: #{harry_potter_lm_forward.3} parent=0 // pred_region
    _
  $region21: #{harry_potter_lm_forward.3} parent=0 // pred_fallthru
    _

// kernel: harry_potter_lm_forward.4
$region0: #{harry_potter_lm_forward.4}
  #allocation0 [shape = 'u32[]', space=smem, size = 0x4, offset = 0x4, fixed_abs, tag = 'smem constant byte address 0x4 - core index']
  #allocation1 [shape = 'u32[72,128]{1,0:T(1,128)}', space=vmem, size = 0x9000, scoped, tag = 'internal scratch']
  #allocation2 [shape = 'f32[8,128]{1,0:T(8,128)}', space=vmem, size = 0x1000, scoped, tag = 'scratch operand']
  #allocation3 [shape = 'f32[8,128]{1,0:T(8,128)}', space=vmem, size = 0x1000, scoped, tag = 'scratch operand']
  #allocation4 [shape = 'f32[128,512]{1,0:T(8,128)}', space=vmem, size = 0x40000, scoped, tag = 'scratch operand']
  #allocation5 [shape = 's32[1]{0}', space=sflag, size = 0x4, scoped, tag = 'scratch operand']
  #allocation6 [shape = 's32[]', space=sflag, size = 0x4, offset = 0, fixed_abs, tag = 'sflag constant byte address 0x0 - dummy sync flag']
  %s0 = inlined_call_operand.vmem [shape: f32[8,8,512], index: 0, kind: input, shape index: {}]
  %s1 = inlined_call_operand.vmem [shape: f32[8,128], index: 1, kind: input, shape index: {}, may-alias: {1,2}]
  %s2 = inlined_call_operand.vmem [shape: f32[8,128], index: 2, kind: input, shape index: {}, may-alias: {1,2}]
  %s3 = inlined_call_operand.vmem [shape: f32[128,512], index: 3, kind: input, shape index: {}]
  %s4 = inlined_call_operand.vmem [shape: f32[8,8,128], index: 4, kind: output, shape index: {0}]
  %s5 = inlined_call_operand.vmem [shape: f32[8,128], index: 5, kind: output, shape index: {1}]
  %s6 = inlined_call_operand.vmem [shape: f32[8,128], index: 6, kind: output, shape index: {2}]
  %7 = xla_tuple %s4, %s5, %s6
  %s8 = sld [smem:[#allocation0]]
  $region65: #{harry_potter_lm_forward.4} parent=0
    _
  %s10 = ssub.s32 1, %s8
  %s11 = scalar_select 0, %s10, %s8
  // Predicated region
  $region2: #{harry_potter_lm_forward.4} parent=0 // pred_check
    _
  $region3: #{harry_potter_lm_forward.4} parent=0 // pred_check_branch
    %13 = sbr.rel (0) target = $region5
  $region4: #{harry_potter_lm_forward.4} parent=0 // pred_region
    _
  $region5: #{harry_potter_lm_forward.4} parent=0 // pred_fallthru
    _
  // Predicated region
  $region6: #{harry_potter_lm_forward.4} parent=0 // pred_check
    _
  $region7: #{harry_potter_lm_forward.4} parent=0 // pred_check_branch
    %15 = sbr.rel (0) target = $region9
  $region8: #{harry_potter_lm_forward.4} parent=0 // pred_region
    _
  $region9: #{harry_potter_lm_forward.4} parent=0 // pred_fallthru
    _
  // Predicated region
  $region10: #{harry_potter_lm_forward.4} parent=0 // pred_check
    _
  $region11: #{harry_potter_lm_forward.4} parent=0 // pred_check_branch
    %17 = sbr.rel (0) target = $region13
  $region12: #{harry_potter_lm_forward.4} parent=0 // pred_region
    _
  $region13: #{harry_potter_lm_forward.4} parent=0 // pred_fallthru
    _
  %p18 = scmp.eq.s32.totalorder 0, 0
  // Predicated region
  $region14: #{harry_potter_lm_forward.4} parent=0 // pred_check
    %p19 = pneg %p18
  $region15: #{harry_potter_lm_forward.4} parent=0 // pred_check_branch
    %21 = sbr.rel (%p19) target = $region17
  $region16: #{harry_potter_lm_forward.4} parent=0 // pred_region
    // Predicated region
    $region18: #{harry_potter_lm_forward.4} parent=16 // pred_check
      _
    $region19: #{harry_potter_lm_forward.4} parent=16 // pred_check_branch
      %23 = sbr.rel (0) target = $region21
    $region20: #{harry_potter_lm_forward.4} parent=16 // pred_region
      loop: start=0, step=1, limit=1
      $region22: #{harry_potter_lm_forward.4} parent=20 // loop_pre_header
        _
      $region23: #{harry_potter_lm_forward.4} parent=20 // loop_header
        %s25 = sphi 0, %s29
        %p26 = scmp.ge.s32.totalorder %s25, 1
        %s30 = sphi %s3, %s3
        %s31 = sphi [#allocation4], [#allocation4]
      $region24: #{harry_potter_lm_forward.4} parent=20 // loop_header_branch
        %28 = sbr.rel (%p26) target = $region28
      $region25: #{harry_potter_lm_forward.4} parent=20 // loop_body
        %v32 = vld [vmem:[%s30] sm:$0xff]
        %33 = vst [vmem:[%s31] sm:$0xff] %v32
        %v34 = vld [vmem:[%s30 + $0x8] sm:$0xff]
        %35 = vst [vmem:[%s31 + $0x8] sm:$0xff] %v34
        %v36 = vld [vmem:[%s30 + $0x10] sm:$0xff]
        %37 = vst [vmem:[%s31 + $0x10] sm:$0xff] %v36
        %v38 = vld [vmem:[%s30 + $0x18] sm:$0xff]
        %39 = vst [vmem:[%s31 + $0x18] sm:$0xff] %v38
        %v40 = vld [vmem:[%s30 + $0x20] sm:$0xff]
        %41 = vst [vmem:[%s31 + $0x20] sm:$0xff] %v40
        %v42 = vld [vmem:[%s30 + $0x28] sm:$0xff]
        %43 = vst [vmem:[%s31 + $0x28] sm:$0xff] %v42
        %v44 = vld [vmem:[%s30 + $0x30] sm:$0xff]
        %45 = vst [vmem:[%s31 + $0x30] sm:$0xff] %v44
        %v46 = vld [vmem:[%s30 + $0x38] sm:$0xff]
        %47 = vst [vmem:[%s31 + $0x38] sm:$0xff] %v46
        %v48 = vld [vmem:[%s30 + $0x40] sm:$0xff]
        %49 = vst [vmem:[%s31 + $0x40] sm:$0xff] %v48
        %v50 = vld [vmem:[%s30 + $0x48] sm:$0xff]
        %51 = vst [vmem:[%s31 + $0x48] sm:$0xff] %v50
        %v52 = vld [vmem:[%s30 + $0x50] sm:$0xff]
        %53 = vst [vmem:[%s31 + $0x50] sm:$0xff] %v52
        %v54 = vld [vmem:[%s30 + $0x58] sm:$0xff]
        %55 = vst [vmem:[%s31 + $0x58] sm:$0xff] %v54
        %v56 = vld [vmem:[%s30 + $0x60] sm:$0xff]
        %57 = vst [vmem:[%s31 + $0x60] sm:$0xff] %v56
        %v58 = vld [vmem:[%s30 + $0x68] sm:$0xff]
        %59 = vst [vmem:[%s31 + $0x68] sm:$0xff] %v58
        %v60 = vld [vmem:[%s30 + $0x70] sm:$0xff]
        %61 = vst [vmem:[%s31 + $0x70] sm:$0xff] %v60
        %v62 = vld [vmem:[%s30 + $0x78] sm:$0xff]
        %63 = vst [vmem:[%s31 + $0x78] sm:$0xff] %v62
        %v64 = vld [vmem:[%s30 + $0x80] sm:$0xff]
        %65 = vst [vmem:[%s31 + $0x80] sm:$0xff] %v64
        %v66 = vld [vmem:[%s30 + $0x88] sm:$0xff]
        %67 = vst [vmem:[%s31 + $0x88] sm:$0xff] %v66
        %v68 = vld [vmem:[%s30 + $0x90] sm:$0xff]
        %69 = vst [vmem:[%s31 + $0x90] sm:$0xff] %v68
        %v70 = vld [vmem:[%s30 + $0x98] sm:$0xff]
        %71 = vst [vmem:[%s31 + $0x98] sm:$0xff] %v70
        %v72 = vld [vmem:[%s30 + $0xa0] sm:$0xff]
        %73 = vst [vmem:[%s31 + $0xa0] sm:$0xff] %v72
        %v74 = vld [vmem:[%s30 + $0xa8] sm:$0xff]
        %75 = vst [vmem:[%s31 + $0xa8] sm:$0xff] %v74
        %v76 = vld [vmem:[%s30 + $0xb0] sm:$0xff]
        %77 = vst [vmem:[%s31 + $0xb0] sm:$0xff] %v76
        %v78 = vld [vmem:[%s30 + $0xb8] sm:$0xff]
        %79 = vst [vmem:[%s31 + $0xb8] sm:$0xff] %v78
        %v80 = vld [vmem:[%s30 + $0xc0] sm:$0xff]
        %81 = vst [vmem:[%s31 + $0xc0] sm:$0xff] %v80
        %v82 = vld [vmem:[%s30 + $0xc8] sm:$0xff]
        %83 = vst [vmem:[%s31 + $0xc8] sm:$0xff] %v82
        %v84 = vld [vmem:[%s30 + $0xd0] sm:$0xff]
        %85 = vst [vmem:[%s31 + $0xd0] sm:$0xff] %v84
        %v86 = vld [vmem:[%s30 + $0xd8] sm:$0xff]
        %87 = vst [vmem:[%s31 + $0xd8] sm:$0xff] %v86
        %v88 = vld [vmem:[%s30 + $0xe0] sm:$0xff]
        %89 = vst [vmem:[%s31 + $0xe0] sm:$0xff] %v88
        %v90 = vld [vmem:[%s30 + $0xe8] sm:$0xff]
        %91 = vst [vmem:[%s31 + $0xe8] sm:$0xff] %v90
        %v92 = vld [vmem:[%s30 + $0xf0] sm:$0xff]
        %93 = vst [vmem:[%s31 + $0xf0] sm:$0xff] %v92
        %v94 = vld [vmem:[%s30 + $0xf8] sm:$0xff]
        %95 = vst [vmem:[%s31 + $0xf8] sm:$0xff] %v94
        %v96 = vld [vmem:[%s30 + $0x100] sm:$0xff]
        %97 = vst [vmem:[%s31 + $0x100] sm:$0xff] %v96
        %v98 = vld [vmem:[%s30 + $0x108] sm:$0xff]
        %99 = vst [vmem:[%s31 + $0x108] sm:$0xff] %v98
        %v100 = vld [vmem:[%s30 + $0x110] sm:$0xff]
        %101 = vst [vmem:[%s31 + $0x110] sm:$0xff] %v100
        %v102 = vld [vmem:[%s30 + $0x118] sm:$0xff]
        %103 = vst [vmem:[%s31 + $0x118] sm:$0xff] %v102
        %v104 = vld [vmem:[%s30 + $0x120] sm:$0xff]
        %105 = vst [vmem:[%s31 + $0x120] sm:$0xff] %v104
        %v106 = vld [vmem:[%s30 + $0x128] sm:$0xff]
        %107 = vst [vmem:[%s31 + $0x128] sm:$0xff] %v106
        %v108 = vld [vmem:[%s30 + $0x130] sm:$0xff]
        %109 = vst [vmem:[%s31 + $0x130] sm:$0xff] %v108
        %v110 = vld [vmem:[%s30 + $0x138] sm:$0xff]
        %111 = vst [vmem:[%s31 + $0x138] sm:$0xff] %v110
        %v112 = vld [vmem:[%s30 + $0x140] sm:$0xff]
        %113 = vst [vmem:[%s31 + $0x140] sm:$0xff] %v112
        %v114 = vld [vmem:[%s30 + $0x148] sm:$0xff]
        %115 = vst [vmem:[%s31 + $0x148] sm:$0xff] %v114
        %v116 = vld [vmem:[%s30 + $0x150] sm:$0xff]
        %117 = vst [vmem:[%s31 + $0x150] sm:$0xff] %v116
        %v118 = vld [vmem:[%s30 + $0x158] sm:$0xff]
        %119 = vst [vmem:[%s31 + $0x158] sm:$0xff] %v118
        %v120 = vld [vmem:[%s30 + $0x160] sm:$0xff]
        %121 = vst [vmem:[%s31 + $0x160] sm:$0xff] %v120
        %v122 = vld [vmem:[%s30 + $0x168] sm:$0xff]
        %123 = vst [vmem:[%s31 + $0x168] sm:$0xff] %v122
        %v124 = vld [vmem:[%s30 + $0x170] sm:$0xff]
        %125 = vst [vmem:[%s31 + $0x170] sm:$0xff] %v124
        %v126 = vld [vmem:[%s30 + $0x178] sm:$0xff]
        %127 = vst [vmem:[%s31 + $0x178] sm:$0xff] %v126
        %v128 = vld [vmem:[%s30 + $0x180] sm:$0xff]
        %129 = vst [vmem:[%s31 + $0x180] sm:$0xff] %v128
        %v130 = vld [vmem:[%s30 + $0x188] sm:$0xff]
        %131 = vst [vmem:[%s31 + $0x188] sm:$0xff] %v130
        %v132 = vld [vmem:[%s30 + $0x190] sm:$0xff]
        %133 = vst [vmem:[%s31 + $0x190] sm:$0xff] %v132
        %v134 = vld [vmem:[%s30 + $0x198] sm:$0xff]
        %135 = vst [vmem:[%s31 + $0x198] sm:$0xff] %v134
        %v136 = vld [vmem:[%s30 + $0x1a0] sm:$0xff]
        %137 = vst [vmem:[%s31 + $0x1a0] sm:$0xff] %v136
        %v138 = vld [vmem:[%s30 + $0x1a8] sm:$0xff]
        %139 = vst [vmem:[%s31 + $0x1a8] sm:$0xff] %v138
        %v140 = vld [vmem:[%s30 + $0x1b0] sm:$0xff]
        %141 = vst [vmem:[%s31 + $0x1b0] sm:$0xff] %v140
        %v142 = vld [vmem:[%s30 + $0x1b8] sm:$0xff]
        %143 = vst [vmem:[%s31 + $0x1b8] sm:$0xff] %v142
        %v144 = vld [vmem:[%s30 + $0x1c0] sm:$0xff]
        %145 = vst [vmem:[%s31 + $0x1c0] sm:$0xff] %v144
        %v146 = vld [vmem:[%s30 + $0x1c8] sm:$0xff]
        %147 = vst [vmem:[%s31 + $0x1c8] sm:$0xff] %v146
        %v148 = vld [vmem:[%s30 + $0x1d0] sm:$0xff]
        %149 = vst [vmem:[%s31 + $0x1d0] sm:$0xff] %v148
        %v150 = vld [vmem:[%s30 + $0x1d8] sm:$0xff]
        %151 = vst [vmem:[%s31 + $0x1d8] sm:$0xff] %v150
        %v152 = vld [vmem:[%s30 + $0x1e0] sm:$0xff]
        %153 = vst [vmem:[%s31 + $0x1e0] sm:$0xff] %v152
        %v154 = vld [vmem:[%s30 + $0x1e8] sm:$0xff]
        %155 = vst [vmem:[%s31 + $0x1e8] sm:$0xff] %v154
        %v156 = vld [vmem:[%s30 + $0x1f0] sm:$0xff]
        %157 = vst [vmem:[%s31 + $0x1f0] sm:$0xff] %v156
        %v158 = vld [vmem:[%s30 + $0x1f8] sm:$0xff]
        %159 = vst [vmem:[%s31 + $0x1f8] sm:$0xff] %v158
      $region26: #{harry_potter_lm_forward.4} parent=20 // loop_footer
        %s29 = sadd.s32 1, %s25
      $region27: #{harry_potter_lm_forward.4} parent=20 // loop_footer_branch
        %24 = sbr.rel target = $region23
      $region28: #{harry_potter_lm_forward.4} parent=20 // loop_exit
        _
    $region21: #{harry_potter_lm_forward.4} parent=16 // pred_fallthru
      _
    // Predicated region
    $region29: #{harry_potter_lm_forward.4} parent=16 // pred_check
      _
    $region30: #{harry_potter_lm_forward.4} parent=16 // pred_check_branch
      %161 = sbr.rel target = $region32
    $region31: #{harry_potter_lm_forward.4} parent=16 // pred_region
      _
    $region32: #{harry_potter_lm_forward.4} parent=16 // pred_fallthru
      _
    // Predicated region
    $region33: #{harry_potter_lm_forward.4} parent=16 // pred_check
      _
    $region34: #{harry_potter_lm_forward.4} parent=16 // pred_check_branch
      %164 = sbr.rel (0) target = $region36
    $region35: #{harry_potter_lm_forward.4} parent=16 // pred_region
      %165 = vsyncadd [#allocation5], 8192
    $region36: #{harry_potter_lm_forward.4} parent=16 // pred_fallthru
      _
    %v166 = vld [vmem:[%s1] sm:$0xff]
    %167 = vst [vmem:[#allocation2] sm:$0xff] %v166
    %v168 = vld [vmem:[%s2] sm:$0xff]
    %169 = vst [vmem:[#allocation3] sm:$0xff] %v168
    %s170 = smul.u32 8, 16
    %s171 = smul.u32 %s170, 4
    %s172 = sshll.u32 %s171, 4
    %173 = dma.done [#allocation5], %s172
  $region17: #{harry_potter_lm_forward.4} parent=0 // pred_fallthru
    _
  %v174 = vld [vmem:[#allocation2] sm:$0xff]
  %v175 = vld [vmem:[#allocation3] sm:$0xff]
  %v176 = vld [vmem:[%s0] sm:$0xff]
  %v177 = vld [vmem:[%s0 + $0x8] sm:$0xff]
  %v178 = vld [vmem:[%s0 + $0x10] sm:$0xff]
  %v179 = vld [vmem:[%s0 + $0x18] sm:$0xff]
  %v180 = vld [vmem:[#allocation4] sm:$0xff]
  %v181 = vld [vmem:[#allocation4 + $0x8] sm:$0xff]
  %v182 = vld [vmem:[#allocation4 + $0x10] sm:$0xff]
  %v183 = vld [vmem:[#allocation4 + $0x18] sm:$0xff]
  %v184 = vld [vmem:[#allocation4 + $0x20] sm:$0xff]
  %v185 = vld [vmem:[#allocation4 + $0x28] sm:$0xff]
  %v186 = vld [vmem:[#allocation4 + $0x30] sm:$0xff]
  %v187 = vld [vmem:[#allocation4 + $0x38] sm:$0xff]
  %v188 = vld [vmem:[#allocation4 + $0x40] sm:$0xff]
  %v189 = vld [vmem:[#allocation4 + $0x48] sm:$0xff]
  %v190 = vld [vmem:[#allocation4 + $0x50] sm:$0xff]
  %v191 = vld [vmem:[#allocation4 + $0x58] sm:$0xff]
  %v192 = vld [vmem:[#allocation4 + $0x60] sm:$0xff]
  %v193 = vld [vmem:[#allocation4 + $0x68] sm:$0xff]
  %v194 = vld [vmem:[#allocation4 + $0x70] sm:$0xff]
  %v195 = vld [vmem:[#allocation4 + $0x78] sm:$0xff]
  %v196 = vld [vmem:[#allocation4 + $0x80] sm:$0xff]
  %v197 = vld [vmem:[#allocation4 + $0x88] sm:$0xff]
  %v198 = vld [vmem:[#allocation4 + $0x90] sm:$0xff]
  %v199 = vld [vmem:[#allocation4 + $0x98] sm:$0xff]
  %v200 = vld [vmem:[#allocation4 + $0xa0] sm:$0xff]
  %v201 = vld [vmem:[#allocation4 + $0xa8] sm:$0xff]
  %v202 = vld [vmem:[#allocation4 + $0xb0] sm:$0xff]
  %v203 = vld [vmem:[#allocation4 + $0xb8] sm:$0xff]
  %v204 = vld [vmem:[#allocation4 + $0xc0] sm:$0xff]
  %v205 = vld [vmem:[#allocation4 + $0xc8] sm:$0xff]
  %v206 = vld [vmem:[#allocation4 + $0xd0] sm:$0xff]
  %v207 = vld [vmem:[#allocation4 + $0xd8] sm:$0xff]
  %v208 = vld [vmem:[#allocation4 + $0xe0] sm:$0xff]
  %v209 = vld [vmem:[#allocation4 + $0xe8] sm:$0xff]
  %v210 = vld [vmem:[#allocation4 + $0xf0] sm:$0xff]
  %v211 = vld [vmem:[#allocation4 + $0xf8] sm:$0xff]
  %v212 = vld [vmem:[#allocation4 + $0x100] sm:$0xff]
  %v213 = vld [vmem:[#allocation4 + $0x108] sm:$0xff]
  %v214 = vld [vmem:[#allocation4 + $0x110] sm:$0xff]
  %v215 = vld [vmem:[#allocation4 + $0x118] sm:$0xff]
  %v216 = vld [vmem:[#allocation4 + $0x120] sm:$0xff]
  %v217 = vld [vmem:[#allocation4 + $0x128] sm:$0xff]
  %v218 = vld [vmem:[#allocation4 + $0x130] sm:$0xff]
  %v219 = vld [vmem:[#allocation4 + $0x138] sm:$0xff]
  %v220 = vld [vmem:[#allocation4 + $0x140] sm:$0xff]
  %v221 = vld [vmem:[#allocation4 + $0x148] sm:$0xff]
  %v222 = vld [vmem:[#allocation4 + $0x150] sm:$0xff]
  %v223 = vld [vmem:[#allocation4 + $0x158] sm:$0xff]
  %v224 = vld [vmem:[#allocation4 + $0x160] sm:$0xff]
  %v225 = vld [vmem:[#allocation4 + $0x168] sm:$0xff]
  %v226 = vld [vmem:[#allocation4 + $0x170] sm:$0xff]
  %v227 = vld [vmem:[#allocation4 + $0x178] sm:$0xff]
  %v228 = vld [vmem:[#allocation4 + $0x180] sm:$0xff]
  %v229 = vld [vmem:[#allocation4 + $0x188] sm:$0xff]
  %v230 = vld [vmem:[#allocation4 + $0x190] sm:$0xff]
  %v231 = vld [vmem:[#allocation4 + $0x198] sm:$0xff]
  %v232 = vld [vmem:[#allocation4 + $0x1a0] sm:$0xff]
  %v233 = vld [vmem:[#allocation4 + $0x1a8] sm:$0xff]
  %v234 = vld [vmem:[#allocation4 + $0x1b0] sm:$0xff]
  %v235 = vld [vmem:[#allocation4 + $0x1b8] sm:$0xff]
  %v236 = vld [vmem:[#allocation4 + $0x1c0] sm:$0xff]
  %v237 = vld [vmem:[#allocation4 + $0x1c8] sm:$0xff]
  %v238 = vld [vmem:[#allocation4 + $0x1d0] sm:$0xff]
  %v239 = vld [vmem:[#allocation4 + $0x1d8] sm:$0xff]
  %v240 = vld [vmem:[#allocation4 + $0x1e0] sm:$0xff]
  %v241 = vld [vmem:[#allocation4 + $0x1e8] sm:$0xff]
  %v242 = vld [vmem:[#allocation4 + $0x1f0] sm:$0xff]
  %v243 = vld [vmem:[#allocation4 + $0x1f8] sm:$0xff]
  %244 = vmatpush.msra.mxu0 %v240
  %245 = vmatpush.msra.mxu0 %v236
  %246 = vmatpush.msra.mxu0 %v232
  %247 = vmatpush.msra.mxu0 %v228
  %248 = vmatpush.msra.mxu0 %v224
  %249 = vmatpush.msra.mxu0 %v220
  %250 = vmatpush.msra.mxu0 %v216
  %251 = vmatpush.msra.mxu0 %v212
  %252 = vmatpush.msra.mxu0 %v208
  %253 = vmatpush.msra.mxu0 %v204
  %254 = vmatpush.msra.mxu0 %v200
  %255 = vmatpush.msra.mxu0 %v196
  %256 = vmatpush.msra.mxu0 %v192
  %257 = vmatpush.msra.mxu0 %v188
  %258 = vmatpush.msra.mxu0 %v184
  %259 = vmatpush.msra.mxu0 %v180
  %260 = vmatmul.f32.gmra.mxu0 %v174
  %v261 = vpop.f32.mrf.mxu0
  %v262 = vadd.f32 0.0, %v261
  %263 = vdwg.mxu0
  %264 = vmatpush.msra.mxu0 %v241
  %265 = vmatpush.msra.mxu0 %v237
  %266 = vmatpush.msra.mxu0 %v233
  %267 = vmatpush.msra.mxu0 %v229
  %268 = vmatpush.msra.mxu0 %v225
  %269 = vmatpush.msra.mxu0 %v221
  %270 = vmatpush.msra.mxu0 %v217
  %271 = vmatpush.msra.mxu0 %v213
  %272 = vmatpush.msra.mxu0 %v209
  %273 = vmatpush.msra.mxu0 %v205
  %274 = vmatpush.msra.mxu0 %v201
  %275 = vmatpush.msra.mxu0 %v197
  %276 = vmatpush.msra.mxu0 %v193
  %277 = vmatpush.msra.mxu0 %v189
  %278 = vmatpush.msra.mxu0 %v185
  %279 = vmatpush.msra.mxu0 %v181
  %280 = vmatmul.f32.gmra.mxu0 %v174
  %v281 = vpop.f32.mrf.mxu0
  %v282 = vadd.f32 0.0, %v281
  %283 = vdwg.mxu0
  %284 = vmatpush.msra.mxu0 %v242
  %285 = vmatpush.msra.mxu0 %v238
  %286 = vmatpush.msra.mxu0 %v234
  %287 = vmatpush.msra.mxu0 %v230
  %288 = vmatpush.msra.mxu0 %v226
  %289 = vmatpush.msra.mxu0 %v222
  %290 = vmatpush.msra.mxu0 %v218
  %291 = vmatpush.msra.mxu0 %v214
  %292 = vmatpush.msra.mxu0 %v210
  %293 = vmatpush.msra.mxu0 %v206
  %294 = vmatpush.msra.mxu0 %v202
  %295 = vmatpush.msra.mxu0 %v198
  %296 = vmatpush.msra.mxu0 %v194
  %297 = vmatpush.msra.mxu0 %v190
  %298 = vmatpush.msra.mxu0 %v186
  %299 = vmatpush.msra.mxu0 %v182
  %300 = vmatmul.f32.gmra.mxu0 %v174
  %v301 = vpop.f32.mrf.mxu0
  %v302 = vadd.f32 0.0, %v301
  %303 = vdwg.mxu0
  %304 = vmatpush.msra.mxu0 %v243
  %305 = vmatpush.msra.mxu0 %v239
  %306 = vmatpush.msra.mxu0 %v235
  %307 = vmatpush.msra.mxu0 %v231
  %308 = vmatpush.msra.mxu0 %v227
  %309 = vmatpush.msra.mxu0 %v223
  %310 = vmatpush.msra.mxu0 %v219
  %311 = vmatpush.msra.mxu0 %v215
  %312 = vmatpush.msra.mxu0 %v211
  %313 = vmatpush.msra.mxu0 %v207
  %314 = vmatpush.msra.mxu0 %v203
  %315 = vmatpush.msra.mxu0 %v199
  %316 = vmatpush.msra.mxu0 %v195
  %317 = vmatpush.msra.mxu0 %v191
  %318 = vmatpush.msra.mxu0 %v187
  %319 = vmatpush.msra.mxu0 %v183
  %320 = vmatmul.f32.gmra.mxu0 %v174
  %v321 = vpop.f32.mrf.mxu0
  %v322 = vadd.f32 0.0, %v321
  %323 = vdwg.mxu0
  %v324 = vadd.f32 %v176, %v262
  %v325 = vadd.f32 %v177, %v282
  %v326 = vadd.f32 %v178, %v302
  %v327 = vadd.f32 %v179, %v322
  %v328 = vxor.u32 %v324, 2147483648
  %v329 = vmul.f32 %v328, 1.442695
  %v330 = vpow.pop %v329
  %v331 = vadd.f32 %v330, 1.0
  %v332 = vrcp.pop %v331
  %v333 = vmul.f32 %v331, %v332
  %v334 = vsub.f32 1.0, %v333
  %v335 = vmul.f32 %v332, %v334
  %v336 = vadd.f32 %v332, %v335
  %vm337 = vweird.f32 %v331
  %vm338 = vweird.f32 %v332
  %vm339 = vmor %vm337, %vm338
  %v340 = vsel %vm339, %v332, %v336
  %v341 = vand.u32 2147483647, %v331
  %vm342 = vcmp.eq.f32.partialorder %v341, 8.507059e+37
  %v343 = vand.u32 %v331, 2147483648
  %v344 = vor.u32 1.1754944e-38, %v343
  %v345 = vsel %vm342, %v344, %v340
  %v346 = vmul.f32 1.0, %v345
  %v347 = vxor.u32 %v325, 2147483648
  %v348 = vmul.f32 %v347, 1.442695
  %v349 = vpow.pop %v348
  %v350 = vadd.f32 %v349, 1.0
  %v351 = vrcp.pop %v350
  %v352 = vmul.f32 %v350, %v351
  %v353 = vsub.f32 1.0, %v352
  %v354 = vmul.f32 %v351, %v353
  %v355 = vadd.f32 %v351, %v354
  %vm356 = vweird.f32 %v350
  %vm357 = vweird.f32 %v351
  %vm358 = vmor %vm356, %vm357
  %v359 = vsel %vm358, %v351, %v355
  %v360 = vand.u32 2147483647, %v350
  %vm361 = vcmp.eq.f32.partialorder %v360, 8.507059e+37
  %v362 = vand.u32 %v350, 2147483648
  %v363 = vor.u32 1.1754944e-38, %v362
  %v364 = vsel %vm361, %v363, %v359
  %v365 = vmul.f32 1.0, %v364
  %v366 = vtanh.pop %v326
  %v367 = vxor.u32 %v327, 2147483648
  %v368 = vmul.f32 %v367, 1.442695
  %v369 = vpow.pop %v368
  %v370 = vadd.f32 %v369, 1.0
  %v371 = vrcp.pop %v370
  %v372 = vmul.f32 %v370, %v371
  %v373 = vsub.f32 1.0, %v372
  %v374 = vmul.f32 %v371, %v373
  %v375 = vadd.f32 %v371, %v374
  %vm376 = vweird.f32 %v370
  %vm377 = vweird.f32 %v371
  %vm378 = vmor %vm376, %vm377
  %v379 = vsel %vm378, %v371, %v375
  %v380 = vand.u32 2147483647, %v370
  %vm381 = vcmp.eq.f32.partialorder %v380, 8.507059e+37
  %v382 = vand.u32 %v370, 2147483648
  %v383 = vor.u32 1.1754944e-38, %v382
  %v384 = vsel %vm381, %v383, %v379
  %v385 = vmul.f32 1.0, %v384
  %v386 = vmul.f32 %v365, %v175
  %v387 = vmul.f32 %v346, %v366
  %v388 = vadd.f32 %v386, %v387
  %v389 = vtanh.pop %v388
  %v390 = vmul.f32 %v385, %v389
  %391 = vst [vmem:[#allocation2] sm:$0xff] %v390
  %392 = vst [vmem:[#allocation3] sm:$0xff] %v388
  %393 = vst [vmem:[%s4] sm:$0xff] %v390
  %v394 = vld [vmem:[#allocation2] sm:$0xff]
  %v395 = vld [vmem:[#allocation3] sm:$0xff]
  %s396 = scalar_lea.vmem %s0, 32
  %v397 = vld [vmem:[%s396] sm:$0xff]
  %v398 = vld [vmem:[%s396 + $0x8] sm:$0xff]
  %v399 = vld [vmem:[%s396 + $0x10] sm:$0xff]
  %v400 = vld [vmem:[%s396 + $0x18] sm:$0xff]
  %v401 = vld [vmem:[#allocation4] sm:$0xff]
  %v402 = vld [vmem:[#allocation4 + $0x8] sm:$0xff]
  %v403 = vld [vmem:[#allocation4 + $0x10] sm:$0xff]
  %v404 = vld [vmem:[#allocation4 + $0x18] sm:$0xff]
  %v405 = vld [vmem:[#allocation4 + $0x20] sm:$0xff]
  %v406 = vld [vmem:[#allocation4 + $0x28] sm:$0xff]
  %v407 = vld [vmem:[#allocation4 + $0x30] sm:$0xff]
  %v408 = vld [vmem:[#allocation4 + $0x38] sm:$0xff]
  %v409 = vld [vmem:[#allocation4 + $0x40] sm:$0xff]
  %v410 = vld [vmem:[#allocation4 + $0x48] sm:$0xff]
  %v411 = vld [vmem:[#allocation4 + $0x50] sm:$0xff]
  %v412 = vld [vmem:[#allocation4 + $0x58] sm:$0xff]
  %v413 = vld [vmem:[#allocation4 + $0x60] sm:$0xff]
  %v414 = vld [vmem:[#allocation4 + $0x68] sm:$0xff]
  %v415 = vld [vmem:[#allocation4 + $0x70] sm:$0xff]
  %v416 = vld [vmem:[#allocation4 + $0x78] sm:$0xff]
  %v417 = vld [vmem:[#allocation4 + $0x80] sm:$0xff]
  %v418 = vld [vmem:[#allocation4 + $0x88] sm:$0xff]
  %v419 = vld [vmem:[#allocation4 + $0x90] sm:$0xff]
  %v420 = vld [vmem:[#allocation4 + $0x98] sm:$0xff]
  %v421 = vld [vmem:[#allocation4 + $0xa0] sm:$0xff]
  %v422 = vld [vmem:[#allocation4 + $0xa8] sm:$0xff]
  %v423 = vld [vmem:[#allocation4 + $0xb0] sm:$0xff]
  %v424 = vld [vmem:[#allocation4 + $0xb8] sm:$0xff]
  %v425 = vld [vmem:[#allocation4 + $0xc0] sm:$0xff]
  %v426 = vld [vmem:[#allocation4 + $0xc8] sm:$0xff]
  %v427 = vld [vmem:[#allocation4 + $0xd0] sm:$0xff]
  %v428 = vld [vmem:[#allocation4 + $0xd8] sm:$0xff]
  %v429 = vld [vmem:[#allocation4 + $0xe0] sm:$0xff]
  %v430 = vld [vmem:[#allocation4 + $0xe8] sm:$0xff]
  %v431 = vld [vmem:[#allocation4 + $0xf0] sm:$0xff]
  %v432 = vld [vmem:[#allocation4 + $0xf8] sm:$0xff]
  %v433 = vld [vmem:[#allocation4 + $0x100] sm:$0xff]
  %v434 = vld [vmem:[#allocation4 + $0x108] sm:$0xff]
  %v435 = vld [vmem:[#allocation4 + $0x110] sm:$0xff]
  %v436 = vld [vmem:[#allocation4 + $0x118] sm:$0xff]
  %v437 = vld [vmem:[#allocation4 + $0x120] sm:$0xff]
  %v438 = vld [vmem:[#allocation4 + $0x128] sm:$0xff]
  %v439 = vld [vmem:[#allocation4 + $0x130] sm:$0xff]
  %v440 = vld [vmem:[#allocation4 + $0x138] sm:$0xff]
  %v441 = vld [vmem:[#allocation4 + $0x140] sm:$0xff]
  %v442 = vld [vmem:[#allocation4 + $0x148] sm:$0xff]
  %v443 = vld [vmem:[#allocation4 + $0x150] sm:$0xff]
  %v444 = vld [vmem:[#allocation4 + $0x158] sm:$0xff]
  %v445 = vld [vmem:[#allocation4 + $0x160] sm:$0xff]
  %v446 = vld [vmem:[#allocation4 + $0x168] sm:$0xff]
  %v447 = vld [vmem:[#allocation4 + $0x170] sm:$0xff]
  %v448 = vld [vmem:[#allocation4 + $0x178] sm:$0xff]
  %v449 = vld [vmem:[#allocation4 + $0x180] sm:$0xff]
  %v450 = vld [vmem:[#allocation4 + $0x188] sm:$0xff]
  %v451 = vld [vmem:[#allocation4 + $0x190] sm:$0xff]
  %v452 = vld [vmem:[#allocation4 + $0x198] sm:$0xff]
  %v453 = vld [vmem:[#allocation4 + $0x1a0] sm:$0xff]
  %v454 = vld [vmem:[#allocation4 + $0x1a8] sm:$0xff]
  %v455 = vld [vmem:[#allocation4 + $0x1b0] sm:$0xff]
  %v456 = vld [vmem:[#allocation4 + $0x1b8] sm:$0xff]
  %v457 = vld [vmem:[#allocation4 + $0x1c0] sm:$0xff]
  %v458 = vld [vmem:[#allocation4 + $0x1c8] sm:$0xff]
  %v459 = vld [vmem:[#allocation4 + $0x1d0] sm:$0xff]
  %v460 = vld [vmem:[#allocation4 + $0x1d8] sm:$0xff]
  %v461 = vld [vmem:[#allocation4 + $0x1e0] sm:$0xff]
  %v462 = vld [vmem:[#allocation4 + $0x1e8] sm:$0xff]
  %v463 = vld [vmem:[#allocation4 + $0x1f0] sm:$0xff]
  %v464 = vld [vmem:[#allocation4 + $0x1f8] sm:$0xff]
  %465 = vmatpush.msra.mxu0 %v461
  %466 = vmatpush.msra.mxu0 %v457
  %467 = vmatpush.msra.mxu0 %v453
  %468 = vmatpush.msra.mxu0 %v449
  %469 = vmatpush.msra.mxu0 %v445
  %470 = vmatpush.msra.mxu0 %v441
  %471 = vmatpush.msra.mxu0 %v437
  %472 = vmatpush.msra.mxu0 %v433
  %473 = vmatpush.msra.mxu0 %v429
  %474 = vmatpush.msra.mxu0 %v425
  %475 = vmatpush.msra.mxu0 %v421
  %476 = vmatpush.msra.mxu0 %v417
  %477 = vmatpush.msra.mxu0 %v413
  %478 = vmatpush.msra.mxu0 %v409
  %479 = vmatpush.msra.mxu0 %v405
  %480 = vmatpush.msra.mxu0 %v401
  %481 = vmatmul.f32.gmra.mxu0 %v394
  %v482 = vpop.f32.mrf.mxu0
  %v483 = vadd.f32 0.0, %v482
  %484 = vdwg.mxu0
  %485 = vmatpush.msra.mxu0 %v462
  %486 = vmatpush.msra.mxu0 %v458
  %487 = vmatpush.msra.mxu0 %v454
  %488 = vmatpush.msra.mxu0 %v450
  %489 = vmatpush.msra.mxu0 %v446
  %490 = vmatpush.msra.mxu0 %v442
  %491 = vmatpush.msra.mxu0 %v438
  %492 = vmatpush.msra.mxu0 %v434
  %493 = vmatpush.msra.mxu0 %v430
  %494 = vmatpush.msra.mxu0 %v426
  %495 = vmatpush.msra.mxu0 %v422
  %496 = vmatpush.msra.mxu0 %v418
  %497 = vmatpush.msra.mxu0 %v414
  %498 = vmatpush.msra.mxu0 %v410
  %499 = vmatpush.msra.mxu0 %v406
  %500 = vmatpush.msra.mxu0 %v402
  %501 = vmatmul.f32.gmra.mxu0 %v394
  %v502 = vpop.f32.mrf.mxu0
  %v503 = vadd.f32 0.0, %v502
  %504 = vdwg.mxu0
  %505 = vmatpush.msra.mxu0 %v463
  %506 = vmatpush.msra.mxu0 %v459
  %507 = vmatpush.msra.mxu0 %v455
  %508 = vmatpush.msra.mxu0 %v451
  %509 = vmatpush.msra.mxu0 %v447
  %510 = vmatpush.msra.mxu0 %v443
  %511 = vmatpush.msra.mxu0 %v439
  %512 = vmatpush.msra.mxu0 %v435
  %513 = vmatpush.msra.mxu0 %v431
  %514 = vmatpush.msra.mxu0 %v427
  %515 = vmatpush.msra.mxu0 %v423
  %516 = vmatpush.msra.mxu0 %v419
  %517 = vmatpush.msra.mxu0 %v415
  %518 = vmatpush.msra.mxu0 %v411
  %519 = vmatpush.msra.mxu0 %v407
  %520 = vmatpush.msra.mxu0 %v403
  %521 = vmatmul.f32.gmra.mxu0 %v394
  %v522 = vpop.f32.mrf.mxu0
  %v523 = vadd.f32 0.0, %v522
  %524 = vdwg.mxu0
  %525 = vmatpush.msra.mxu0 %v464
  %526 = vmatpush.msra.mxu0 %v460
  %527 = vmatpush.msra.mxu0 %v456
  %528 = vmatpush.msra.mxu0 %v452
  %529 = vmatpush.msra.mxu0 %v448
  %530 = vmatpush.msra.mxu0 %v444
  %531 = vmatpush.msra.mxu0 %v440
  %532 = vmatpush.msra.mxu0 %v436
  %533 = vmatpush.msra.mxu0 %v432
  %534 = vmatpush.msra.mxu0 %v428
  %535 = vmatpush.msra.mxu0 %v424
  %536 = vmatpush.msra.mxu0 %v420
  %537 = vmatpush.msra.mxu0 %v416
  %538 = vmatpush.msra.mxu0 %v412
  %539 = vmatpush.msra.mxu0 %v408
  %540 = vmatpush.msra.mxu0 %v404
  %541 = vmatmul.f32.gmra.mxu0 %v394
  %v542 = vpop.f32.mrf.mxu0
  %v543 = vadd.f32 0.0, %v542
  %544 = vdwg.mxu0
  %v545 = vadd.f32 %v397, %v483
  %v546 = vadd.f32 %v398, %v503
  %v547 = vadd.f32 %v399, %v523
  %v548 = vadd.f32 %v400, %v543
  %v549 = vxor.u32 %v545, 2147483648
  %v550 = vmul.f32 %v549, 1.442695
  %v551 = vpow.pop %v550
  %v552 = vadd.f32 %v551, 1.0
  %v553 = vrcp.pop %v552
  %v554 = vmul.f32 %v552, %v553
  %v555 = vsub.f32 1.0, %v554
  %v556 = vmul.f32 %v553, %v555
  %v557 = vadd.f32 %v553, %v556
  %vm558 = vweird.f32 %v552
  %vm559 = vweird.f32 %v553
  %vm560 = vmor %vm558, %vm559
  %v561 = vsel %vm560, %v553, %v557
  %v562 = vand.u32 2147483647, %v552
  %vm563 = vcmp.eq.f32.partialorder %v562, 8.507059e+37
  %v564 = vand.u32 %v552, 2147483648
  %v565 = vor.u32 1.1754944e-38, %v564
  %v566 = vsel %vm563, %v565, %v561
  %v567 = vmul.f32 1.0, %v566
  %v568 = vxor.u32 %v546, 2147483648
  %v569 = vmul.f32 %v568, 1.442695
  %v570 = vpow.pop %v569
  %v571 = vadd.f32 %v570, 1.0
  %v572 = vrcp.pop %v571
  %v573 = vmul.f32 %v571, %v572
  %v574 = vsub.f32 1.0, %v573
  %v575 = vmul.f32 %v572, %v574
  %v576 = vadd.f32 %v572, %v575
  %vm577 = vweird.f32 %v571
  %vm578 = vweird.f32 %v572
  %vm579 = vmor %vm577, %vm578
  %v580 = vsel %vm579, %v572, %v576
  %v581 = vand.u32 2147483647, %v571
  %vm582 = vcmp.eq.f32.partialorder %v581, 8.507059e+37
  %v583 = vand.u32 %v571, 2147483648
  %v584 = vor.u32 1.1754944e-38, %v583
  %v585 = vsel %vm582, %v584, %v580
  %v586 = vmul.f32 1.0, %v585
  %v587 = vtanh.pop %v547
  %v588 = vxor.u32 %v548, 2147483648
  %v589 = vmul.f32 %v588, 1.442695
  %v590 = vpow.pop %v589
  %v591 = vadd.f32 %v590, 1.0
  %v592 = vrcp.pop %v591
  %v593 = vmul.f32 %v591, %v592
  %v594 = vsub.f32 1.0, %v593
  %v595 = vmul.f32 %v592, %v594
  %v596 = vadd.f32 %v592, %v595
  %vm597 = vweird.f32 %v591
  %vm598 = vweird.f32 %v592
  %vm599 = vmor %vm597, %vm598
  %v600 = vsel %vm599, %v592, %v596
  %v601 = vand.u32 2147483647, %v591
  %vm602 = vcmp.eq.f32.partialorder %v601, 8.507059e+37
  %v603 = vand.u32 %v591, 2147483648
  %v604 = vor.u32 1.1754944e-38, %v603
  %v605 = vsel %vm602, %v604, %v600
  %v606 = vmul.f32 1.0, %v605
  %v607 = vmul.f32 %v586, %v395
  %v608 = vmul.f32 %v567, %v587
  %v609 = vadd.f32 %v607, %v608
  %v610 = vtanh.pop %v609
  %v611 = vmul.f32 %v606, %v610
  %612 = vst [vmem:[#allocation2] sm:$0xff] %v611
  %613 = vst [vmem:[#allocation3] sm:$0xff] %v609
  %s614 = scalar_lea.vmem %s4, 8
  %615 = vst [vmem:[%s614] sm:$0xff] %v611
  %v616 = vld [vmem:[#allocation2] sm:$0xff]
  %v617 = vld [vmem:[#allocation3] sm:$0xff]
  %s618 = scalar_lea.vmem %s0, 64
  %v619 = vld [vmem:[%s618] sm:$0xff]
  %v620 = vld [vmem:[%s618 + $0x8] sm:$0xff]
  %v621 = vld [vmem:[%s618 + $0x10] sm:$0xff]
  %v622 = vld [vmem:[%s618 + $0x18] sm:$0xff]
  %v623 = vld [vmem:[#allocation4] sm:$0xff]
  %v624 = vld [vmem:[#allocation4 + $0x8] sm:$0xff]
  %v625 = vld [vmem:[#allocation4 + $0x10] sm:$0xff]
  %v626 = vld [vmem:[#allocation4 + $0x18] sm:$0xff]
  %v627 = vld [vmem:[#allocation4 + $0x20] sm:$0xff]
  %v628 = vld [vmem:[#allocation4 + $0x28] sm:$0xff]
  %v629 = vld [vmem:[#allocation4 + $0x30] sm:$0xff]
  %v630 = vld [vmem:[#allocation4 + $0x38] sm:$0xff]
  %v631 = vld [vmem:[#allocation4 + $0x40] sm:$0xff]
  %v632 = vld [vmem:[#allocation4 + $0x48] sm:$0xff]
  %v633 = vld [vmem:[#allocation4 + $0x50] sm:$0xff]
  %v634 = vld [vmem:[#allocation4 + $0x58] sm:$0xff]
  %v635 = vld [vmem:[#allocation4 + $0x60] sm:$0xff]
  %v636 = vld [vmem:[#allocation4 + $0x68] sm:$0xff]
  %v637 = vld [vmem:[#allocation4 + $0x70] sm:$0xff]
  %v638 = vld [vmem:[#allocation4 + $0x78] sm:$0xff]
  %v639 = vld [vmem:[#allocation4 + $0x80] sm:$0xff]
  %v640 = vld [vmem:[#allocation4 + $0x88] sm:$0xff]
  %v641 = vld [vmem:[#allocation4 + $0x90] sm:$0xff]
  %v642 = vld [vmem:[#allocation4 + $0x98] sm:$0xff]
  %v643 = vld [vmem:[#allocation4 + $0xa0] sm:$0xff]
  %v644 = vld [vmem:[#allocation4 + $0xa8] sm:$0xff]
  %v645 = vld [vmem:[#allocation4 + $0xb0] sm:$0xff]
  %v646 = vld [vmem:[#allocation4 + $0xb8] sm:$0xff]
  %v647 = vld [vmem:[#allocation4 + $0xc0] sm:$0xff]
  %v648 = vld [vmem:[#allocation4 + $0xc8] sm:$0xff]
  %v649 = vld [vmem:[#allocation4 + $0xd0] sm:$0xff]
  %v650 = vld [vmem:[#allocation4 + $0xd8] sm:$0xff]
  %v651 = vld [vmem:[#allocation4 + $0xe0] sm:$0xff]
  %v652 = vld [vmem:[#allocation4 + $0xe8] sm:$0xff]
  %v653 = vld [vmem:[#allocation4 + $0xf0] sm:$0xff]
  %v654 = vld [vmem:[#allocation4 + $0xf8] sm:$0xff]
  %v655 = vld [vmem:[#allocation4 + $0x100] sm:$0xff]
  %v656 = vld [vmem:[#allocation4 + $0x108] sm:$0xff]
  %v657 = vld [vmem:[#allocation4 + $0x110] sm:$0xff]
  %v658 = vld [vmem:[#allocation4 + $0x118] sm:$0xff]
  %v659 = vld [vmem:[#allocation4 + $0x120] sm:$0xff]
  %v660 = vld [vmem:[#allocation4 + $0x128] sm:$0xff]
  %v661 = vld [vmem:[#allocation4 + $0x130] sm:$0xff]
  %v662 = vld [vmem:[#allocation4 + $0x138] sm:$0xff]
  %v663 = vld [vmem:[#allocation4 + $0x140] sm:$0xff]
  %v664 = vld [vmem:[#allocation4 + $0x148] sm:$0xff]
  %v665 = vld [vmem:[#allocation4 + $0x150] sm:$0xff]
  %v666 = vld [vmem:[#allocation4 + $0x158] sm:$0xff]
  %v667 = vld [vmem:[#allocation4 + $0x160] sm:$0xff]
  %v668 = vld [vmem:[#allocation4 + $0x168] sm:$0xff]
  %v669 = vld [vmem:[#allocation4 + $0x170] sm:$0xff]
  %v670 = vld [vmem:[#allocation4 + $0x178] sm:$0xff]
  %v671 = vld [vmem:[#allocation4 + $0x180] sm:$0xff]
  %v672 = vld [vmem:[#allocation4 + $0x188] sm:$0xff]
  %v673 = vld [vmem:[#allocation4 + $0x190] sm:$0xff]
  %v674 = vld [vmem:[#allocation4 + $0x198] sm:$0xff]
  %v675 = vld [vmem:[#allocation4 + $0x1a0] sm:$0xff]
  %v676 = vld [vmem:[#allocation4 + $0x1a8] sm:$0xff]
  %v677 = vld [vmem:[#allocation4 + $0x1b0] sm:$0xff]
  %v678 = vld [vmem:[#allocation4 + $0x1b8] sm:$0xff]
  %v679 = vld [vmem:[#allocation4 + $0x1c0] sm:$0xff]
  %v680 = vld [vmem:[#allocation4 + $0x1c8] sm:$0xff]
  %v681 = vld [vmem:[#allocation4 + $0x1d0] sm:$0xff]
  %v682 = vld [vmem:[#allocation4 + $0x1d8] sm:$0xff]
  %v683 = vld [vmem:[#allocation4 + $0x1e0] sm:$0xff]
  %v684 = vld [vmem:[#allocation4 + $0x1e8] sm:$0xff]
  %v685 = vld [vmem:[#allocation4 + $0x1f0] sm:$0xff]
  %v686 = vld [vmem:[#allocation4 + $0x1f8] sm:$0xff]
  %687 = vmatpush.msra.mxu0 %v683
  %688 = vmatpush.msra.mxu0 %v679
  %689 = vmatpush.msra.mxu0 %v675
  %690 = vmatpush.msra.mxu0 %v671
  %691 = vmatpush.msra.mxu0 %v667
  %692 = vmatpush.msra.mxu0 %v663
  %693 = vmatpush.msra.mxu0 %v659
  %694 = vmatpush.msra.mxu0 %v655
  %695 = vmatpush.msra.mxu0 %v651
  %696 = vmatpush.msra.mxu0 %v647
  %697 = vmatpush.msra.mxu0 %v643
  %698 = vmatpush.msra.mxu0 %v639
  %699 = vmatpush.msra.mxu0 %v635
  %700 = vmatpush.msra.mxu0 %v631
  %701 = vmatpush.msra.mxu0 %v627
  %702 = vmatpush.msra.mxu0 %v623
  %703 = vmatmul.f32.gmra.mxu0 %v616
  %v704 = vpop.f32.mrf.mxu0
  %v705 = vadd.f32 0.0, %v704
  %706 = vdwg.mxu0
  %707 = vmatpush.msra.mxu0 %v684
  %708 = vmatpush.msra.mxu0 %v680
  %709 = vmatpush.msra.mxu0 %v676
  %710 = vmatpush.msra.mxu0 %v672
  %711 = vmatpush.msra.mxu0 %v668
  %712 = vmatpush.msra.mxu0 %v664
  %713 = vmatpush.msra.mxu0 %v660
  %714 = vmatpush.msra.mxu0 %v656
  %715 = vmatpush.msra.mxu0 %v652
  %716 = vmatpush.msra.mxu0 %v648
  %717 = vmatpush.msra.mxu0 %v644
  %718 = vmatpush.msra.mxu0 %v640
  %719 = vmatpush.msra.mxu0 %v636
  %720 = vmatpush.msra.mxu0 %v632
  %721 = vmatpush.msra.mxu0 %v628
  %722 = vmatpush.msra.mxu0 %v624
  %723 = vmatmul.f32.gmra.mxu0 %v616
  %v724 = vpop.f32.mrf.mxu0
  %v725 = vadd.f32 0.0, %v724
  %726 = vdwg.mxu0
  %727 = vmatpush.msra.mxu0 %v685
  %728 = vmatpush.msra.mxu0 %v681
  %729 = vmatpush.msra.mxu0 %v677
  %730 = vmatpush.msra.mxu0 %v673
  %731 = vmatpush.msra.mxu0 %v669
  %732 = vmatpush.msra.mxu0 %v665
  %733 = vmatpush.msra.mxu0 %v661
  %734 = vmatpush.msra.mxu0 %v657
  %735 = vmatpush.msra.mxu0 %v653
  %736 = vmatpush.msra.mxu0 %v649
  %737 = vmatpush.msra.mxu0 %v645
  %738 = vmatpush.msra.mxu0 %v641
  %739 = vmatpush.msra.mxu0 %v637
  %740 = vmatpush.msra.mxu0 %v633
  %741 = vmatpush.msra.mxu0 %v629
  %742 = vmatpush.msra.mxu0 %v625
  %743 = vmatmul.f32.gmra.mxu0 %v616
  %v744 = vpop.f32.mrf.mxu0
  %v745 = vadd.f32 0.0, %v744
  %746 = vdwg.mxu0
  %747 = vmatpush.msra.mxu0 %v686
  %748 = vmatpush.msra.mxu0 %v682
  %749 = vmatpush.msra.mxu0 %v678
  %750 = vmatpush.msra.mxu0 %v674
  %751 = vmatpush.msra.mxu0 %v670
  %752 = vmatpush.msra.mxu0 %v666
  %753 = vmatpush.msra.mxu0 %v662
  %754 = vmatpush.msra.mxu0 %v658
  %755 = vmatpush.msra.mxu0 %v654
  %756 = vmatpush.msra.mxu0 %v650
  %757 = vmatpush.msra.mxu0 %v646
  %758 = vmatpush.msra.mxu0 %v642
  %759 = vmatpush.msra.mxu0 %v638
  %760 = vmatpush.msra.mxu0 %v634
  %761 = vmatpush.msra.mxu0 %v630
  %762 = vmatpush.msra.mxu0 %v626
  %763 = vmatmul.f32.gmra.mxu0 %v616
  %v764 = vpop.f32.mrf.mxu0
  %v765 = vadd.f32 0.0, %v764
  %766 = vdwg.mxu0
  %v767 = vadd.f32 %v619, %v705
  %v768 = vadd.f32 %v620, %v725
  %v769 = vadd.f32 %v621, %v745
  %v770 = vadd.f32 %v622, %v765
  %v771 = vxor.u32 %v767, 2147483648
  %v772 = vmul.f32 %v771, 1.442695
  %v773 = vpow.pop %v772
  %v774 = vadd.f32 %v773, 1.0
  %v775 = vrcp.pop %v774
  %v776 = vmul.f32 %v774, %v775
  %v777 = vsub.f32 1.0, %v776
  %v778 = vmul.f32 %v775, %v777
  %v779 = vadd.f32 %v775, %v778
  %vm780 = vweird.f32 %v774
  %vm781 = vweird.f32 %v775
  %vm782 = vmor %vm780, %vm781
  %v783 = vsel %vm782, %v775, %v779
  %v784 = vand.u32 2147483647, %v774
  %vm785 = vcmp.eq.f32.partialorder %v784, 8.507059e+37
  %v786 = vand.u32 %v774, 2147483648
  %v787 = vor.u32 1.1754944e-38, %v786
  %v788 = vsel %vm785, %v787, %v783
  %v789 = vmul.f32 1.0, %v788
  %v790 = vxor.u32 %v768, 2147483648
  %v791 = vmul.f32 %v790, 1.442695
  %v792 = vpow.pop %v791
  %v793 = vadd.f32 %v792, 1.0
  %v794 = vrcp.pop %v793
  %v795 = vmul.f32 %v793, %v794
  %v796 = vsub.f32 1.0, %v795
  %v797 = vmul.f32 %v794, %v796
  %v798 = vadd.f32 %v794, %v797
  %vm799 = vweird.f32 %v793
  %vm800 = vweird.f32 %v794
  %vm801 = vmor %vm799, %vm800
  %v802 = vsel %vm801, %v794, %v798
  %v803 = vand.u32 2147483647, %v793
  %vm804 = vcmp.eq.f32.partialorder %v803, 8.507059e+37
  %v805 = vand.u32 %v793, 2147483648
  %v806 = vor.u32 1.1754944e-38, %v805
  %v807 = vsel %vm804, %v806, %v802
  %v808 = vmul.f32 1.0, %v807
  %v809 = vtanh.pop %v769
  %v810 = vxor.u32 %v770, 2147483648
  %v811 = vmul.f32 %v810, 1.442695
  %v812 = vpow.pop %v811
  %v813 = vadd.f32 %v812, 1.0
  %v814 = vrcp.pop %v813
  %v815 = vmul.f32 %v813, %v814
  %v816 = vsub.f32 1.0, %v815
  %v817 = vmul.f32 %v814, %v816
  %v818 = vadd.f32 %v814, %v817
  %vm819 = vweird.f32 %v813
  %vm820 = vweird.f32 %v814
  %vm821 = vmor %vm819, %vm820
  %v822 = vsel %vm821, %v814, %v818
  %v823 = vand.u32 2147483647, %v813
  %vm824 = vcmp.eq.f32.partialorder %v823, 8.507059e+37
  %v825 = vand.u32 %v813, 2147483648
  %v826 = vor.u32 1.1754944e-38, %v825
  %v827 = vsel %vm824, %v826, %v822
  %v828 = vmul.f32 1.0, %v827
  %v829 = vmul.f32 %v808, %v617
  %v830 = vmul.f32 %v789, %v809
  %v831 = vadd.f32 %v829, %v830
  %v832 = vtanh.pop %v831
  %v833 = vmul.f32 %v828, %v832
  %834 = vst [vmem:[#allocation2] sm:$0xff] %v833
  %835 = vst [vmem:[#allocation3] sm:$0xff] %v831
  %s836 = scalar_lea.vmem %s4, 16
  %837 = vst [vmem:[%s836] sm:$0xff] %v833
  %v838 = vld [vmem:[#allocation2] sm:$0xff]
  %v839 = vld [vmem:[#allocation3] sm:$0xff]
  %s840 = scalar_lea.vmem %s0, 96
  %v841 = vld [vmem:[%s840] sm:$0xff]
  %v842 = vld [vmem:[%s840 + $0x8] sm:$0xff]
  %v843 = vld [vmem:[%s840 + $0x10] sm:$0xff]
  %v844 = vld [vmem:[%s840 + $0x18] sm:$0xff]
  %v845 = vld [vmem:[#allocation4] sm:$0xff]
  %v846 = vld [vmem:[#allocation4 + $0x8] sm:$0xff]
  %v847 = vld [vmem:[#allocation4 + $0x10] sm:$0xff]
  %v848 = vld [vmem:[#allocation4 + $0x18] sm:$0xff]
  %v849 = vld [vmem:[#allocation4 + $0x20] sm:$0xff]
  %v850 = vld [vmem:[#allocation4 + $0x28] sm:$0xff]
  %v851 = vld [vmem:[#allocation4 + $0x30] sm:$0xff]
  %v852 = vld [vmem:[#allocation4 + $0x38] sm:$0xff]
  %v853 = vld [vmem:[#allocation4 + $0x40] sm:$0xff]
  %v854 = vld [vmem:[#allocation4 + $0x48] sm:$0xff]
  %v855 = vld [vmem:[#allocation4 + $0x50] sm:$0xff]
  %v856 = vld [vmem:[#allocation4 + $0x58] sm:$0xff]
  %v857 = vld [vmem:[#allocation4 + $0x60] sm:$0xff]
  %v858 = vld [vmem:[#allocation4 + $0x68] sm:$0xff]
  %v859 = vld [vmem:[#allocation4 + $0x70] sm:$0xff]
  %v860 = vld [vmem:[#allocation4 + $0x78] sm:$0xff]
  %v861 = vld [vmem:[#allocation4 + $0x80] sm:$0xff]
  %v862 = vld [vmem:[#allocation4 + $0x88] sm:$0xff]
  %v863 = vld [vmem:[#allocation4 + $0x90] sm:$0xff]
  %v864 = vld [vmem:[#allocation4 + $0x98] sm:$0xff]
  %v865 = vld [vmem:[#allocation4 + $0xa0] sm:$0xff]
  %v866 = vld [vmem:[#allocation4 + $0xa8] sm:$0xff]
  %v867 = vld [vmem:[#allocation4 + $0xb0] sm:$0xff]
  %v868 = vld [vmem:[#allocation4 + $0xb8] sm:$0xff]
  %v869 = vld [vmem:[#allocation4 + $0xc0] sm:$0xff]
  %v870 = vld [vmem:[#allocation4 + $0xc8] sm:$0xff]
  %v871 = vld [vmem:[#allocation4 + $0xd0] sm:$0xff]
  %v872 = vld [vmem:[#allocation4 + $0xd8] sm:$0xff]
  %v873 = vld [vmem:[#allocation4 + $0xe0] sm:$0xff]
  %v874 = vld [vmem:[#allocation4 + $0xe8] sm:$0xff]
  %v875 = vld [vmem:[#allocation4 + $0xf0] sm:$0xff]
  %v876 = vld [vmem:[#allocation4 + $0xf8] sm:$0xff]
  %v877 = vld [vmem:[#allocation4 + $0x100] sm:$0xff]
  %v878 = vld [vmem:[#allocation4 + $0x108] sm:$0xff]
  %v879 = vld [vmem:[#allocation4 + $0x110] sm:$0xff]
  %v880 = vld [vmem:[#allocation4 + $0x118] sm:$0xff]
  %v881 = vld [vmem:[#allocation4 + $0x120] sm:$0xff]
  %v882 = vld [vmem:[#allocation4 + $0x128] sm:$0xff]
  %v883 = vld [vmem:[#allocation4 + $0x130] sm:$0xff]
  %v884 = vld [vmem:[#allocation4 + $0x138] sm:$0xff]
  %v885 = vld [vmem:[#allocation4 + $0x140] sm:$0xff]
  %v886 = vld [vmem:[#allocation4 + $0x148] sm:$0xff]
  %v887 = vld [vmem:[#allocation4 + $0x150] sm:$0xff]
  %v888 = vld [vmem:[#allocation4 + $0x158] sm:$0xff]
  %v889 = vld [vmem:[#allocation4 + $0x160] sm:$0xff]
  %v890 = vld [vmem:[#allocation4 + $0x168] sm:$0xff]
  %v891 = vld [vmem:[#allocation4 + $0x170] sm:$0xff]
  %v892 = vld [vmem:[#allocation4 + $0x178] sm:$0xff]
  %v893 = vld [vmem:[#allocation4 + $0x180] sm:$0xff]
  %v894 = vld [vmem:[#allocation4 + $0x188] sm:$0xff]
  %v895 = vld [vmem:[#allocation4 + $0x190] sm:$0xff]
  %v896 = vld [vmem:[#allocation4 + $0x198] sm:$0xff]
  %v897 = vld [vmem:[#allocation4 + $0x1a0] sm:$0xff]
  %v898 = vld [vmem:[#allocation4 + $0x1a8] sm:$0xff]
  %v899 = vld [vmem:[#allocation4 + $0x1b0] sm:$0xff]
  %v900 = vld [vmem:[#allocation4 + $0x1b8] sm:$0xff]
  %v901 = vld [vmem:[#allocation4 + $0x1c0] sm:$0xff]
  %v902 = vld [vmem:[#allocation4 + $0x1c8] sm:$0xff]
  %v903 = vld [vmem:[#allocation4 + $0x1d0] sm:$0xff]
  %v904 = vld [vmem:[#allocation4 + $0x1d8] sm:$0xff]
  %v905 = vld [vmem:[#allocation4 + $0x1e0] sm:$0xff]
  %v906 = vld [vmem:[#allocation4 + $0x1e8] sm:$0xff]
  %v907 = vld [vmem:[#allocation4 + $0x1f0] sm:$0xff]
  %v908 = vld [vmem:[#allocation4 + $0x1f8] sm:$0xff]
  %909 = vmatpush.msra.mxu0 %v905
  %910 = vmatpush.msra.mxu0 %v901
  %911 = vmatpush.msra.mxu0 %v897
  %912 = vmatpush.msra.mxu0 %v893
  %913 = vmatpush.msra.mxu0 %v889
  %914 = vmatpush.msra.mxu0 %v885
  %915 = vmatpush.msra.mxu0 %v881
  %916 = vmatpush.msra.mxu0 %v877
  %917 = vmatpush.msra.mxu0 %v873
  %918 = vmatpush.msra.mxu0 %v869
  %919 = vmatpush.msra.mxu0 %v865
  %920 = vmatpush.msra.mxu0 %v861
  %921 = vmatpush.msra.mxu0 %v857
  %922 = vmatpush.msra.mxu0 %v853
  %923 = vmatpush.msra.mxu0 %v849
  %924 = vmatpush.msra.mxu0 %v845
  %925 = vmatmul.f32.gmra.mxu0 %v838
  %v926 = vpop.f32.mrf.mxu0
  %v927 = vadd.f32 0.0, %v926
  %928 = vdwg.mxu0
  %929 = vmatpush.msra.mxu0 %v906
  %930 = vmatpush.msra.mxu0 %v902
  %931 = vmatpush.msra.mxu0 %v898
  %932 = vmatpush.msra.mxu0 %v894
  %933 = vmatpush.msra.mxu0 %v890
  %934 = vmatpush.msra.mxu0 %v886
  %935 = vmatpush.msra.mxu0 %v882
  %936 = vmatpush.msra.mxu0 %v878
  %937 = vmatpush.msra.mxu0 %v874
  %938 = vmatpush.msra.mxu0 %v870
  %939 = vmatpush.msra.mxu0 %v866
  %940 = vmatpush.msra.mxu0 %v862
  %941 = vmatpush.msra.mxu0 %v858
  %942 = vmatpush.msra.mxu0 %v854
  %943 = vmatpush.msra.mxu0 %v850
  %944 = vmatpush.msra.mxu0 %v846
  %945 = vmatmul.f32.gmra.mxu0 %v838
  %v946 = vpop.f32.mrf.mxu0
  %v947 = vadd.f32 0.0, %v946
  %948 = vdwg.mxu0
  %949 = vmatpush.msra.mxu0 %v907
  %950 = vmatpush.msra.mxu0 %v903
  %951 = vmatpush.msra.mxu0 %v899
  %952 = vmatpush.msra.mxu0 %v895
  %953 = vmatpush.msra.mxu0 %v891
  %954 = vmatpush.msra.mxu0 %v887
  %955 = vmatpush.msra.mxu0 %v883
  %956 = vmatpush.msra.mxu0 %v879
  %957 = vmatpush.msra.mxu0 %v875
  %958 = vmatpush.msra.mxu0 %v871
  %959 = vmatpush.msra.mxu0 %v867
  %960 = vmatpush.msra.mxu0 %v863
  %961 = vmatpush.msra.mxu0 %v859
  %962 = vmatpush.msra.mxu0 %v855
  %963 = vmatpush.msra.mxu0 %v851
  %964 = vmatpush.msra.mxu0 %v847
  %965 = vmatmul.f32.gmra.mxu0 %v838
  %v966 = vpop.f32.mrf.mxu0
  %v967 = vadd.f32 0.0, %v966
  %968 = vdwg.mxu0
  %969 = vmatpush.msra.mxu0 %v908
  %970 = vmatpush.msra.mxu0 %v904
  %971 = vmatpush.msra.mxu0 %v900
  %972 = vmatpush.msra.mxu0 %v896
  %973 = vmatpush.msra.mxu0 %v892
  %974 = vmatpush.msra.mxu0 %v888
  %975 = vmatpush.msra.mxu0 %v884
  %976 = vmatpush.msra.mxu0 %v880
  %977 = vmatpush.msra.mxu0 %v876
  %978 = vmatpush.msra.mxu0 %v872
  %979 = vmatpush.msra.mxu0 %v868
  %980 = vmatpush.msra.mxu0 %v864
  %981 = vmatpush.msra.mxu0 %v860
  %982 = vmatpush.msra.mxu0 %v856
  %983 = vmatpush.msra.mxu0 %v852
  %984 = vmatpush.msra.mxu0 %v848
  %985 = vmatmul.f32.gmra.mxu0 %v838
  %v986 = vpop.f32.mrf.mxu0
  %v987 = vadd.f32 0.0, %v986
  %988 = vdwg.mxu0
  %v989 = vadd.f32 %v841, %v927
  %v990 = vadd.f32 %v842, %v947
  %v991 = vadd.f32 %v843, %v967
  %v992 = vadd.f32 %v844, %v987
  %v993 = vxor.u32 %v989, 2147483648
  %v994 = vmul.f32 %v993, 1.442695
  %v995 = vpow.pop %v994
  %v996 = vadd.f32 %v995, 1.0
  %v997 = vrcp.pop %v996
  %v998 = vmul.f32 %v996, %v997
  %v999 = vsub.f32 1.0, %v998
  %v1000 = vmul.f32 %v997, %v999
  %v1001 = vadd.f32 %v997, %v1000
  %vm1002 = vweird.f32 %v996
  %vm1003 = vweird.f32 %v997
  %vm1004 = vmor %vm1002, %vm1003
  %v1005 = vsel %vm1004, %v997, %v1001
  %v1006 = vand.u32 2147483647, %v996
  %vm1007 = vcmp.eq.f32.partialorder %v1006, 8.507059e+37
  %v1008 = vand.u32 %v996, 2147483648
  %v1009 = vor.u32 1.1754944e-38, %v1008
  %v1010 = vsel %vm1007, %v1009, %v1005
  %v1011 = vmul.f32 1.0, %v1010
  %v1012 = vxor.u32 %v990, 2147483648
  %v1013 = vmul.f32 %v1012, 1.442695
  %v1014 = vpow.pop %v1013
  %v1015 = vadd.f32 %v1014, 1.0
  %v1016 = vrcp.pop %v1015
  %v1017 = vmul.f32 %v1015, %v1016
  %v1018 = vsub.f32 1.0, %v1017
  %v1019 = vmul.f32 %v1016, %v1018
  %v1020 = vadd.f32 %v1016, %v1019
  %vm1021 = vweird.f32 %v1015
  %vm1022 = vweird.f32 %v1016
  %vm1023 = vmor %vm1021, %vm1022
  %v1024 = vsel %vm1023, %v1016, %v1020
  %v1025 = vand.u32 2147483647, %v1015
  %vm1026 = vcmp.eq.f32.partialorder %v1025, 8.507059e+37
  %v1027 = vand.u32 %v1015, 2147483648
  %v1028 = vor.u32 1.1754944e-38, %v1027
  %v1029 = vsel %vm1026, %v1028, %v1024
  %v1030 = vmul.f32 1.0, %v1029
  %v1031 = vtanh.pop %v991
  %v1032 = vxor.u32 %v992, 2147483648
  %v1033 = vmul.f32 %v1032, 1.442695
  %v1034 = vpow.pop %v1033
  %v1035 = vadd.f32 %v1034, 1.0
  %v1036 = vrcp.pop %v1035
  %v1037 = vmul.f32 %v1035, %v1036
  %v1038 = vsub.f32 1.0, %v1037
  %v1039 = vmul.f32 %v1036, %v1038
  %v1040 = vadd.f32 %v1036, %v1039
  %vm1041 = vweird.f32 %v1035
  %vm1042 = vweird.f32 %v1036
  %vm1043 = vmor %vm1041, %vm1042
  %v1044 = vsel %vm1043, %v1036, %v1040
  %v1045 = vand.u32 2147483647, %v1035
  %vm1046 = vcmp.eq.f32.partialorder %v1045, 8.507059e+37
  %v1047 = vand.u32 %v1035, 2147483648
  %v1048 = vor.u32 1.1754944e-38, %v1047
  %v1049 = vsel %vm1046, %v1048, %v1044
  %v1050 = vmul.f32 1.0, %v1049
  %v1051 = vmul.f32 %v1030, %v839
  %v1052 = vmul.f32 %v1011, %v1031
  %v1053 = vadd.f32 %v1051, %v1052
  %v1054 = vtanh.pop %v1053
  %v1055 = vmul.f32 %v1050, %v1054
  %1056 = vst [vmem:[#allocation2] sm:$0xff] %v1055
  %1057 = vst [vmem:[#allocation3] sm:$0xff] %v1053
  %s1058 = scalar_lea.vmem %s4, 24
  %1059 = vst [vmem:[%s1058] sm:$0xff] %v1055
  %v1060 = vld [vmem:[#allocation2] sm:$0xff]
  %v1061 = vld [vmem:[#allocation3] sm:$0xff]
  %s1062 = scalar_lea.vmem %s0, 128
  %v1063 = vld [vmem:[%s1062] sm:$0xff]
  %v1064 = vld [vmem:[%s1062 + $0x8] sm:$0xff]
  %v1065 = vld [vmem:[%s1062 + $0x10] sm:$0xff]
  %v1066 = vld [vmem:[%s1062 + $0x18] sm:$0xff]
  %v1067 = vld [vmem:[#allocation4] sm:$0xff]
  %v1068 = vld [vmem:[#allocation4 + $0x8] sm:$0xff]
  %v1069 = vld [vmem:[#allocation4 + $0x10] sm:$0xff]
  %v1070 = vld [vmem:[#allocation4 + $0x18] sm:$0xff]
  %v1071 = vld [vmem:[#allocation4 + $0x20] sm:$0xff]
  %v1072 = vld [vmem:[#allocation4 + $0x28] sm:$0xff]
  %v1073 = vld [vmem:[#allocation4 + $0x30] sm:$0xff]
  %v1074 = vld [vmem:[#allocation4 + $0x38] sm:$0xff]
  %v1075 = vld [vmem:[#allocation4 + $0x40] sm:$0xff]
  %v1076 = vld [vmem:[#allocation4 + $0x48] sm:$0xff]
  %v1077 = vld [vmem:[#allocation4 + $0x50] sm:$0xff]
  %v1078 = vld [vmem:[#allocation4 + $0x58] sm:$0xff]
  %v1079 = vld [vmem:[#allocation4 + $0x60] sm:$0xff]
  %v1080 = vld [vmem:[#allocation4 + $0x68] sm:$0xff]
  %v1081 = vld [vmem:[#allocation4 + $0x70] sm:$0xff]
  %v1082 = vld [vmem:[#allocation4 + $0x78] sm:$0xff]
  %v1083 = vld [vmem:[#allocation4 + $0x80] sm:$0xff]
  %v1084 = vld [vmem:[#allocation4 + $0x88] sm:$0xff]
  %v1085 = vld [vmem:[#allocation4 + $0x90] sm:$0xff]
  %v1086 = vld [vmem:[#allocation4 + $0x98] sm:$0xff]
  %v1087 = vld [vmem:[#allocation4 + $0xa0] sm:$0xff]
  %v1088 = vld [vmem:[#allocation4 + $0xa8] sm:$0xff]
  %v1089 = vld [vmem:[#allocation4 + $0xb0] sm:$0xff]
  %v1090 = vld [vmem:[#allocation4 + $0xb8] sm:$0xff]
  %v1091 = vld [vmem:[#allocation4 + $0xc0] sm:$0xff]
  %v1092 = vld [vmem:[#allocation4 + $0xc8] sm:$0xff]
  %v1093 = vld [vmem:[#allocation4 + $0xd0] sm:$0xff]
  %v1094 = vld [vmem:[#allocation4 + $0xd8] sm:$0xff]
  %v1095 = vld [vmem:[#allocation4 + $0xe0] sm:$0xff]
  %v1096 = vld [vmem:[#allocation4 + $0xe8] sm:$0xff]
  %v1097 = vld [vmem:[#allocation4 + $0xf0] sm:$0xff]
  %v1098 = vld [vmem:[#allocation4 + $0xf8] sm:$0xff]
  %v1099 = vld [vmem:[#allocation4 + $0x100] sm:$0xff]
  %v1100 = vld [vmem:[#allocation4 + $0x108] sm:$0xff]
  %v1101 = vld [vmem:[#allocation4 + $0x110] sm:$0xff]
  %v1102 = vld [vmem:[#allocation4 + $0x118] sm:$0xff]
  %v1103 = vld [vmem:[#allocation4 + $0x120] sm:$0xff]
  %v1104 = vld [vmem:[#allocation4 + $0x128] sm:$0xff]
  %v1105 = vld [vmem:[#allocation4 + $0x130] sm:$0xff]
  %v1106 = vld [vmem:[#allocation4 + $0x138] sm:$0xff]
  %v1107 = vld [vmem:[#allocation4 + $0x140] sm:$0xff]
  %v1108 = vld [vmem:[#allocation4 + $0x148] sm:$0xff]
  %v1109 = vld [vmem:[#allocation4 + $0x150] sm:$0xff]
  %v1110 = vld [vmem:[#allocation4 + $0x158] sm:$0xff]
  %v1111 = vld [vmem:[#allocation4 + $0x160] sm:$0xff]
  %v1112 = vld [vmem:[#allocation4 + $0x168] sm:$0xff]
  %v1113 = vld [vmem:[#allocation4 + $0x170] sm:$0xff]
  %v1114 = vld [vmem:[#allocation4 + $0x178] sm:$0xff]
  %v1115 = vld [vmem:[#allocation4 + $0x180] sm:$0xff]
  %v1116 = vld [vmem:[#allocation4 + $0x188] sm:$0xff]
  %v1117 = vld [vmem:[#allocation4 + $0x190] sm:$0xff]
  %v1118 = vld [vmem:[#allocation4 + $0x198] sm:$0xff]
  %v1119 = vld [vmem:[#allocation4 + $0x1a0] sm:$0xff]
  %v1120 = vld [vmem:[#allocation4 + $0x1a8] sm:$0xff]
  %v1121 = vld [vmem:[#allocation4 + $0x1b0] sm:$0xff]
  %v1122 = vld [vmem:[#allocation4 + $0x1b8] sm:$0xff]
  %v1123 = vld [vmem:[#allocation4 + $0x1c0] sm:$0xff]
  %v1124 = vld [vmem:[#allocation4 + $0x1c8] sm:$0xff]
  %v1125 = vld [vmem:[#allocation4 + $0x1d0] sm:$0xff]
  %v1126 = vld [vmem:[#allocation4 + $0x1d8] sm:$0xff]
  %v1127 = vld [vmem:[#allocation4 + $0x1e0] sm:$0xff]
  %v1128 = vld [vmem:[#allocation4 + $0x1e8] sm:$0xff]
  %v1129 = vld [vmem:[#allocation4 + $0x1f0] sm:$0xff]
  %v1130 = vld [vmem:[#allocation4 + $0x1f8] sm:$0xff]
  %1131 = vmatpush.msra.mxu0 %v1127
  %1132 = vmatpush.msra.mxu0 %v1123
  %1133 = vmatpush.msra.mxu0 %v1119
  %1134 = vmatpush.msra.mxu0 %v1115
  %1135 = vmatpush.msra.mxu0 %v1111
  %1136 = vmatpush.msra.mxu0 %v1107
  %1137 = vmatpush.msra.mxu0 %v1103
  %1138 = vmatpush.msra.mxu0 %v1099
  %1139 = vmatpush.msra.mxu0 %v1095
  %1140 = vmatpush.msra.mxu0 %v1091
  %1141 = vmatpush.msra.mxu0 %v1087
  %1142 = vmatpush.msra.mxu0 %v1083
  %1143 = vmatpush.msra.mxu0 %v1079
  %1144 = vmatpush.msra.mxu0 %v1075
  %1145 = vmatpush.msra.mxu0 %v1071
  %1146 = vmatpush.msra.mxu0 %v1067
  %1147 = vmatmul.f32.gmra.mxu0 %v1060
  %v1148 = vpop.f32.mrf.mxu0
  %v1149 = vadd.f32 0.0, %v1148
  %1150 = vdwg.mxu0
  %1151 = vmatpush.msra.mxu0 %v1128
  %1152 = vmatpush.msra.mxu0 %v1124
  %1153 = vmatpush.msra.mxu0 %v1120
  %1154 = vmatpush.msra.mxu0 %v1116
  %1155 = vmatpush.msra.mxu0 %v1112
  %1156 = vmatpush.msra.mxu0 %v1108
  %1157 = vmatpush.msra.mxu0 %v1104
  %1158 = vmatpush.msra.mxu0 %v1100
  %1159 = vmatpush.msra.mxu0 %v1096
  %1160 = vmatpush.msra.mxu0 %v1092
  %1161 = vmatpush.msra.mxu0 %v1088
  %1162 = vmatpush.msra.mxu0 %v1084
  %1163 = vmatpush.msra.mxu0 %v1080
  %1164 = vmatpush.msra.mxu0 %v1076
  %1165 = vmatpush.msra.mxu0 %v1072
  %1166 = vmatpush.msra.mxu0 %v1068
  %1167 = vmatmul.f32.gmra.mxu0 %v1060
  %v1168 = vpop.f32.mrf.mxu0
  %v1169 = vadd.f32 0.0, %v1168
  %1170 = vdwg.mxu0
  %1171 = vmatpush.msra.mxu0 %v1129
  %1172 = vmatpush.msra.mxu0 %v1125
  %1173 = vmatpush.msra.mxu0 %v1121
  %1174 = vmatpush.msra.mxu0 %v1117
  %1175 = vmatpush.msra.mxu0 %v1113
  %1176 = vmatpush.msra.mxu0 %v1109
  %1177 = vmatpush.msra.mxu0 %v1105
  %1178 = vmatpush.msra.mxu0 %v1101
  %1179 = vmatpush.msra.mxu0 %v1097
  %1180 = vmatpush.msra.mxu0 %v1093
  %1181 = vmatpush.msra.mxu0 %v1089
  %1182 = vmatpush.msra.mxu0 %v1085
  %1183 = vmatpush.msra.mxu0 %v1081
  %1184 = vmatpush.msra.mxu0 %v1077
  %1185 = vmatpush.msra.mxu0 %v1073
  %1186 = vmatpush.msra.mxu0 %v1069
  %1187 = vmatmul.f32.gmra.mxu0 %v1060
  %v1188 = vpop.f32.mrf.mxu0
  %v1189 = vadd.f32 0.0, %v1188
  %1190 = vdwg.mxu0
  %1191 = vmatpush.msra.mxu0 %v1130
  %1192 = vmatpush.msra.mxu0 %v1126
  %1193 = vmatpush.msra.mxu0 %v1122
  %1194 = vmatpush.msra.mxu0 %v1118
  %1195 = vmatpush.msra.mxu0 %v1114
  %1196 = vmatpush.msra.mxu0 %v1110
  %1197 = vmatpush.msra.mxu0 %v1106
  %1198 = vmatpush.msra.mxu0 %v1102
  %1199 = vmatpush.msra.mxu0 %v1098
  %1200 = vmatpush.msra.mxu0 %v1094
  %1201 = vmatpush.msra.mxu0 %v1090
  %1202 = vmatpush.msra.mxu0 %v1086
  %1203 = vmatpush.msra.mxu0 %v1082
  %1204 = vmatpush.msra.mxu0 %v1078
  %1205 = vmatpush.msra.mxu0 %v1074
  %1206 = vmatpush.msra.mxu0 %v1070
  %1207 = vmatmul.f32.gmra.mxu0 %v1060
  %v1208 = vpop.f32.mrf.mxu0
  %v1209 = vadd.f32 0.0, %v1208
  %1210 = vdwg.mxu0
  %v1211 = vadd.f32 %v1063, %v1149
  %v1212 = vadd.f32 %v1064, %v1169
  %v1213 = vadd.f32 %v1065, %v1189
  %v1214 = vadd.f32 %v1066, %v1209
  %v1215 = vxor.u32 %v1211, 2147483648
  %v1216 = vmul.f32 %v1215, 1.442695
  %v1217 = vpow.pop %v1216
  %v1218 = vadd.f32 %v1217, 1.0
  %v1219 = vrcp.pop %v1218
  %v1220 = vmul.f32 %v1218, %v1219
  %v1221 = vsub.f32 1.0, %v1220
  %v1222 = vmul.f32 %v1219, %v1221
  %v1223 = vadd.f32 %v1219, %v1222
  %vm1224 = vweird.f32 %v1218
  %vm1225 = vweird.f32 %v1219
  %vm1226 = vmor %vm1224, %vm1225
  %v1227 = vsel %vm1226, %v1219, %v1223
  %v1228 = vand.u32 2147483647, %v1218
  %vm1229 = vcmp.eq.f32.partialorder %v1228, 8.507059e+37
  %v1230 = vand.u32 %v1218, 2147483648
  %v1231 = vor.u32 1.1754944e-38, %v1230
  %v1232 = vsel %vm1229, %v1231, %v1227
  %v1233 = vmul.f32 1.0, %v1232
  %v1234 = vxor.u32 %v1212, 2147483648
  %v1235 = vmul.f32 %v1234, 1.442695
  %v1236 = vpow.pop %v1235
  %v1237 = vadd.f32 %v1236, 1.0
  %v1238 = vrcp.pop %v1237
  %v1239 = vmul.f32 %v1237, %v1238
  %v1240 = vsub.f32 1.0, %v1239
  %v1241 = vmul.f32 %v1238, %v1240
  %v1242 = vadd.f32 %v1238, %v1241
  %vm1243 = vweird.f32 %v1237
  %vm1244 = vweird.f32 %v1238
  %vm1245 = vmor %vm1243, %vm1244
  %v1246 = vsel %vm1245, %v1238, %v1242
  %v1247 = vand.u32 2147483647, %v1237
  %vm1248 = vcmp.eq.f32.partialorder %v1247, 8.507059e+37
  %v1249 = vand.u32 %v1237, 2147483648
  %v1250 = vor.u32 1.1754944e-38, %v1249
  %v1251 = vsel %vm1248, %v1250, %v1246
  %v1252 = vmul.f32 1.0, %v1251
  %v1253 = vtanh.pop %v1213
  %v1254 = vxor.u32 %v1214, 2147483648
  %v1255 = vmul.f32 %v1254, 1.442695
  %v1256 = vpow.pop %v1255
  %v1257 = vadd.f32 %v1256, 1.0
  %v1258 = vrcp.pop %v1257
  %v1259 = vmul.f32 %v1257, %v1258
  %v1260 = vsub.f32 1.0, %v1259
  %v1261 = vmul.f32 %v1258, %v1260
  %v1262 = vadd.f32 %v1258, %v1261
  %vm1263 = vweird.f32 %v1257
  %vm1264 = vweird.f32 %v1258
  %vm1265 = vmor %vm1263, %vm1264
  %v1266 = vsel %vm1265, %v1258, %v1262
  %v1267 = vand.u32 2147483647, %v1257
  %vm1268 = vcmp.eq.f32.partialorder %v1267, 8.507059e+37
  %v1269 = vand.u32 %v1257, 2147483648
  %v1270 = vor.u32 1.1754944e-38, %v1269
  %v1271 = vsel %vm1268, %v1270, %v1266
  %v1272 = vmul.f32 1.0, %v1271
  %v1273 = vmul.f32 %v1252, %v1061
  %v1274 = vmul.f32 %v1233, %v1253
  %v1275 = vadd.f32 %v1273, %v1274
  %v1276 = vtanh.pop %v1275
  %v1277 = vmul.f32 %v1272, %v1276
  %1278 = vst [vmem:[#allocation2] sm:$0xff] %v1277
  %1279 = vst [vmem:[#allocation3] sm:$0xff] %v1275
  %s1280 = scalar_lea.vmem %s4, 32
  %1281 = vst [vmem:[%s1280] sm:$0xff] %v1277
  %v1282 = vld [vmem:[#allocation2] sm:$0xff]
  %v1283 = vld [vmem:[#allocation3] sm:$0xff]
  %s1284 = scalar_lea.vmem %s0, 160
  %v1285 = vld [vmem:[%s1284] sm:$0xff]
  %v1286 = vld [vmem:[%s1284 + $0x8] sm:$0xff]
  %v1287 = vld [vmem:[%s1284 + $0x10] sm:$0xff]
  %v1288 = vld [vmem:[%s1284 + $0x18] sm:$0xff]
  %v1289 = vld [vmem:[#allocation4] sm:$0xff]
  %v1290 = vld [vmem:[#allocation4 + $0x8] sm:$0xff]
  %v1291 = vld [vmem:[#allocation4 + $0x10] sm:$0xff]
  %v1292 = vld [vmem:[#allocation4 + $0x18] sm:$0xff]
  %v1293 = vld [vmem:[#allocation4 + $0x20] sm:$0xff]
  %v1294 = vld [vmem:[#allocation4 + $0x28] sm:$0xff]
  %v1295 = vld [vmem:[#allocation4 + $0x30] sm:$0xff]
  %v1296 = vld [vmem:[#allocation4 + $0x38] sm:$0xff]
  %v1297 = vld [vmem:[#allocation4 + $0x40] sm:$0xff]
  %v1298 = vld [vmem:[#allocation4 + $0x48] sm:$0xff]
  %v1299 = vld [vmem:[#allocation4 + $0x50] sm:$0xff]
  %v1300 = vld [vmem:[#allocation4 + $0x58] sm:$0xff]
  %v1301 = vld [vmem:[#allocation4 + $0x60] sm:$0xff]
  %v1302 = vld [vmem:[#allocation4 + $0x68] sm:$0xff]
  %v1303 = vld [vmem:[#allocation4 + $0x70] sm:$0xff]
  %v1304 = vld [vmem:[#allocation4 + $0x78] sm:$0xff]
  %v1305 = vld [vmem:[#allocation4 + $0x80] sm:$0xff]
  %v1306 = vld [vmem:[#allocation4 + $0x88] sm:$0xff]
  %v1307 = vld [vmem:[#allocation4 + $0x90] sm:$0xff]
  %v1308 = vld [vmem:[#allocation4 + $0x98] sm:$0xff]
  %v1309 = vld [vmem:[#allocation4 + $0xa0] sm:$0xff]
  %v1310 = vld [vmem:[#allocation4 + $0xa8] sm:$0xff]
  %v1311 = vld [vmem:[#allocation4 + $0xb0] sm:$0xff]
  %v1312 = vld [vmem:[#allocation4 + $0xb8] sm:$0xff]
  %v1313 = vld [vmem:[#allocation4 + $0xc0] sm:$0xff]
  %v1314 = vld [vmem:[#allocation4 + $0xc8] sm:$0xff]
  %v1315 = vld [vmem:[#allocation4 + $0xd0] sm:$0xff]
  %v1316 = vld [vmem:[#allocation4 + $0xd8] sm:$0xff]
  %v1317 = vld [vmem:[#allocation4 + $0xe0] sm:$0xff]
  %v1318 = vld [vmem:[#allocation4 + $0xe8] sm:$0xff]
  %v1319 = vld [vmem:[#allocation4 + $0xf0] sm:$0xff]
  %v1320 = vld [vmem:[#allocation4 + $0xf8] sm:$0xff]
  %v1321 = vld [vmem:[#allocation4 + $0x100] sm:$0xff]
  %v1322 = vld [vmem:[#allocation4 + $0x108] sm:$0xff]
  %v1323 = vld [vmem:[#allocation4 + $0x110] sm:$0xff]
  %v1324 = vld [vmem:[#allocation4 + $0x118] sm:$0xff]
  %v1325 = vld [vmem:[#allocation4 + $0x120] sm:$0xff]
  %v1326 = vld [vmem:[#allocation4 + $0x128] sm:$0xff]
  %v1327 = vld [vmem:[#allocation4 + $0x130] sm:$0xff]
  %v1328 = vld [vmem:[#allocation4 + $0x138] sm:$0xff]
  %v1329 = vld [vmem:[#allocation4 + $0x140] sm:$0xff]
  %v1330 = vld [vmem:[#allocation4 + $0x148] sm:$0xff]
  %v1331 = vld [vmem:[#allocation4 + $0x150] sm:$0xff]
  %v1332 = vld [vmem:[#allocation4 + $0x158] sm:$0xff]
  %v1333 = vld [vmem:[#allocation4 + $0x160] sm:$0xff]
  %v1334 = vld [vmem:[#allocation4 + $0x168] sm:$0xff]
  %v1335 = vld [vmem:[#allocation4 + $0x170] sm:$0xff]
  %v1336 = vld [vmem:[#allocation4 + $0x178] sm:$0xff]
  %v1337 = vld [vmem:[#allocation4 + $0x180] sm:$0xff]
  %v1338 = vld [vmem:[#allocation4 + $0x188] sm:$0xff]
  %v1339 = vld [vmem:[#allocation4 + $0x190] sm:$0xff]
  %v1340 = vld [vmem:[#allocation4 + $0x198] sm:$0xff]
  %v1341 = vld [vmem:[#allocation4 + $0x1a0] sm:$0xff]
  %v1342 = vld [vmem:[#allocation4 + $0x1a8] sm:$0xff]
  %v1343 = vld [vmem:[#allocation4 + $0x1b0] sm:$0xff]
  %v1344 = vld [vmem:[#allocation4 + $0x1b8] sm:$0xff]
  %v1345 = vld [vmem:[#allocation4 + $0x1c0] sm:$0xff]
  %v1346 = vld [vmem:[#allocation4 + $0x1c8] sm:$0xff]
  %v1347 = vld [vmem:[#allocation4 + $0x1d0] sm:$0xff]
  %v1348 = vld [vmem:[#allocation4 + $0x1d8] sm:$0xff]
  %v1349 = vld [vmem:[#allocation4 + $0x1e0] sm:$0xff]
  %v1350 = vld [vmem:[#allocation4 + $0x1e8] sm:$0xff]
  %v1351 = vld [vmem:[#allocation4 + $0x1f0] sm:$0xff]
  %v1352 = vld [vmem:[#allocation4 + $0x1f8] sm:$0xff]
  %1353 = vmatpush.msra.mxu0 %v1349
  %1354 = vmatpush.msra.mxu0 %v1345
  %1355 = vmatpush.msra.mxu0 %v1341
  %1356 = vmatpush.msra.mxu0 %v1337
  %1357 = vmatpush.msra.mxu0 %v1333
  %1358 = vmatpush.msra.mxu0 %v1329
  %1359 = vmatpush.msra.mxu0 %v1325
  %1360 = vmatpush.msra.mxu0 %v1321
  %1361 = vmatpush.msra.mxu0 %v1317
  %1362 = vmatpush.msra.mxu0 %v1313
  %1363 = vmatpush.msra.mxu0 %v1309
  %1364 = vmatpush.msra.mxu0 %v1305
  %1365 = vmatpush.msra.mxu0 %v1301
  %1366 = vmatpush.msra.mxu0 %v1297
  %1367 = vmatpush.msra.mxu0 %v1293
  %1368 = vmatpush.msra.mxu0 %v1289
  %1369 = vmatmul.f32.gmra.mxu0 %v1282
  %v1370 = vpop.f32.mrf.mxu0
  %v1371 = vadd.f32 0.0, %v1370
  %1372 = vdwg.mxu0
  %1373 = vmatpush.msra.mxu0 %v1350
  %1374 = vmatpush.msra.mxu0 %v1346
  %1375 = vmatpush.msra.mxu0 %v1342
  %1376 = vmatpush.msra.mxu0 %v1338
  %1377 = vmatpush.msra.mxu0 %v1334
  %1378 = vmatpush.msra.mxu0 %v1330
  %1379 = vmatpush.msra.mxu0 %v1326
  %1380 = vmatpush.msra.mxu0 %v1322
  %1381 = vmatpush.msra.mxu0 %v1318
  %1382 = vmatpush.msra.mxu0 %v1314
  %1383 = vmatpush.msra.mxu0 %v1310
  %1384 = vmatpush.msra.mxu0 %v1306
  %1385 = vmatpush.msra.mxu0 %v1302
  %1386 = vmatpush.msra.mxu0 %v1298
  %1387 = vmatpush.msra.mxu0 %v1294
  %1388 = vmatpush.msra.mxu0 %v1290
  %1389 = vmatmul.f32.gmra.mxu0 %v1282
  %v1390 = vpop.f32.mrf.mxu0
  %v1391 = vadd.f32 0.0, %v1390
  %1392 = vdwg.mxu0
  %1393 = vmatpush.msra.mxu0 %v1351
  %1394 = vmatpush.msra.mxu0 %v1347
  %1395 = vmatpush.msra.mxu0 %v1343
  %1396 = vmatpush.msra.mxu0 %v1339
  %1397 = vmatpush.msra.mxu0 %v1335
  %1398 = vmatpush.msra.mxu0 %v1331
  %1399 = vmatpush.msra.mxu0 %v1327
  %1400 = vmatpush.msra.mxu0 %v1323
  %1401 = vmatpush.msra.mxu0 %v1319
  %1402 = vmatpush.msra.mxu0 %v1315
  %1403 = vmatpush.msra.mxu0 %v1311
  %1404 = vmatpush.msra.mxu0 %v1307
  %1405 = vmatpush.msra.mxu0 %v1303
  %1406 = vmatpush.msra.mxu0 %v1299
  %1407 = vmatpush.msra.mxu0 %v1295
  %1408 = vmatpush.msra.mxu0 %v1291
  %1409 = vmatmul.f32.gmra.mxu0 %v1282
  %v1410 = vpop.f32.mrf.mxu0
  %v1411 = vadd.f32 0.0, %v1410
  %1412 = vdwg.mxu0
  %1413 = vmatpush.msra.mxu0 %v1352
  %1414 = vmatpush.msra.mxu0 %v1348
  %1415 = vmatpush.msra.mxu0 %v1344
  %1416 = vmatpush.msra.mxu0 %v1340
  %1417 = vmatpush.msra.mxu0 %v1336
  %1418 = vmatpush.msra.mxu0 %v1332
  %1419 = vmatpush.msra.mxu0 %v1328
  %1420 = vmatpush.msra.mxu0 %v1324
  %1421 = vmatpush.msra.mxu0 %v1320
  %1422 = vmatpush.msra.mxu0 %v1316
  %1423 = vmatpush.msra.mxu0 %v1312
  %1424 = vmatpush.msra.mxu0 %v1308
  %1425 = vmatpush.msra.mxu0 %v1304
  %1426 = vmatpush.msra.mxu0 %v1300
  %1427 = vmatpush.msra.mxu0 %v1296
  %1428 = vmatpush.msra.mxu0 %v1292
  %1429 = vmatmul.f32.gmra.mxu0 %v1282
  %v1430 = vpop.f32.mrf.mxu0
  %v1431 = vadd.f32 0.0, %v1430
  %1432 = vdwg.mxu0
  %v1433 = vadd.f32 %v1285, %v1371
  %v1434 = vadd.f32 %v1286, %v1391
  %v1435 = vadd.f32 %v1287, %v1411
  %v1436 = vadd.f32 %v1288, %v1431
  %v1437 = vxor.u32 %v1433, 2147483648
  %v1438 = vmul.f32 %v1437, 1.442695
  %v1439 = vpow.pop %v1438
  %v1440 = vadd.f32 %v1439, 1.0
  %v1441 = vrcp.pop %v1440
  %v1442 = vmul.f32 %v1440, %v1441
  %v1443 = vsub.f32 1.0, %v1442
  %v1444 = vmul.f32 %v1441, %v1443
  %v1445 = vadd.f32 %v1441, %v1444
  %vm1446 = vweird.f32 %v1440
  %vm1447 = vweird.f32 %v1441
  %vm1448 = vmor %vm1446, %vm1447
  %v1449 = vsel %vm1448, %v1441, %v1445
  %v1450 = vand.u32 2147483647, %v1440
  %vm1451 = vcmp.eq.f32.partialorder %v1450, 8.507059e+37
  %v1452 = vand.u32 %v1440, 2147483648
  %v1453 = vor.u32 1.1754944e-38, %v1452
  %v1454 = vsel %vm1451, %v1453, %v1449
  %v1455 = vmul.f32 1.0, %v1454
  %v1456 = vxor.u32 %v1434, 2147483648
  %v1457 = vmul.f32 %v1456, 1.442695
  %v1458 = vpow.pop %v1457
  %v1459 = vadd.f32 %v1458, 1.0
  %v1460 = vrcp.pop %v1459
  %v1461 = vmul.f32 %v1459, %v1460
  %v1462 = vsub.f32 1.0, %v1461
  %v1463 = vmul.f32 %v1460, %v1462
  %v1464 = vadd.f32 %v1460, %v1463
  %vm1465 = vweird.f32 %v1459
  %vm1466 = vweird.f32 %v1460
  %vm1467 = vmor %vm1465, %vm1466
  %v1468 = vsel %vm1467, %v1460, %v1464
  %v1469 = vand.u32 2147483647, %v1459
  %vm1470 = vcmp.eq.f32.partialorder %v1469, 8.507059e+37
  %v1471 = vand.u32 %v1459, 2147483648
  %v1472 = vor.u32 1.1754944e-38, %v1471
  %v1473 = vsel %vm1470, %v1472, %v1468
  %v1474 = vmul.f32 1.0, %v1473
  %v1475 = vtanh.pop %v1435
  %v1476 = vxor.u32 %v1436, 2147483648
  %v1477 = vmul.f32 %v1476, 1.442695
  %v1478 = vpow.pop %v1477
  %v1479 = vadd.f32 %v1478, 1.0
  %v1480 = vrcp.pop %v1479
  %v1481 = vmul.f32 %v1479, %v1480
  %v1482 = vsub.f32 1.0, %v1481
  %v1483 = vmul.f32 %v1480, %v1482
  %v1484 = vadd.f32 %v1480, %v1483
  %vm1485 = vweird.f32 %v1479
  %vm1486 = vweird.f32 %v1480
  %vm1487 = vmor %vm1485, %vm1486
  %v1488 = vsel %vm1487, %v1480, %v1484
  %v1489 = vand.u32 2147483647, %v1479
  %vm1490 = vcmp.eq.f32.partialorder %v1489, 8.507059e+37
  %v1491 = vand.u32 %v1479, 2147483648
  %v1492 = vor.u32 1.1754944e-38, %v1491
  %v1493 = vsel %vm1490, %v1492, %v1488
  %v1494 = vmul.f32 1.0, %v1493
  %v1495 = vmul.f32 %v1474, %v1283
  %v1496 = vmul.f32 %v1455, %v1475
  %v1497 = vadd.f32 %v1495, %v1496
  %v1498 = vtanh.pop %v1497
  %v1499 = vmul.f32 %v1494, %v1498
  %1500 = vst [vmem:[#allocation2] sm:$0xff] %v1499
  %1501 = vst [vmem:[#allocation3] sm:$0xff] %v1497
  %s1502 = scalar_lea.vmem %s4, 40
  %1503 = vst [vmem:[%s1502] sm:$0xff] %v1499
  %v1504 = vld [vmem:[#allocation2] sm:$0xff]
  %v1505 = vld [vmem:[#allocation3] sm:$0xff]
  %s1506 = scalar_lea.vmem %s0, 192
  %v1507 = vld [vmem:[%s1506] sm:$0xff]
  %v1508 = vld [vmem:[%s1506 + $0x8] sm:$0xff]
  %v1509 = vld [vmem:[%s1506 + $0x10] sm:$0xff]
  %v1510 = vld [vmem:[%s1506 + $0x18] sm:$0xff]
  %v1511 = vld [vmem:[#allocation4] sm:$0xff]
  %v1512 = vld [vmem:[#allocation4 + $0x8] sm:$0xff]
  %v1513 = vld [vmem:[#allocation4 + $0x10] sm:$0xff]
  %v1514 = vld [vmem:[#allocation4 + $0x18] sm:$0xff]
  %v1515 = vld [vmem:[#allocation4 + $0x20] sm:$0xff]
  %v1516 = vld [vmem:[#allocation4 + $0x28] sm:$0xff]
  %v1517 = vld [vmem:[#allocation4 + $0x30] sm:$0xff]
  %v1518 = vld [vmem:[#allocation4 + $0x38] sm:$0xff]
  %v1519 = vld [vmem:[#allocation4 + $0x40] sm:$0xff]
  %v1520 = vld [vmem:[#allocation4 + $0x48] sm:$0xff]
  %v1521 = vld [vmem:[#allocation4 + $0x50] sm:$0xff]
  %v1522 = vld [vmem:[#allocation4 + $0x58] sm:$0xff]
  %v1523 = vld [vmem:[#allocation4 + $0x60] sm:$0xff]
  %v1524 = vld [vmem:[#allocation4 + $0x68] sm:$0xff]
  %v1525 = vld [vmem:[#allocation4 + $0x70] sm:$0xff]
  %v1526 = vld [vmem:[#allocation4 + $0x78] sm:$0xff]
  %v1527 = vld [vmem:[#allocation4 + $0x80] sm:$0xff]
  %v1528 = vld [vmem:[#allocation4 + $0x88] sm:$0xff]
  %v1529 = vld [vmem:[#allocation4 + $0x90] sm:$0xff]
  %v1530 = vld [vmem:[#allocation4 + $0x98] sm:$0xff]
  %v1531 = vld [vmem:[#allocation4 + $0xa0] sm:$0xff]
  %v1532 = vld [vmem:[#allocation4 + $0xa8] sm:$0xff]
  %v1533 = vld [vmem:[#allocation4 + $0xb0] sm:$0xff]
  %v1534 = vld [vmem:[#allocation4 + $0xb8] sm:$0xff]
  %v1535 = vld [vmem:[#allocation4 + $0xc0] sm:$0xff]
  %v1536 = vld [vmem:[#allocation4 + $0xc8] sm:$0xff]
  %v1537 = vld [vmem:[#allocation4 + $0xd0] sm:$0xff]
  %v1538 = vld [vmem:[#allocation4 + $0xd8] sm:$0xff]
  %v1539 = vld [vmem:[#allocation4 + $0xe0] sm:$0xff]
  %v1540 = vld [vmem:[#allocation4 + $0xe8] sm:$0xff]
  %v1541 = vld [vmem:[#allocation4 + $0xf0] sm:$0xff]
  %v1542 = vld [vmem:[#allocation4 + $0xf8] sm:$0xff]
  %v1543 = vld [vmem:[#allocation4 + $0x100] sm:$0xff]
  %v1544 = vld [vmem:[#allocation4 + $0x108] sm:$0xff]
  %v1545 = vld [vmem:[#allocation4 + $0x110] sm:$0xff]
  %v1546 = vld [vmem:[#allocation4 + $0x118] sm:$0xff]
  %v1547 = vld [vmem:[#allocation4 + $0x120] sm:$0xff]
  %v1548 = vld [vmem:[#allocation4 + $0x128] sm:$0xff]
  %v1549 = vld [vmem:[#allocation4 + $0x130] sm:$0xff]
  %v1550 = vld [vmem:[#allocation4 + $0x138] sm:$0xff]
  %v1551 = vld [vmem:[#allocation4 + $0x140] sm:$0xff]
  %v1552 = vld [vmem:[#allocation4 + $0x148] sm:$0xff]
  %v1553 = vld [vmem:[#allocation4 + $0x150] sm:$0xff]
  %v1554 = vld [vmem:[#allocation4 + $0x158] sm:$0xff]
  %v1555 = vld [vmem:[#allocation4 + $0x160] sm:$0xff]
  %v1556 = vld [vmem:[#allocation4 + $0x168] sm:$0xff]
  %v1557 = vld [vmem:[#allocation4 + $0x170] sm:$0xff]
  %v1558 = vld [vmem:[#allocation4 + $0x178] sm:$0xff]
  %v1559 = vld [vmem:[#allocation4 + $0x180] sm:$0xff]
  %v1560 = vld [vmem:[#allocation4 + $0x188] sm:$0xff]
  %v1561 = vld [vmem:[#allocation4 + $0x190] sm:$0xff]
  %v1562 = vld [vmem:[#allocation4 + $0x198] sm:$0xff]
  %v1563 = vld [vmem:[#allocation4 + $0x1a0] sm:$0xff]
  %v1564 = vld [vmem:[#allocation4 + $0x1a8] sm:$0xff]
  %v1565 = vld [vmem:[#allocation4 + $0x1b0] sm:$0xff]
  %v1566 = vld [vmem:[#allocation4 + $0x1b8] sm:$0xff]
  %v1567 = vld [vmem:[#allocation4 + $0x1c0] sm:$0xff]
  %v1568 = vld [vmem:[#allocation4 + $0x1c8] sm:$0xff]
  %v1569 = vld [vmem:[#allocation4 + $0x1d0] sm:$0xff]
  %v1570 = vld [vmem:[#allocation4 + $0x1d8] sm:$0xff]
  %v1571 = vld [vmem:[#allocation4 + $0x1e0] sm:$0xff]
  %v1572 = vld [vmem:[#allocation4 + $0x1e8] sm:$0xff]
  %v1573 = vld [vmem:[#allocation4 + $0x1f0] sm:$0xff]
  %v1574 = vld [vmem:[#allocation4 + $0x1f8] sm:$0xff]
  %1575 = vmatpush.msra.mxu0 %v1571
  %1576 = vmatpush.msra.mxu0 %v1567
  %1577 = vmatpush.msra.mxu0 %v1563
  %1578 = vmatpush.msra.mxu0 %v1559
  %1579 = vmatpush.msra.mxu0 %v1555
  %1580 = vmatpush.msra.mxu0 %v1551
  %1581 = vmatpush.msra.mxu0 %v1547
  %1582 = vmatpush.msra.mxu0 %v1543
  %1583 = vmatpush.msra.mxu0 %v1539
  %1584 = vmatpush.msra.mxu0 %v1535
  %1585 = vmatpush.msra.mxu0 %v1531
  %1586 = vmatpush.msra.mxu0 %v1527
  %1587 = vmatpush.msra.mxu0 %v1523
  %1588 = vmatpush.msra.mxu0 %v1519
  %1589 = vmatpush.msra.mxu0 %v1515
  %1590 = vmatpush.msra.mxu0 %v1511
  %1591 = vmatmul.f32.gmra.mxu0 %v1504
  %v1592 = vpop.f32.mrf.mxu0
  %v1593 = vadd.f32 0.0, %v1592
  %1594 = vdwg.mxu0
  %1595 = vmatpush.msra.mxu0 %v1572
  %1596 = vmatpush.msra.mxu0 %v1568
  %1597 = vmatpush.msra.mxu0 %v1564
  %1598 = vmatpush.msra.mxu0 %v1560
  %1599 = vmatpush.msra.mxu0 %v1556
  %1600 = vmatpush.msra.mxu0 %v1552
  %1601 = vmatpush.msra.mxu0 %v1548
  %1602 = vmatpush.msra.mxu0 %v1544
  %1603 = vmatpush.msra.mxu0 %v1540
  %1604 = vmatpush.msra.mxu0 %v1536
  %1605 = vmatpush.msra.mxu0 %v1532
  %1606 = vmatpush.msra.mxu0 %v1528
  %1607 = vmatpush.msra.mxu0 %v1524
  %1608 = vmatpush.msra.mxu0 %v1520
  %1609 = vmatpush.msra.mxu0 %v1516
  %1610 = vmatpush.msra.mxu0 %v1512
  %1611 = vmatmul.f32.gmra.mxu0 %v1504
  %v1612 = vpop.f32.mrf.mxu0
  %v1613 = vadd.f32 0.0, %v1612
  %1614 = vdwg.mxu0
  %1615 = vmatpush.msra.mxu0 %v1573
  %1616 = vmatpush.msra.mxu0 %v1569
  %1617 = vmatpush.msra.mxu0 %v1565
  %1618 = vmatpush.msra.mxu0 %v1561
  %1619 = vmatpush.msra.mxu0 %v1557
  %1620 = vmatpush.msra.mxu0 %v1553
  %1621 = vmatpush.msra.mxu0 %v1549
  %1622 = vmatpush.msra.mxu0 %v1545
  %1623 = vmatpush.msra.mxu0 %v1541
  %1624 = vmatpush.msra.mxu0 %v1537
  %1625 = vmatpush.msra.mxu0 %v1533
  %1626 = vmatpush.msra.mxu0 %v1529
  %1627 = vmatpush.msra.mxu0 %v1525
  %1628 = vmatpush.msra.mxu0 %v1521
  %1629 = vmatpush.msra.mxu0 %v1517
  %1630 = vmatpush.msra.mxu0 %v1513
  %1631 = vmatmul.f32.gmra.mxu0 %v1504
  %v1632 = vpop.f32.mrf.mxu0
  %v1633 = vadd.f32 0.0, %v1632
  %1634 = vdwg.mxu0
  %1635 = vmatpush.msra.mxu0 %v1574
  %1636 = vmatpush.msra.mxu0 %v1570
  %1637 = vmatpush.msra.mxu0 %v1566
  %1638 = vmatpush.msra.mxu0 %v1562
  %1639 = vmatpush.msra.mxu0 %v1558
  %1640 = vmatpush.msra.mxu0 %v1554
  %1641 = vmatpush.msra.mxu0 %v1550
  %1642 = vmatpush.msra.mxu0 %v1546
  %1643 = vmatpush.msra.mxu0 %v1542
  %1644 = vmatpush.msra.mxu0 %v1538
  %1645 = vmatpush.msra.mxu0 %v1534
  %1646 = vmatpush.msra.mxu0 %v1530
  %1647 = vmatpush.msra.mxu0 %v1526
  %1648 = vmatpush.msra.mxu0 %v1522
  %1649 = vmatpush.msra.mxu0 %v1518
  %1650 = vmatpush.msra.mxu0 %v1514
  %1651 = vmatmul.f32.gmra.mxu0 %v1504
  %v1652 = vpop.f32.mrf.mxu0
  %v1653 = vadd.f32 0.0, %v1652
  %1654 = vdwg.mxu0
  %v1655 = vadd.f32 %v1507, %v1593
  %v1656 = vadd.f32 %v1508, %v1613
  %v1657 = vadd.f32 %v1509, %v1633
  %v1658 = vadd.f32 %v1510, %v1653
  %v1659 = vxor.u32 %v1655, 2147483648
  %v1660 = vmul.f32 %v1659, 1.442695
  %v1661 = vpow.pop %v1660
  %v1662 = vadd.f32 %v1661, 1.0
  %v1663 = vrcp.pop %v1662
  %v1664 = vmul.f32 %v1662, %v1663
  %v1665 = vsub.f32 1.0, %v1664
  %v1666 = vmul.f32 %v1663, %v1665
  %v1667 = vadd.f32 %v1663, %v1666
  %vm1668 = vweird.f32 %v1662
  %vm1669 = vweird.f32 %v1663
  %vm1670 = vmor %vm1668, %vm1669
  %v1671 = vsel %vm1670, %v1663, %v1667
  %v1672 = vand.u32 2147483647, %v1662
  %vm1673 = vcmp.eq.f32.partialorder %v1672, 8.507059e+37
  %v1674 = vand.u32 %v1662, 2147483648
  %v1675 = vor.u32 1.1754944e-38, %v1674
  %v1676 = vsel %vm1673, %v1675, %v1671
  %v1677 = vmul.f32 1.0, %v1676
  %v1678 = vxor.u32 %v1656, 2147483648
  %v1679 = vmul.f32 %v1678, 1.442695
  %v1680 = vpow.pop %v1679
  %v1681 = vadd.f32 %v1680, 1.0
  %v1682 = vrcp.pop %v1681
  %v1683 = vmul.f32 %v1681, %v1682
  %v1684 = vsub.f32 1.0, %v1683
  %v1685 = vmul.f32 %v1682, %v1684
  %v1686 = vadd.f32 %v1682, %v1685
  %vm1687 = vweird.f32 %v1681
  %vm1688 = vweird.f32 %v1682
  %vm1689 = vmor %vm1687, %vm1688
  %v1690 = vsel %vm1689, %v1682, %v1686
  %v1691 = vand.u32 2147483647, %v1681
  %vm1692 = vcmp.eq.f32.partialorder %v1691, 8.507059e+37
  %v1693 = vand.u32 %v1681, 2147483648
  %v1694 = vor.u32 1.1754944e-38, %v1693
  %v1695 = vsel %vm1692, %v1694, %v1690
  %v1696 = vmul.f32 1.0, %v1695
  %v1697 = vtanh.pop %v1657
  %v1698 = vxor.u32 %v1658, 2147483648
  %v1699 = vmul.f32 %v1698, 1.442695
  %v1700 = vpow.pop %v1699
  %v1701 = vadd.f32 %v1700, 1.0
  %v1702 = vrcp.pop %v1701
  %v1703 = vmul.f32 %v1701, %v1702
  %v1704 = vsub.f32 1.0, %v1703
  %v1705 = vmul.f32 %v1702, %v1704
  %v1706 = vadd.f32 %v1702, %v1705
  %vm1707 = vweird.f32 %v1701
  %vm1708 = vweird.f32 %v1702
  %vm1709 = vmor %vm1707, %vm1708
  %v1710 = vsel %vm1709, %v1702, %v1706
  %v1711 = vand.u32 2147483647, %v1701
  %vm1712 = vcmp.eq.f32.partialorder %v1711, 8.507059e+37
  %v1713 = vand.u32 %v1701, 2147483648
  %v1714 = vor.u32 1.1754944e-38, %v1713
  %v1715 = vsel %vm1712, %v1714, %v1710
  %v1716 = vmul.f32 1.0, %v1715
  %v1717 = vmul.f32 %v1696, %v1505
  %v1718 = vmul.f32 %v1677, %v1697
  %v1719 = vadd.f32 %v1717, %v1718
  %v1720 = vtanh.pop %v1719
  %v1721 = vmul.f32 %v1716, %v1720
  %1722 = vst [vmem:[#allocation2] sm:$0xff] %v1721
  %1723 = vst [vmem:[#allocation3] sm:$0xff] %v1719
  %s1724 = scalar_lea.vmem %s4, 48
  %1725 = vst [vmem:[%s1724] sm:$0xff] %v1721
  %v1726 = vld [vmem:[#allocation2] sm:$0xff]
  %v1727 = vld [vmem:[#allocation3] sm:$0xff]
  %s1728 = scalar_lea.vmem %s0, 224
  %v1729 = vld [vmem:[%s1728] sm:$0xff]
  %v1730 = vld [vmem:[%s1728 + $0x8] sm:$0xff]
  %v1731 = vld [vmem:[%s1728 + $0x10] sm:$0xff]
  %v1732 = vld [vmem:[%s1728 + $0x18] sm:$0xff]
  %v1733 = vld [vmem:[#allocation4] sm:$0xff]
  %v1734 = vld [vmem:[#allocation4 + $0x8] sm:$0xff]
  %v1735 = vld [vmem:[#allocation4 + $0x10] sm:$0xff]
  %v1736 = vld [vmem:[#allocation4 + $0x18] sm:$0xff]
  %v1737 = vld [vmem:[#allocation4 + $0x20] sm:$0xff]
  %v1738 = vld [vmem:[#allocation4 + $0x28] sm:$0xff]
  %v1739 = vld [vmem:[#allocation4 + $0x30] sm:$0xff]
  %v1740 = vld [vmem:[#allocation4 + $0x38] sm:$0xff]
  %v1741 = vld [vmem:[#allocation4 + $0x40] sm:$0xff]
  %v1742 = vld [vmem:[#allocation4 + $0x48] sm:$0xff]
  %v1743 = vld [vmem:[#allocation4 + $0x50] sm:$0xff]
  %v1744 = vld [vmem:[#allocation4 + $0x58] sm:$0xff]
  %v1745 = vld [vmem:[#allocation4 + $0x60] sm:$0xff]
  %v1746 = vld [vmem:[#allocation4 + $0x68] sm:$0xff]
  %v1747 = vld [vmem:[#allocation4 + $0x70] sm:$0xff]
  %v1748 = vld [vmem:[#allocation4 + $0x78] sm:$0xff]
  %v1749 = vld [vmem:[#allocation4 + $0x80] sm:$0xff]
  %v1750 = vld [vmem:[#allocation4 + $0x88] sm:$0xff]
  %v1751 = vld [vmem:[#allocation4 + $0x90] sm:$0xff]
  %v1752 = vld [vmem:[#allocation4 + $0x98] sm:$0xff]
  %v1753 = vld [vmem:[#allocation4 + $0xa0] sm:$0xff]
  %v1754 = vld [vmem:[#allocation4 + $0xa8] sm:$0xff]
  %v1755 = vld [vmem:[#allocation4 + $0xb0] sm:$0xff]
  %v1756 = vld [vmem:[#allocation4 + $0xb8] sm:$0xff]
  %v1757 = vld [vmem:[#allocation4 + $0xc0] sm:$0xff]
  %v1758 = vld [vmem:[#allocation4 + $0xc8] sm:$0xff]
  %v1759 = vld [vmem:[#allocation4 + $0xd0] sm:$0xff]
  %v1760 = vld [vmem:[#allocation4 + $0xd8] sm:$0xff]
  %v1761 = vld [vmem:[#allocation4 + $0xe0] sm:$0xff]
  %v1762 = vld [vmem:[#allocation4 + $0xe8] sm:$0xff]
  %v1763 = vld [vmem:[#allocation4 + $0xf0] sm:$0xff]
  %v1764 = vld [vmem:[#allocation4 + $0xf8] sm:$0xff]
  %v1765 = vld [vmem:[#allocation4 + $0x100] sm:$0xff]
  %v1766 = vld [vmem:[#allocation4 + $0x108] sm:$0xff]
  %v1767 = vld [vmem:[#allocation4 + $0x110] sm:$0xff]
  %v1768 = vld [vmem:[#allocation4 + $0x118] sm:$0xff]
  %v1769 = vld [vmem:[#allocation4 + $0x120] sm:$0xff]
  %v1770 = vld [vmem:[#allocation4 + $0x128] sm:$0xff]
  %v1771 = vld [vmem:[#allocation4 + $0x130] sm:$0xff]
  %v1772 = vld [vmem:[#allocation4 + $0x138] sm:$0xff]
  %v1773 = vld [vmem:[#allocation4 + $0x140] sm:$0xff]
  %v1774 = vld [vmem:[#allocation4 + $0x148] sm:$0xff]
  %v1775 = vld [vmem:[#allocation4 + $0x150] sm:$0xff]
  %v1776 = vld [vmem:[#allocation4 + $0x158] sm:$0xff]
  %v1777 = vld [vmem:[#allocation4 + $0x160] sm:$0xff]
  %v1778 = vld [vmem:[#allocation4 + $0x168] sm:$0xff]
  %v1779 = vld [vmem:[#allocation4 + $0x170] sm:$0xff]
  %v1780 = vld [vmem:[#allocation4 + $0x178] sm:$0xff]
  %v1781 = vld [vmem:[#allocation4 + $0x180] sm:$0xff]
  %v1782 = vld [vmem:[#allocation4 + $0x188] sm:$0xff]
  %v1783 = vld [vmem:[#allocation4 + $0x190] sm:$0xff]
  %v1784 = vld [vmem:[#allocation4 + $0x198] sm:$0xff]
  %v1785 = vld [vmem:[#allocation4 + $0x1a0] sm:$0xff]
  %v1786 = vld [vmem:[#allocation4 + $0x1a8] sm:$0xff]
  %v1787 = vld [vmem:[#allocation4 + $0x1b0] sm:$0xff]
  %v1788 = vld [vmem:[#allocation4 + $0x1b8] sm:$0xff]
  %v1789 = vld [vmem:[#allocation4 + $0x1c0] sm:$0xff]
  %v1790 = vld [vmem:[#allocation4 + $0x1c8] sm:$0xff]
  %v1791 = vld [vmem:[#allocation4 + $0x1d0] sm:$0xff]
  %v1792 = vld [vmem:[#allocation4 + $0x1d8] sm:$0xff]
  %v1793 = vld [vmem:[#allocation4 + $0x1e0] sm:$0xff]
  %v1794 = vld [vmem:[#allocation4 + $0x1e8] sm:$0xff]
  %v1795 = vld [vmem:[#allocation4 + $0x1f0] sm:$0xff]
  %v1796 = vld [vmem:[#allocation4 + $0x1f8] sm:$0xff]
  %1797 = vmatpush.msra.mxu0 %v1793
  %1798 = vmatpush.msra.mxu0 %v1789
  %1799 = vmatpush.msra.mxu0 %v1785
  %1800 = vmatpush.msra.mxu0 %v1781
  %1801 = vmatpush.msra.mxu0 %v1777
  %1802 = vmatpush.msra.mxu0 %v1773
  %1803 = vmatpush.msra.mxu0 %v1769
  %1804 = vmatpush.msra.mxu0 %v1765
  %1805 = vmatpush.msra.mxu0 %v1761
  %1806 = vmatpush.msra.mxu0 %v1757
  %1807 = vmatpush.msra.mxu0 %v1753
  %1808 = vmatpush.msra.mxu0 %v1749
  %1809 = vmatpush.msra.mxu0 %v1745
  %1810 = vmatpush.msra.mxu0 %v1741
  %1811 = vmatpush.msra.mxu0 %v1737
  %1812 = vmatpush.msra.mxu0 %v1733
  %1813 = vmatmul.f32.gmra.mxu0 %v1726
  %v1814 = vpop.f32.mrf.mxu0
  %v1815 = vadd.f32 0.0, %v1814
  %1816 = vdwg.mxu0
  %1817 = vmatpush.msra.mxu0 %v1794
  %1818 = vmatpush.msra.mxu0 %v1790
  %1819 = vmatpush.msra.mxu0 %v1786
  %1820 = vmatpush.msra.mxu0 %v1782
  %1821 = vmatpush.msra.mxu0 %v1778
  %1822 = vmatpush.msra.mxu0 %v1774
  %1823 = vmatpush.msra.mxu0 %v1770
  %1824 = vmatpush.msra.mxu0 %v1766
  %1825 = vmatpush.msra.mxu0 %v1762
  %1826 = vmatpush.msra.mxu0 %v1758
  %1827 = vmatpush.msra.mxu0 %v1754
  %1828 = vmatpush.msra.mxu0 %v1750
  %1829 = vmatpush.msra.mxu0 %v1746
  %1830 = vmatpush.msra.mxu0 %v1742
  %1831 = vmatpush.msra.mxu0 %v1738
  %1832 = vmatpush.msra.mxu0 %v1734
  %1833 = vmatmul.f32.gmra.mxu0 %v1726
  %v1834 = vpop.f32.mrf.mxu0
  %v1835 = vadd.f32 0.0, %v1834
  %1836 = vdwg.mxu0
  %1837 = vmatpush.msra.mxu0 %v1795
  %1838 = vmatpush.msra.mxu0 %v1791
  %1839 = vmatpush.msra.mxu0 %v1787
  %1840 = vmatpush.msra.mxu0 %v1783
  %1841 = vmatpush.msra.mxu0 %v1779
  %1842 = vmatpush.msra.mxu0 %v1775
  %1843 = vmatpush.msra.mxu0 %v1771
  %1844 = vmatpush.msra.mxu0 %v1767
  %1845 = vmatpush.msra.mxu0 %v1763
  %1846 = vmatpush.msra.mxu0 %v1759
  %1847 = vmatpush.msra.mxu0 %v1755
  %1848 = vmatpush.msra.mxu0 %v1751
  %1849 = vmatpush.msra.mxu0 %v1747
  %1850 = vmatpush.msra.mxu0 %v1743
  %1851 = vmatpush.msra.mxu0 %v1739
  %1852 = vmatpush.msra.mxu0 %v1735
  %1853 = vmatmul.f32.gmra.mxu0 %v1726
  %v1854 = vpop.f32.mrf.mxu0
  %v1855 = vadd.f32 0.0, %v1854
  %1856 = vdwg.mxu0
  %1857 = vmatpush.msra.mxu0 %v1796
  %1858 = vmatpush.msra.mxu0 %v1792
  %1859 = vmatpush.msra.mxu0 %v1788
  %1860 = vmatpush.msra.mxu0 %v1784
  %1861 = vmatpush.msra.mxu0 %v1780
  %1862 = vmatpush.msra.mxu0 %v1776
  %1863 = vmatpush.msra.mxu0 %v1772
  %1864 = vmatpush.msra.mxu0 %v1768
  %1865 = vmatpush.msra.mxu0 %v1764
  %1866 = vmatpush.msra.mxu0 %v1760
  %1867 = vmatpush.msra.mxu0 %v1756
  %1868 = vmatpush.msra.mxu0 %v1752
  %1869 = vmatpush.msra.mxu0 %v1748
  %1870 = vmatpush.msra.mxu0 %v1744
  %1871 = vmatpush.msra.mxu0 %v1740
  %1872 = vmatpush.msra.mxu0 %v1736
  %1873 = vmatmul.f32.gmra.mxu0 %v1726
  %v1874 = vpop.f32.mrf.mxu0
  %v1875 = vadd.f32 0.0, %v1874
  %1876 = vdwg.mxu0
  %v1877 = vadd.f32 %v1729, %v1815
  %v1878 = vadd.f32 %v1730, %v1835
  %v1879 = vadd.f32 %v1731, %v1855
  %v1880 = vadd.f32 %v1732, %v1875
  %v1881 = vxor.u32 %v1877, 2147483648
  %v1882 = vmul.f32 %v1881, 1.442695
  %v1883 = vpow.pop %v1882
  %v1884 = vadd.f32 %v1883, 1.0
  %v1885 = vrcp.pop %v1884
  %v1886 = vmul.f32 %v1884, %v1885
  %v1887 = vsub.f32 1.0, %v1886
  %v1888 = vmul.f32 %v1885, %v1887
  %v1889 = vadd.f32 %v1885, %v1888
  %vm1890 = vweird.f32 %v1884
  %vm1891 = vweird.f32 %v1885
  %vm1892 = vmor %vm1890, %vm1891
  %v1893 = vsel %vm1892, %v1885, %v1889
  %v1894 = vand.u32 2147483647, %v1884
  %vm1895 = vcmp.eq.f32.partialorder %v1894, 8.507059e+37
  %v1896 = vand.u32 %v1884, 2147483648
  %v1897 = vor.u32 1.1754944e-38, %v1896
  %v1898 = vsel %vm1895, %v1897, %v1893
  %v1899 = vmul.f32 1.0, %v1898
  %v1900 = vxor.u32 %v1878, 2147483648
  %v1901 = vmul.f32 %v1900, 1.442695
  %v1902 = vpow.pop %v1901
  %v1903 = vadd.f32 %v1902, 1.0
  %v1904 = vrcp.pop %v1903
  %v1905 = vmul.f32 %v1903, %v1904
  %v1906 = vsub.f32 1.0, %v1905
  %v1907 = vmul.f32 %v1904, %v1906
  %v1908 = vadd.f32 %v1904, %v1907
  %vm1909 = vweird.f32 %v1903
  %vm1910 = vweird.f32 %v1904
  %vm1911 = vmor %vm1909, %vm1910
  %v1912 = vsel %vm1911, %v1904, %v1908
  %v1913 = vand.u32 2147483647, %v1903
  %vm1914 = vcmp.eq.f32.partialorder %v1913, 8.507059e+37
  %v1915 = vand.u32 %v1903, 2147483648
  %v1916 = vor.u32 1.1754944e-38, %v1915
  %v1917 = vsel %vm1914, %v1916, %v1912
  %v1918 = vmul.f32 1.0, %v1917
  %v1919 = vtanh.pop %v1879
  %v1920 = vxor.u32 %v1880, 2147483648
  %v1921 = vmul.f32 %v1920, 1.442695
  %v1922 = vpow.pop %v1921
  %v1923 = vadd.f32 %v1922, 1.0
  %v1924 = vrcp.pop %v1923
  %v1925 = vmul.f32 %v1923, %v1924
  %v1926 = vsub.f32 1.0, %v1925
  %v1927 = vmul.f32 %v1924, %v1926
  %v1928 = vadd.f32 %v1924, %v1927
  %vm1929 = vweird.f32 %v1923
  %vm1930 = vweird.f32 %v1924
  %vm1931 = vmor %vm1929, %vm1930
  %v1932 = vsel %vm1931, %v1924, %v1928
  %v1933 = vand.u32 2147483647, %v1923
  %vm1934 = vcmp.eq.f32.partialorder %v1933, 8.507059e+37
  %v1935 = vand.u32 %v1923, 2147483648
  %v1936 = vor.u32 1.1754944e-38, %v1935
  %v1937 = vsel %vm1934, %v1936, %v1932
  %v1938 = vmul.f32 1.0, %v1937
  %v1939 = vmul.f32 %v1918, %v1727
  %v1940 = vmul.f32 %v1899, %v1919
  %v1941 = vadd.f32 %v1939, %v1940
  %v1942 = vtanh.pop %v1941
  %v1943 = vmul.f32 %v1938, %v1942
  %1944 = vst [vmem:[#allocation2] sm:$0xff] %v1943
  %1945 = vst [vmem:[#allocation3] sm:$0xff] %v1941
  %s1946 = scalar_lea.vmem %s4, 56
  %1947 = vst [vmem:[%s1946] sm:$0xff] %v1943
  // Predicated region
  $region37: #{harry_potter_lm_forward.4} parent=0 // pred_check
    %p1948 = pneg %p18
  $region38: #{harry_potter_lm_forward.4} parent=0 // pred_check_branch
    %1950 = sbr.rel (%p1948) target = $region40
  $region39: #{harry_potter_lm_forward.4} parent=0 // pred_region
    %v1951 = vld [vmem:[#allocation2] sm:$0xff]
    %1952 = vst [vmem:[%s5] sm:$0xff] %v1951
    %v1953 = vld [vmem:[#allocation3] sm:$0xff]
    %1954 = vst [vmem:[%s6] sm:$0xff] %v1953
  $region40: #{harry_potter_lm_forward.4} parent=0 // pred_fallthru
    _
  // Predicated region
  $region41: #{harry_potter_lm_forward.4} parent=0 // pred_check
    _
  $region42: #{harry_potter_lm_forward.4} parent=0 // pred_check_branch
    %1956 = sbr.rel (0) target = $region44
  $region43: #{harry_potter_lm_forward.4} parent=0 // pred_region
    _
  $region44: #{harry_potter_lm_forward.4} parent=0 // pred_fallthru
    _
  // Predicated region
  $region45: #{harry_potter_lm_forward.4} parent=0 // pred_check
    _
  $region46: #{harry_potter_lm_forward.4} parent=0 // pred_check_branch
    %1958 = sbr.rel (0) target = $region48
  $region47: #{harry_potter_lm_forward.4} parent=0 // pred_region
    _
  $region48: #{harry_potter_lm_forward.4} parent=0 // pred_fallthru
    _
  // Predicated region
  $region49: #{harry_potter_lm_forward.4} parent=0 // pred_check
    _
  $region50: #{harry_potter_lm_forward.4} parent=0 // pred_check_branch
    %1960 = sbr.rel (0) target = $region52
  $region51: #{harry_potter_lm_forward.4} parent=0 // pred_region
    _
  $region52: #{harry_potter_lm_forward.4} parent=0 // pred_fallthru
    _
  // Predicated region
  $region53: #{harry_potter_lm_forward.4} parent=0 // pred_check
    _
  $region54: #{harry_potter_lm_forward.4} parent=0 // pred_check_branch
    %1962 = sbr.rel (0) target = $region56
  $region55: #{harry_potter_lm_forward.4} parent=0 // pred_region
    _
  $region56: #{harry_potter_lm_forward.4} parent=0 // pred_fallthru
    _
  // Predicated region
  $region57: #{harry_potter_lm_forward.4} parent=0 // pred_check
    _
  $region58: #{harry_potter_lm_forward.4} parent=0 // pred_check_branch
    %1964 = sbr.rel (0) target = $region60
  $region59: #{harry_potter_lm_forward.4} parent=0 // pred_region
    _
  $region60: #{harry_potter_lm_forward.4} parent=0 // pred_fallthru
    _
  // Predicated region
  $region61: #{harry_potter_lm_forward.4} parent=0 // pred_check
    _
  $region62: #{harry_potter_lm_forward.4} parent=0 // pred_check_branch
    %1966 = sbr.rel (0) target = $region64
  $region63: #{harry_potter_lm_forward.4} parent=0 // pred_region
    _
  $region64: #{harry_potter_lm_forward.4} parent=0 // pred_fallthru
    _
  %1967 = vsyncmov [#allocation5]
  %s1968 = vpop.sfrf %1967
  %p1969 = scmp.eq.s32.totalorder %s1968, 0
  %p1970 = pneg %p1969
  %1972 = shalt.err (%p1970)

</llo_original>
